<compile_context>
chip_gen: v7x
topology: tpu7x:2x2x1
jax: 0.10.0
libtpu: 0.0.40
codegen_flags: <defaults>
</compile_context>

<pallas_src>
import functools

import jax
import jax.numpy as jnp
from jax.experimental import pallas as pl
from jax.experimental.pallas import tpu as pltpu


def _round_up(x, m):
    return (x + m - 1) // m * m


# ----------------------------------------------------------------------------
# Generic tiled matmul + bias (+ optional fused ReLU)
# ----------------------------------------------------------------------------
def _mm_kernel(a_ref, b_ref, bias_ref, o_ref, acc_ref, *, relu):
    @pl.when(pl.program_id(2) == 0)
    def _():
        acc_ref[...] = jnp.zeros_like(acc_ref)

    acc_ref[...] += jnp.dot(a_ref[...], b_ref[...],
                            preferred_element_type=jnp.float32)

    @pl.when(pl.program_id(2) == pl.num_programs(2) - 1)
    def _():
        out = acc_ref[...] + bias_ref[...]
        if relu:
            out = jnp.maximum(out, 0.0)
        o_ref[...] = out.astype(o_ref.dtype)


def matmul_bias(a, b, bias, relu=False, out_dtype=jnp.bfloat16):
    """(M,K)@(K,N)+bias, bf16 operands / f32 accumulation.

    Output columns are padded to a multiple of 128 (lane-dense stores); padded
    columns are exactly zero.  Rows are sliced back to M.  Tiles are sized to
    stay well under v7x's 64 MiB VMEM (<~2 MiB working set per step).
    """
    M, K = a.shape
    _, N = b.shape
    tm = min(256, _round_up(M, 8))
    tn = min(256, _round_up(N, 128))
    tk = K if K <= 512 else 512
    Mp, Np, Kp = _round_up(M, tm), _round_up(N, tn), _round_up(K, tk)
    a_p = jnp.pad(a.astype(jnp.bfloat16), ((0, Mp - M), (0, Kp - K)))
    b_p = jnp.pad(b.astype(jnp.bfloat16), ((0, Kp - K), (0, Np - N)))
    bias_p = jnp.pad(bias.astype(jnp.float32), (0, Np - N)).reshape(1, Np)
    out = pl.pallas_call(
        functools.partial(_mm_kernel, relu=relu),
        out_shape=jax.ShapeDtypeStruct((Mp, Np), out_dtype),
        grid=(Mp // tm, Np // tn, Kp // tk),
        in_specs=[
            pl.BlockSpec((tm, tk), lambda i, j, k: (i, k)),
            pl.BlockSpec((tk, tn), lambda i, j, k: (k, j)),
            pl.BlockSpec((1, tn), lambda i, j, k: (0, j)),
        ],
        out_specs=pl.BlockSpec((tm, tn), lambda i, j, k: (i, j)),
        scratch_shapes=[pltpu.VMEM((tm, tn), jnp.float32)],
        compiler_params=pltpu.CompilerParams(
            dimension_semantics=("parallel", "parallel", "arbitrary")),
    )(a_p, b_p, bias_p)
    return out[:M]          # drop M padding, keep (zero) lane padding on N


# ----------------------------------------------------------------------------
# Two-input matmul: out = relu(a1@b1 + a2@b2 + bias)  (cat-free fuse conv)
# ----------------------------------------------------------------------------
def _mm2_kernel(a1_ref, b1_ref, a2_ref, b2_ref, bias_ref, o_ref, *, relu):
    acc = jnp.dot(a1_ref[...], b1_ref[...], preferred_element_type=jnp.float32)
    acc = acc + jnp.dot(a2_ref[...], b2_ref[...],
                        preferred_element_type=jnp.float32)
    acc = acc + bias_ref[...]
    if relu:
        acc = jnp.maximum(acc, 0.0)
    o_ref[...] = acc.astype(o_ref.dtype)


def matmul2_bias(a1, b1, a2, b2, bias, relu=False, out_dtype=jnp.bfloat16):
    """a1@b1 + a2@b2 + bias.  K1/K2 are channel counts, kept as full blocks."""
    M, K1 = a1.shape
    _, N = b1.shape
    M2, K2 = a2.shape
    assert M2 == M and b2.shape == (K2, N)
    tm = min(256, _round_up(M, 8))
    tn = min(256, _round_up(N, 128))
    Mp, Np = _round_up(M, tm), _round_up(N, tn)
    a1p = jnp.pad(a1.astype(jnp.bfloat16), ((0, Mp - M), (0, 0)))
    a2p = jnp.pad(a2.astype(jnp.bfloat16), ((0, Mp - M), (0, 0)))
    b1p = jnp.pad(b1.astype(jnp.bfloat16), ((0, 0), (0, Np - N)))
    b2p = jnp.pad(b2.astype(jnp.bfloat16), ((0, 0), (0, Np - N)))
    bias_p = jnp.pad(bias.astype(jnp.float32), (0, Np - N)).reshape(1, Np)
    out = pl.pallas_call(
        functools.partial(_mm2_kernel, relu=relu),
        out_shape=jax.ShapeDtypeStruct((Mp, Np), out_dtype),
        grid=(Mp // tm, Np // tn),
        in_specs=[
            pl.BlockSpec((tm, K1), lambda i, j: (i, 0)),
            pl.BlockSpec((K1, tn), lambda i, j: (0, j)),
            pl.BlockSpec((tm, K2), lambda i, j: (i, 0)),
            pl.BlockSpec((K2, tn), lambda i, j: (0, j)),
            pl.BlockSpec((1, tn), lambda i, j: (0, j)),
        ],
        out_specs=pl.BlockSpec((tm, tn), lambda i, j: (i, j)),
        compiler_params=pltpu.CompilerParams(
            dimension_semantics=("parallel", "parallel")),
    )(a1p, b1p, a2p, b2p, bias_p)
    return out[:M]


# ----------------------------------------------------------------------------
# 3x3 / stride-1 / pad-1 conv: im2col built inside the kernel (no HBM cols)
# ----------------------------------------------------------------------------
def _conv3x3_kernel(x_ref, w_ref, b_ref, o_ref, *, Ho, Wo, relu):
    x = x_ref[0]                                   # (Ho+2, Wo+2, Cin_p)
    taps = [x[i:i + Ho, j:j + Wo, :] for i in range(3) for j in range(3)]
    a = jnp.concatenate(taps, axis=-1).reshape(Ho * Wo, -1)   # (Ho*Wo, 9*Cin_p)
    acc = jnp.dot(a, w_ref[...], preferred_element_type=jnp.float32)
    acc = acc + b_ref[...]
    if relu:
        acc = jnp.maximum(acc, 0.0)
    o_ref[0] = acc.reshape(Ho, Wo, -1).astype(o_ref.dtype)


def conv3x3_s1(x_nhwc, w, b, relu=False, out_dtype=jnp.bfloat16):
    """3x3, stride 1, pad 1 conv in NHWC.  One (padded) feature map per grid step.

    # TODO(synk): for very large post-backbone maps this needs spatial tiling
    # with halos; fine for typical segmentation feature maps.
    """
    N, H, W, Cp = x_nhwc.shape
    Cout, Cin, kh, kw = w.shape
    assert kh == 3 and kw == 3 and Cin <= Cp
    Coutp = _round_up(Cout, 128)
    wp = jnp.zeros((Coutp, Cp, 3, 3), jnp.float32).at[:Cout, :Cin].set(
        w.astype(jnp.float32))
    wmat = jnp.transpose(wp, (2, 3, 1, 0)).reshape(9 * Cp, Coutp)
    wmat = wmat.astype(jnp.bfloat16)
    bp = jnp.pad(b.astype(jnp.float32), (0, Coutp - Cout)).reshape(1, Coutp)
    xpad = jnp.pad(x_nhwc, ((0, 0), (1, 1), (1, 1), (0, 0))).astype(jnp.bfloat16)
    Hp, Wp_ = H + 2, W + 2
    return pl.pallas_call(
        functools.partial(_conv3x3_kernel, Ho=H, Wo=W, relu=relu),
        out_shape=jax.ShapeDtypeStruct((N, H, W, Coutp), out_dtype),
        grid=(N,),
        in_specs=[
            pl.BlockSpec((1, Hp, Wp_, Cp), lambda n: (n, 0, 0, 0)),
            pl.BlockSpec((9 * Cp, Coutp), lambda n: (0, 0)),
            pl.BlockSpec((1, Coutp), lambda n: (0, 0)),
        ],
        out_specs=pl.BlockSpec((1, H, W, Coutp), lambda n: (n, 0, 0, 0)),
        compiler_params=pltpu.CompilerParams(dimension_semantics=("parallel",)),
    )(xpad, wmat, bp)


# ----------------------------------------------------------------------------
# Flash-style self-attention (online softmax over KV tiles)
# ----------------------------------------------------------------------------
def _flash_attn_kernel(q_ref, k_ref, v_ref, o_ref, m_sc, l_sc, acc_sc, *, scale):
    kv = pl.program_id(2)

    @pl.when(kv == 0)
    def _():
        m_sc[...] = jnp.full_like(m_sc, -jnp.inf)
        l_sc[...] = jnp.zeros_like(l_sc)
        acc_sc[...] = jnp.zeros_like(acc_sc)

    # f_query = f_key in BaseOC; the key path's InPlaceABN activation (ReLU) and
    # the key_channels**-0.5 scale are applied here to the small tiles.
    q = jnp.maximum(q_ref[0].astype(jnp.float32), 0.0) * scale
    k = jnp.maximum(k_ref[0].astype(jnp.float32), 0.0)
    s = jnp.dot(q, k.T, preferred_element_type=jnp.float32)     # (tq, tkv)

    m_prev = m_sc[...]
    m_new = jnp.maximum(m_prev, jnp.max(s, axis=-1, keepdims=True))
    alpha = jnp.exp(m_prev - m_new)
    p = jnp.exp(s - m_new)
    l_sc[...] = alpha * l_sc[...] + jnp.sum(p, axis=-1, keepdims=True)
    acc_sc[...] = alpha * acc_sc[...] + jnp.dot(
        p.astype(jnp.bfloat16), v_ref[0], preferred_element_type=jnp.float32)
    m_sc[...] = m_new

    @pl.when(kv == pl.num_programs(2) - 1)
    def _():
        o_ref[0] = (acc_sc[...] *
                    pl.reciprocal(l_sc[...], approx=True)).astype(o_ref.dtype)


def _pick_tile(s):
    for t in (512, 256, 128, 64, 32, 16, 8):
        if s % t == 0:
            return t
    return s


def flash_attention(q, k, v, scale, out_dtype=jnp.bfloat16):
    B, S, Ck = q.shape
    Cv = v.shape[-1]
    tq = _pick_tile(S)
    tkv = _pick_tile(S)
    return pl.pallas_call(
        functools.partial(_flash_attn_kernel, scale=scale),
        out_shape=jax.ShapeDtypeStruct((B, S, Cv), out_dtype),
        grid=(B, S // tq, S // tkv),
        in_specs=[
            pl.BlockSpec((1, tq, Ck), lambda b, qi, ki: (b, qi, 0)),
            pl.BlockSpec((1, tkv, Ck), lambda b, qi, ki: (b, ki, 0)),
            pl.BlockSpec((1, tkv, Cv), lambda b, qi, ki: (b, ki, 0)),
        ],
        out_specs=pl.BlockSpec((1, tq, Cv), lambda b, qi, ki: (b, qi, 0)),
        scratch_shapes=[
            pltpu.VMEM((tq, 1), jnp.float32),
            pltpu.VMEM((tq, 1), jnp.float32),
            pltpu.VMEM((tq, Cv), jnp.float32),
        ],
        compiler_params=pltpu.CompilerParams(
            dimension_semantics=("parallel", "parallel", "arbitrary")),
    )(q.astype(jnp.bfloat16), k.astype(jnp.bfloat16), v.astype(jnp.bfloat16))


# ----------------------------------------------------------------------------
# Bilinear upsample (align_corners=True): both interp matmuls in one kernel
# ----------------------------------------------------------------------------
def _upsample_kernel(rh_ref, rwt_ref, x_ref, o_ref):
    t = jnp.dot(rh_ref[...], x_ref[0], preferred_element_type=jnp.float32)
    o_ref[0] = jnp.dot(t, rwt_ref[...],
                       preferred_element_type=jnp.float32).astype(o_ref.dtype)


def _interp_matrix(out_size, in_size):
    if in_size == 1:
        return jnp.ones((out_size, 1), jnp.float32)
    if out_size == 1:
        return jnp.zeros((1, in_size), jnp.float32).at[0, 0].set(1.0)
    y = jnp.arange(out_size, dtype=jnp.float32) * (in_size - 1) / (out_size - 1)
    j0 = jnp.clip(jnp.floor(y).astype(jnp.int32), 0, in_size - 2)
    wgt = y - j0.astype(jnp.float32)
    rows = jnp.arange(out_size)
    M = jnp.zeros((out_size, in_size), jnp.float32)
    M = M.at[rows, j0].add(1.0 - wgt)
    M = M.at[rows, j0 + 1].add(wgt)
    return M


def bilinear_upsample_nchw(x_nchw, Hout, Wout):
    N, C, h, w = x_nchw.shape
    Rh = _interp_matrix(Hout, h)
    RwT = _interp_matrix(Wout, w).T
    x = x_nchw.reshape(N * C, h, w).astype(jnp.float32)
    out = pl.pallas_call(
        _upsample_kernel,
        out_shape=jax.ShapeDtypeStruct((N * C, Hout, Wout), jnp.float32),
        grid=(N * C,),
        in_specs=[
            pl.BlockSpec((Hout, h), lambda i: (0, 0)),
            pl.BlockSpec((w, Wout), lambda i: (0, 0)),
            pl.BlockSpec((1, h, w), lambda i: (i, 0, 0)),
        ],
        out_specs=pl.BlockSpec((1, Hout, Wout), lambda i: (i, 0, 0)),
        compiler_params=pltpu.CompilerParams(dimension_semantics=("parallel",)),
    )(Rh, RwT, x)
    return out.reshape(N, C, Hout, Wout)


# ----------------------------------------------------------------------------
# Glue: BN folding, 1x1 weight matrices, backbone stand-in conv (XLA im2col)
# ----------------------------------------------------------------------------
def fold_bn(w, b, bn):
    """Fold an inference-mode BatchNorm2d into the preceding conv."""
    scale = bn["gamma"] / jnp.sqrt(bn["var"] + bn["eps"])
    return w * scale[:, None, None, None], (b - bn["mean"]) * scale + bn["beta"]


def conv1x1_mat(w, cin_p):
    """(Cout,Cin,1,1) conv weight -> (cin_p, Cout) matrix, zero-padded rows."""
    cout, cin = w.shape[0], w.shape[1]
    m = w[:, :, 0, 0].T
    return jnp.pad(m, ((0, cin_p - cin), (0, 0)))


def conv2d_im2col(x_nhwc, w, b, stride=1, padding=0, relu=False,
                  out_dtype=jnp.bfloat16):
    """General conv via XLA im2col + tiled matmul (used only for the small-Cin
    backbone stand-in, where the 9x cols blow-up is negligible)."""
    Cout, Cin, kh, kw = w.shape
    N, H, W, _ = x_nhwc.shape
    x = x_nhwc
    if padding:
        x = jnp.pad(x, ((0, 0), (padding, padding), (padding, padding), (0, 0)))
    Ho = (H + 2 * padding - kh) // stride + 1
    Wo = (W + 2 * padding - kw) // stride + 1
    taps = [x[:, i:i + stride * Ho:stride, j:j + stride * Wo:stride, :]
            for i in range(kh) for j in range(kw)]
    cols = jnp.concatenate(taps, axis=-1).reshape(N * Ho * Wo, kh * kw * Cin)
    wmat = jnp.transpose(w, (2, 3, 1, 0)).reshape(kh * kw * Cin, Cout)
    out = matmul_bias(cols, wmat, b, relu=relu, out_dtype=out_dtype)
    return out.reshape(N, Ho, Wo, out.shape[1])


# ----------------------------------------------------------------------------
# Model: ResNet_Base_OC forward
# ----------------------------------------------------------------------------
def resnet_base_oc_forward(x_nchw, p):
    Hin, Win = x_nchw.shape[-2], x_nchw.shape[-1]
    num_classes = p["cls_w"].shape[0]
    out_ch = p["ctx_w"].shape[0]
    kc = p["fkey_w"].shape[0]
    vc = p["fval_w"].shape[0]

    x = jnp.transpose(x_nchw, (0, 2, 3, 1))        # NHWC only at the boundary

    # backbone (synthetic stand-in; real backbone is an external module):
    # conv3x3 / stride 2 / pad 1 + ReLU
    f = conv2d_im2col(x, p["bb_w"], p["bb_b"], stride=2, padding=1, relu=True)
    Nb, Hf, Wf, _ = f.shape

    # context[0:2]: Conv2d(3x3, pad 1) -> BatchNorm2d  (BN folded, no activation)
    wc, bc = fold_bn(p["ctx_w"], p["ctx_b"], p["ctx_bn"])
    feats = conv3x3_s1(f, wc, bc, relu=False)      # (Nb,Hf,Wf,Cfp), pad cols = 0
    Cfp = feats.shape[-1]
    M = Nb * Hf * Wf
    S = Hf * Wf
    feats_flat = feats.reshape(M, Cfp)

    # context[2]: BaseOC_Module (sizes=[1] -> single SelfAttentionBlock2D)
    # f_key (conv1x1 + BN folded; ReLU applied inside the attention kernel)
    # and f_value (conv1x1) fused into one matmul over feats.
    wk, bk = fold_bn(p["fkey_w"], p["fkey_b"], p["fkey_bn"])
    Bkv = jnp.concatenate([conv1x1_mat(wk, Cfp),
                           conv1x1_mat(p["fval_w"], Cfp)], axis=1)
    bkv = jnp.concatenate([bk, p["fval_b"]])
    kv = matmul_bias(feats_flat, Bkv, bkv, relu=False).reshape(Nb, S, -1)
    q = kv[:, :, :kc]                              # query == key (shared weights)
    v = kv[:, :, kc:kc + vc]
    ctx = flash_attention(q, q, v, scale=float(kc) ** -0.5)   # (Nb, S, vc)

    # W projection folded into the fuse conv (conv_bn_dropout):
    #   fuse = relu( attn @ (Ww @ Wf_top) + feats @ Wf_bot + (bw @ Wf_top + bf) )
    # so cat([context, feats]) is never materialized.
    wf, bf = fold_bn(p["fuse_w"], p["fuse_b"], p["fuse_bn"])
    Wf_mat = wf[:, :, 0, 0].T                      # (2*out_ch, out_ch): [ctx|feats]
    Ww_mat = p["W_w"][:, :, 0, 0].T                # (vc, out_ch)
    B1 = Ww_mat @ Wf_mat[:out_ch]                  # (vc, out_ch)
    B2 = jnp.pad(Wf_mat[out_ch:], ((0, Cfp - out_ch), (0, 0)))  # (Cfp, out_ch)
    bias_fuse = p["W_b"] @ Wf_mat[:out_ch] + bf
    fused = matmul2_bias(ctx.reshape(M, vc), B1, feats_flat, B2,
                         bias_fuse, relu=True)
    # TODO(synk): Dropout2d(0.05) in conv_bn_dropout is identity at inference.

    # cls: Conv2d(1x1, bias=True)
    logits = matmul_bias(fused, conv1x1_mat(p["cls_w"], fused.shape[1]),
                         p["cls_b"], relu=False, out_dtype=jnp.float32)
    logits = logits[:, :num_classes].reshape(Nb, Hf, Wf, num_classes)
    logits = jnp.transpose(logits, (0, 3, 1, 2))   # small tensor -> NCHW

    # F.interpolate(size=input_shape, mode='bilinear', align_corners=True)
    return bilinear_upsample_nchw(logits, Hin, Win)


# ----------------------------------------------------------------------------
# Deterministic parameter init (synthetic; shapes follow __init__)
# ----------------------------------------------------------------------------
def init_params(key, in_ch, inplanes, outplanes, num_classes):
    keys = iter(jax.random.split(key, 32))

    def conv_w(co, ci, kh, kw, scale=0.1):
        return scale * jax.random.normal(next(keys), (co, ci, kh, kw), jnp.float32)

    def conv_b(co):
        return 0.01 * jax.random.normal(next(keys), (co,), jnp.float32)

    def bn_p(c):
        return dict(
            gamma=1.0 + 0.1 * jax.random.normal(next(keys), (c,), jnp.float32),
            beta=0.05 * jax.random.normal(next(keys), (c,), jnp.float32),
            mean=0.05 * jax.random.normal(next(keys), (c,), jnp.float32),
            var=1.0 + 0.1 * jnp.abs(jax.random.normal(next(keys), (c,), jnp.float32)),
            eps=1e-5,
        )

    kc = outplanes // 2   # key_channels
    vc = outplanes // 2   # value_channels
    return dict(
        bb_w=conv_w(inplanes, in_ch, 3, 3), bb_b=conv_b(inplanes),
        ctx_w=conv_w(outplanes, inplanes, 3, 3), ctx_b=conv_b(outplanes),
        ctx_bn=bn_p(outplanes),
        fkey_w=conv_w(kc, outplanes, 1, 1), fkey_b=conv_b(kc), fkey_bn=bn_p(kc),
        fval_w=conv_w(vc, outplanes, 1, 1), fval_b=conv_b(vc),
        W_w=conv_w(outplanes, vc, 1, 1), W_b=conv_b(outplanes),
        fuse_w=conv_w(outplanes, 2 * outplanes, 1, 1), fuse_b=conv_b(outplanes),
        fuse_bn=bn_p(outplanes),
        cls_w=conv_w(num_classes, outplanes, 1, 1), cls_b=conv_b(num_classes),
    )


if __name__ == "__main__":
    key = jax.random.PRNGKey(0)
    B, Cin, H, W = 2, 4, 16, 16
    inplanes, outplanes, num_classes = 8, 16, 5

    kx, kp = jax.random.split(key)
    x = jax.random.normal(kx, (B, Cin, H, W), jnp.float32)   # NCHW, like PyTorch
    params = init_params(kp, Cin, inplanes, outplanes, num_classes)

    fwd = jax.jit(resnet_base_oc_forward)
    out = jax.block_until_ready(fwd(x, params))

    assert out.shape == (B, num_classes, H, W), out.shape
    assert bool(jnp.all(jnp.isfinite(out)))
    print("KERNEL_OK")
</pallas_src>

<mosaic_0001>
module attributes {stable_mosaic.version = 11 : i64} {
  func.func private @main(%arg0: i32) attributes {dimension_semantics = [#tpu.dimension_semantics<core_parallel>], iteration_bounds = array<i64: 2>, tpu.core_type = #tpu.core_type<sc_scalar_subcore>, window_params = []} {
    return
  }
}

module attributes {stable_mosaic.version = 11 : i64} {
  func.func private @main(%arg0: i32) attributes {dimension_semantics = [#tpu.dimension_semantics<core_parallel>], iteration_bounds = array<i64: 2>, tpu.core_type = #tpu.core_type<sc_scalar_subcore>, window_params = []} {
    return
  }
}

module attributes {stable_mosaic.version = 11 : i64} {
  func.func @_mm_kernel(%arg0: i32, %arg1: i32, %arg2: i32, %arg3: memref<128x36xbf16, #tpu.memory_space<vmem>>, %arg4: memref<36x128xbf16, #tpu.memory_space<vmem>>, %arg5: memref<1x128xf32, #tpu.memory_space<vmem>>, %arg6: memref<128x128xbf16, #tpu.memory_space<vmem>>, %arg7: memref<128x128xf32, #tpu.memory_space<vmem>>) attributes {dimension_semantics = [#tpu.dimension_semantics<parallel>, #tpu.dimension_semantics<parallel>, #tpu.dimension_semantics<arbitrary>], iteration_bounds = array<i64: 1, 1, 1>, scalar_prefetch = 0 : i64, scratch_operands = 1 : i64, tpu.core_type = #tpu.core_type<tc>, window_params = [{transform_indices = @transform_0, window_bounds = array<i64: 128, 36>}, {transform_indices = @transform_1, window_bounds = array<i64: 36, 128>}, {transform_indices = @transform_2, window_bounds = array<i64: 1, 128>}, {transform_indices = @transform_3, window_bounds = array<i64: 128, 128>}]} {
    %c0_i32 = arith.constant 0 : i32
    %0 = arith.cmpi eq, %arg2, %c0_i32 : i32
    %1 = arith.extui %0 : i1 to i32
    %c0_i32_0 = arith.constant 0 : i32
    %2 = arith.cmpi ne, %1, %c0_i32_0 : i32
    scf.if %2 {
      %cst_10 = arith.constant 0.000000e+00 : f32
      %12 = vector.broadcast %cst_10 : f32 to vector<128x128xf32>
      %c0_11 = arith.constant 0 : index
      %c0_12 = arith.constant 0 : index
      %13 = vector.load %arg7[%c0_11, %c0_12] : memref<128x128xf32, #tpu.memory_space<vmem>>, vector<128x128xf32>
      tpu.vector_store %arg7[%c0_11, %c0_12], %12 {strides = array<i32>} : memref<128x128xf32, #tpu.memory_space<vmem>>, vector<128x128xf32>,
    } else {
    }
    %c0 = arith.constant 0 : index
    %c0_1 = arith.constant 0 : index
    %3 = vector.load %arg7[%c0, %c0_1] : memref<128x128xf32, #tpu.memory_space<vmem>>, vector<128x128xf32>
    %c0_2 = arith.constant 0 : index
    %c0_3 = arith.constant 0 : index
    %4 = vector.load %arg3[%c0_2, %c0_3] : memref<128x36xbf16, #tpu.memory_space<vmem>>, vector<128x36xbf16>
    %c0_4 = arith.constant 0 : index
    %c0_5 = arith.constant 0 : index
    %5 = vector.load %arg4[%c0_4, %c0_5] : memref<36x128xbf16, #tpu.memory_space<vmem>>, vector<36x128xbf16>
    %cst = arith.constant dense<0.000000e+00> : vector<128x128xf32>
    %6 = tpu.matmul %4, %5, %cst {dimension_numbers = #tpu.dot_dimension_numbers<[1], [0], [0], [1], [0, 0, 1, 1], [], []>} : vector<128x36xbf16>, vector<36x128xbf16>, vector<128x128xf32> -> vector<128x128xf32>
    %7 = arith.addf %3, %6 : vector<128x128xf32>
    %c0_6 = arith.constant 0 : index
    %c0_7 = arith.constant 0 : index
    %8 = vector.load %arg7[%c0_6, %c0_7] : memref<128x128xf32, #tpu.memory_space<vmem>>, vector<128x128xf32>
    tpu.vector_store %arg7[%c0_6, %c0_7], %7 {strides = array<i32>} : memref<128x128xf32, #tpu.memory_space<vmem>>, vector<128x128xf32>,
    %c0_i32_8 = arith.constant 0 : i32
    %9 = arith.cmpi eq, %arg2, %c0_i32_8 : i32
    %10 = arith.extui %9 : i1 to i32
    %c0_i32_9 = arith.constant 0 : i32
    %11 = arith.cmpi ne, %10, %c0_i32_9 : i32
    scf.if %11 {
      %c0_10 = arith.constant 0 : index
      %c0_11 = arith.constant 0 : index
      %12 = vector.load %arg7[%c0_10, %c0_11] : memref<128x128xf32, #tpu.memory_space<vmem>>, vector<128x128xf32>
      %c0_12 = arith.constant 0 : index
      %c0_13 = arith.constant 0 : index
      %13 = vector.load %arg5[%c0_12, %c0_13] : memref<1x128xf32, #tpu.memory_space<vmem>>, vector<1x128xf32>
      %14 = vector.broadcast %13 : vector<1x128xf32> to vector<128x128xf32>
      %15 = arith.addf %12, %14 : vector<128x128xf32>
      %cst_14 = arith.constant 0.000000e+00 : f32
      %16 = vector.broadcast %cst_14 : f32 to vector<128x128xf32>
      %17 = arith.maximumf %15, %16 : vector<128x128xf32>
      %18 = arith.truncf %17 : vector<128x128xf32> to vector<128x128xbf16>
      %c0_15 = arith.constant 0 : index
      %c0_16 = arith.constant 0 : index
      %19 = vector.load %arg6[%c0_15, %c0_16] : memref<128x128xbf16, #tpu.memory_space<vmem>>, vector<128x128xbf16>
      tpu.vector_store %arg6[%c0_15, %c0_16], %18 {strides = array<i32>} : memref<128x128xbf16, #tpu.memory_space<vmem>>, vector<128x128xbf16>,
    } else {
    }
    return
  }
  func.func @transform_0(%arg0: i32, %arg1: i32, %arg2: i32) -> (i32, i32) {
    %c0_i32 = arith.constant 0 : i32
    return %arg0, %arg2 : i32, i32
  }
  func.func @transform_1(%arg0: i32, %arg1: i32, %arg2: i32) -> (i32, i32) {
    %c0_i32 = arith.constant 0 : i32
    return %arg2, %arg1 : i32, i32
  }
  func.func @transform_2(%arg0: i32, %arg1: i32, %arg2: i32) -> (i32, i32) {
    %c0_i32 = arith.constant 0 : i32
    %c0_i32_0 = arith.constant 0 : i32
    return %c0_i32, %arg1 : i32, i32
  }
  func.func @transform_3(%arg0: i32, %arg1: i32, %arg2: i32) -> (i32, i32) {
    %c0_i32 = arith.constant 0 : i32
    return %arg0, %arg1 : i32, i32
  }
}

module attributes {stable_mosaic.version = 11 : i64} {
  func.func @_mm_kernel(%arg0: i32, %arg1: i32, %arg2: i32, %arg3: memref<128x128xbf16, #tpu.memory_space<vmem>>, %arg4: memref<128x128xbf16, #tpu.memory_space<vmem>>, %arg5: memref<1x128xf32, #tpu.memory_space<vmem>>, %arg6: memref<128x128xbf16, #tpu.memory_space<vmem>>, %arg7: memref<128x128xf32, #tpu.memory_space<vmem>>) attributes {dimension_semantics = [#tpu.dimension_semantics<parallel>, #tpu.dimension_semantics<parallel>, #tpu.dimension_semantics<arbitrary>], iteration_bounds = array<i64: 1, 1, 1>, scalar_prefetch = 0 : i64, scratch_operands = 1 : i64, tpu.core_type = #tpu.core_type<tc>, window_params = [{transform_indices = @transform_0, window_bounds = array<i64: 128, 128>}, {transform_indices = @transform_1, window_bounds = array<i64: 128, 128>}, {transform_indices = @transform_2, window_bounds = array<i64: 1, 128>}, {transform_indices = @transform_3, window_bounds = array<i64: 128, 128>}]} {
    %c0_i32 = arith.constant 0 : i32
    %0 = arith.cmpi eq, %arg2, %c0_i32 : i32
    %1 = arith.extui %0 : i1 to i32
    %c0_i32_0 = arith.constant 0 : i32
    %2 = arith.cmpi ne, %1, %c0_i32_0 : i32
    scf.if %2 {
      %cst_10 = arith.constant 0.000000e+00 : f32
      %12 = vector.broadcast %cst_10 : f32 to vector<128x128xf32>
      %c0_11 = arith.constant 0 : index
      %c0_12 = arith.constant 0 : index
      %13 = vector.load %arg7[%c0_11, %c0_12] : memref<128x128xf32, #tpu.memory_space<vmem>>, vector<128x128xf32>
      tpu.vector_store %arg7[%c0_11, %c0_12], %12 {strides = array<i32>} : memref<128x128xf32, #tpu.memory_space<vmem>>, vector<128x128xf32>,
    } else {
    }
    %c0 = arith.constant 0 : index
    %c0_1 = arith.constant 0 : index
    %3 = vector.load %arg7[%c0, %c0_1] : memref<128x128xf32, #tpu.memory_space<vmem>>, vector<128x128xf32>
    %c0_2 = arith.constant 0 : index
    %c0_3 = arith.constant 0 : index
    %4 = vector.load %arg3[%c0_2, %c0_3] : memref<128x128xbf16, #tpu.memory_space<vmem>>, vector<128x128xbf16>
    %c0_4 = arith.constant 0 : index
    %c0_5 = arith.constant 0 : index
    %5 = vector.load %arg4[%c0_4, %c0_5] : memref<128x128xbf16, #tpu.memory_space<vmem>>, vector<128x128xbf16>
    %cst = arith.constant dense<0.000000e+00> : vector<128x128xf32>
    %6 = tpu.matmul %4, %5, %cst {dimension_numbers = #tpu.dot_dimension_numbers<[1], [0], [0], [1], [0, 0, 1, 1], [], []>} : vector<128x128xbf16>, vector<128x128xbf16>, vector<128x128xf32> -> vector<128x128xf32>
    %7 = arith.addf %3, %6 : vector<128x128xf32>
    %c0_6 = arith.constant 0 : index
    %c0_7 = arith.constant 0 : index
    %8 = vector.load %arg7[%c0_6, %c0_7] : memref<128x128xf32, #tpu.memory_space<vmem>>, vector<128x128xf32>
    tpu.vector_store %arg7[%c0_6, %c0_7], %7 {strides = array<i32>} : memref<128x128xf32, #tpu.memory_space<vmem>>, vector<128x128xf32>,
    %c0_i32_8 = arith.constant 0 : i32
    %9 = arith.cmpi eq, %arg2, %c0_i32_8 : i32
    %10 = arith.extui %9 : i1 to i32
    %c0_i32_9 = arith.constant 0 : i32
    %11 = arith.cmpi ne, %10, %c0_i32_9 : i32
    scf.if %11 {
      %c0_10 = arith.constant 0 : index
      %c0_11 = arith.constant 0 : index
      %12 = vector.load %arg7[%c0_10, %c0_11] : memref<128x128xf32, #tpu.memory_space<vmem>>, vector<128x128xf32>
      %c0_12 = arith.constant 0 : index
      %c0_13 = arith.constant 0 : index
      %13 = vector.load %arg5[%c0_12, %c0_13] : memref<1x128xf32, #tpu.memory_space<vmem>>, vector<1x128xf32>
      %14 = vector.broadcast %13 : vector<1x128xf32> to vector<128x128xf32>
      %15 = arith.addf %12, %14 : vector<128x128xf32>
      %16 = arith.truncf %15 : vector<128x128xf32> to vector<128x128xbf16>
      %c0_14 = arith.constant 0 : index
      %c0_15 = arith.constant 0 : index
      %17 = vector.load %arg6[%c0_14, %c0_15] : memref<128x128xbf16, #tpu.memory_space<vmem>>, vector<128x128xbf16>
      tpu.vector_store %arg6[%c0_14, %c0_15], %16 {strides = array<i32>} : memref<128x128xbf16, #tpu.memory_space<vmem>>, vector<128x128xbf16>,
    } else {
    }
    return
  }
  func.func @transform_0(%arg0: i32, %arg1: i32, %arg2: i32) -> (i32, i32) {
    %c0_i32 = arith.constant 0 : i32
    return %arg0, %arg2 : i32, i32
  }
  func.func @transform_1(%arg0: i32, %arg1: i32, %arg2: i32) -> (i32, i32) {
    %c0_i32 = arith.constant 0 : i32
    return %arg2, %arg1 : i32, i32
  }
  func.func @transform_2(%arg0: i32, %arg1: i32, %arg2: i32) -> (i32, i32) {
    %c0_i32 = arith.constant 0 : i32
    %c0_i32_0 = arith.constant 0 : i32
    return %c0_i32, %arg1 : i32, i32
  }
  func.func @transform_3(%arg0: i32, %arg1: i32, %arg2: i32) -> (i32, i32) {
    %c0_i32 = arith.constant 0 : i32
    return %arg0, %arg1 : i32, i32
  }
}

module attributes {stable_mosaic.version = 11 : i64} {
  func.func @_conv3x3_kernel(%arg0: i32, %arg1: memref<1x10x10x128xbf16, #tpu.memory_space<vmem>>, %arg2: memref<1152x128xbf16, #tpu.memory_space<vmem>>, %arg3: memref<1x128xf32, #tpu.memory_space<vmem>>, %arg4: memref<1x8x8x128xbf16, #tpu.memory_space<vmem>>) attributes {dimension_semantics = [#tpu.dimension_semantics<parallel>], iteration_bounds = array<i64: 2>, scalar_prefetch = 0 : i64, scratch_operands = 0 : i64, tpu.core_type = #tpu.core_type<tc>, window_params = [{transform_indices = @transform_0, window_bounds = array<i64: 1, 10, 10, 128>}, {pipeline_mode = #tpu.pipeline_mode<synchronous>, transform_indices = @transform_1, window_bounds = array<i64: 1152, 128>}, {pipeline_mode = #tpu.pipeline_mode<synchronous>, transform_indices = @transform_2, window_bounds = array<i64: 1, 128>}, {transform_indices = @transform_3, window_bounds = array<i64: 1, 8, 8, 128>}]} {
    %c0 = arith.constant 0 : index
    %c0_0 = arith.constant 0 : index
    %c0_1 = arith.constant 0 : index
    %c0_2 = arith.constant 0 : index
    %0 = vector.load %arg1[%c0, %c0_0, %c0_1, %c0_2] : memref<1x10x10x128xbf16, #tpu.memory_space<vmem>>, vector<1x10x10x128xbf16>
    %1 = vector.shape_cast %0 : vector<1x10x10x128xbf16> to vector<10x10x128xbf16>
    %2 = vector.extract_strided_slice %1 {offsets = [0, 0, 0], sizes = [8, 8, 128], strides = [1, 1, 1]} : vector<10x10x128xbf16> to vector<8x8x128xbf16>
    %3 = vector.extract_strided_slice %1 {offsets = [0, 1, 0], sizes = [8, 8, 128], strides = [1, 1, 1]} : vector<10x10x128xbf16> to vector<8x8x128xbf16>
    %4 = vector.extract_strided_slice %1 {offsets = [0, 2, 0], sizes = [8, 8, 128], strides = [1, 1, 1]} : vector<10x10x128xbf16> to vector<8x8x128xbf16>
    %5 = vector.extract_strided_slice %1 {offsets = [1, 0, 0], sizes = [8, 8, 128], strides = [1, 1, 1]} : vector<10x10x128xbf16> to vector<8x8x128xbf16>
    %6 = vector.extract_strided_slice %1 {offsets = [1, 1, 0], sizes = [8, 8, 128], strides = [1, 1, 1]} : vector<10x10x128xbf16> to vector<8x8x128xbf16>
    %7 = vector.extract_strided_slice %1 {offsets = [1, 2, 0], sizes = [8, 8, 128], strides = [1, 1, 1]} : vector<10x10x128xbf16> to vector<8x8x128xbf16>
    %8 = vector.extract_strided_slice %1 {offsets = [2, 0, 0], sizes = [8, 8, 128], strides = [1, 1, 1]} : vector<10x10x128xbf16> to vector<8x8x128xbf16>
    %9 = vector.extract_strided_slice %1 {offsets = [2, 1, 0], sizes = [8, 8, 128], strides = [1, 1, 1]} : vector<10x10x128xbf16> to vector<8x8x128xbf16>
    %10 = vector.extract_strided_slice %1 {offsets = [2, 2, 0], sizes = [8, 8, 128], strides = [1, 1, 1]} : vector<10x10x128xbf16> to vector<8x8x128xbf16>
    %11 = tpu.concatenate %2, %3, %4, %5, %6, %7, %8, %9, %10 in 2 : vector<8x8x128xbf16>, vector<8x8x128xbf16>, vector<8x8x128xbf16>, vector<8x8x128xbf16>, vector<8x8x128xbf16>, vector<8x8x128xbf16>, vector<8x8x128xbf16>, vector<8x8x128xbf16>, vector<8x8x128xbf16> -> vector<8x8x1152xbf16>
    %12 = vector.shape_cast %11 : vector<8x8x1152xbf16> to vector<64x1152xbf16>
    %c0_3 = arith.constant 0 : index
    %c0_4 = arith.constant 0 : index
    %13 = vector.load %arg2[%c0_3, %c0_4] : memref<1152x128xbf16, #tpu.memory_space<vmem>>, vector<1152x128xbf16>
    %cst = arith.constant dense<0.000000e+00> : vector<64x128xf32>
    %14 = tpu.matmul %12, %13, %cst {dimension_numbers = #tpu.dot_dimension_numbers<[1], [0], [0], [1], [0, 0, 1, 1], [], []>} : vector<64x1152xbf16>, vector<1152x128xbf16>, vector<64x128xf32> -> vector<64x128xf32>
    %c0_5 = arith.constant 0 : index
    %c0_6 = arith.constant 0 : index
    %15 = vector.load %arg3[%c0_5, %c0_6] : memref<1x128xf32, #tpu.memory_space<vmem>>, vector<1x128xf32>
    %16 = vector.broadcast %15 : vector<1x128xf32> to vector<64x128xf32>
    %17 = arith.addf %14, %16 : vector<64x128xf32>
    %18 = vector.shape_cast %17 : vector<64x128xf32> to vector<8x8x128xf32>
    %19 = arith.truncf %18 : vector<8x8x128xf32> to vector<8x8x128xbf16>
    %c0_7 = arith.constant 0 : index
    %c0_8 = arith.constant 0 : index
    %c0_9 = arith.constant 0 : index
    %c0_10 = arith.constant 0 : index
    %20 = vector.load %arg4[%c0_7, %c0_8, %c0_9, %c0_10] : memref<1x8x8x128xbf16, #tpu.memory_space<vmem>>, vector<1x8x8x128xbf16>
    %21 = vector.shape_cast %20 : vector<1x8x8x128xbf16> to vector<8x8x128xbf16>
    %22 = vector.shape_cast %19 : vector<8x8x128xbf16> to vector<1x8x8x128xbf16>
    tpu.vector_store %arg4[%c0_7, %c0_8, %c0_9, %c0_10], %22 {strides = array<i32>} : memref<1x8x8x128xbf16, #tpu.memory_space<vmem>>, vector<1x8x8x128xbf16>,
    return
  }
  func.func @transform_0(%arg0: i32) -> (i32, i32, i32, i32) {
    %c0_i32 = arith.constant 0 : i32
    %c0_i32_0 = arith.constant 0 : i32
    %c0_i32_1 = arith.constant 0 : i32
    %c0_i32_2 = arith.constant 0 : i32
    return %arg0, %c0_i32, %c0_i32_0, %c0_i32_1 : i32, i32, i32, i32
  }
  func.func @transform_1(%arg0: i32) -> (i32, i32) {
    %c0_i32 = arith.constant 0 : i32
    %c0_i32_0 = arith.constant 0 : i32
    %c0_i32_1 = arith.constant 0 : i32
    return %c0_i32, %c0_i32_0 : i32, i32
  }
  func.func @transform_2(%arg0: i32) -> (i32, i32) {
    %c0_i32 = arith.constant 0 : i32
    %c0_i32_0 = arith.constant 0 : i32
    %c0_i32_1 = arith.constant 0 : i32
    return %c0_i32, %c0_i32_0 : i32, i32
  }
  func.func @transform_3(%arg0: i32) -> (i32, i32, i32, i32) {
    %c0_i32 = arith.constant 0 : i32
    %c0_i32_0 = arith.constant 0 : i32
    %c0_i32_1 = arith.constant 0 : i32
    %c0_i32_2 = arith.constant 0 : i32
    return %arg0, %c0_i32, %c0_i32_0, %c0_i32_1 : i32, i32, i32, i32
  }
}

module attributes {stable_mosaic.version = 11 : i64} {
  func.func @_flash_attn_kernel(%arg0: i32, %arg1: i32, %arg2: i32, %arg3: memref<1x64x8xbf16, #tpu.memory_space<vmem>>, %arg4: memref<1x64x8xbf16, #tpu.memory_space<vmem>>, %arg5: memref<1x64x8xbf16, #tpu.memory_space<vmem>>, %arg6: memref<1x64x8xbf16, #tpu.memory_space<vmem>>, %arg7: memref<64x1xf32, #tpu.memory_space<vmem>>, %arg8: memref<64x1xf32, #tpu.memory_space<vmem>>, %arg9: memref<64x8xf32, #tpu.memory_space<vmem>>) attributes {dimension_semantics = [#tpu.dimension_semantics<parallel>, #tpu.dimension_semantics<parallel>, #tpu.dimension_semantics<arbitrary>], iteration_bounds = array<i64: 2, 1, 1>, scalar_prefetch = 0 : i64, scratch_operands = 3 : i64, tpu.core_type = #tpu.core_type<tc>, window_params = [{transform_indices = @transform_0, window_bounds = array<i64: 1, 64, 8>}, {transform_indices = @transform_1, window_bounds = array<i64: 1, 64, 8>}, {transform_indices = @transform_2, window_bounds = array<i64: 1, 64, 8>}, {transform_indices = @transform_3, window_bounds = array<i64: 1, 64, 8>}]} {
    %c0_i32 = arith.constant 0 : i32
    %0 = arith.cmpi eq, %arg2, %c0_i32 : i32
    %1 = arith.extui %0 : i1 to i32
    %c0_i32_0 = arith.constant 0 : i32
    %2 = arith.cmpi ne, %1, %c0_i32_0 : i32
    scf.if %2 {
      %cst_29 = arith.constant 0xFF800000 : f32
      %45 = vector.broadcast %cst_29 : f32 to vector<64x1xf32>
      %c0_30 = arith.constant 0 : index
      %c0_31 = arith.constant 0 : index
      %46 = vector.load %arg7[%c0_30, %c0_31] : memref<64x1xf32, #tpu.memory_space<vmem>>, vector<64x1xf32>
      tpu.vector_store %arg7[%c0_30, %c0_31], %45 {strides = array<i32>} : memref<64x1xf32, #tpu.memory_space<vmem>>, vector<64x1xf32>,
      %cst_32 = arith.constant 0.000000e+00 : f32
      %47 = vector.broadcast %cst_32 : f32 to vector<64x1xf32>
      %c0_33 = arith.constant 0 : index
      %c0_34 = arith.constant 0 : index
      %48 = vector.load %arg8[%c0_33, %c0_34] : memref<64x1xf32, #tpu.memory_space<vmem>>, vector<64x1xf32>
      tpu.vector_store %arg8[%c0_33, %c0_34], %47 {strides = array<i32>} : memref<64x1xf32, #tpu.memory_space<vmem>>, vector<64x1xf32>,
      %cst_35 = arith.constant 0.000000e+00 : f32
      %49 = vector.broadcast %cst_35 : f32 to vector<64x8xf32>
      %c0_36 = arith.constant 0 : index
      %c0_37 = arith.constant 0 : index
      %50 = vector.load %arg9[%c0_36, %c0_37] : memref<64x8xf32, #tpu.memory_space<vmem>>, vector<64x8xf32>
      tpu.vector_store %arg9[%c0_36, %c0_37], %49 {strides = array<i32>} : memref<64x8xf32, #tpu.memory_space<vmem>>, vector<64x8xf32>,
    } else {
    }
    %c0 = arith.constant 0 : index
    %c0_1 = arith.constant 0 : index
    %c0_2 = arith.constant 0 : index
    %3 = vector.load %arg3[%c0, %c0_1, %c0_2] : memref<1x64x8xbf16, #tpu.memory_space<vmem>>, vector<1x64x8xbf16>
    %4 = vector.shape_cast %3 : vector<1x64x8xbf16> to vector<64x8xbf16>
    %5 = arith.extf %4 : vector<64x8xbf16> to vector<64x8xf32>
    %cst = arith.constant 0.000000e+00 : f32
    %6 = vector.broadcast %cst : f32 to vector<64x8xf32>
    %7 = arith.maximumf %5, %6 : vector<64x8xf32>
    %cst_3 = arith.constant 0.353553385 : f32
    %8 = vector.broadcast %cst_3 : f32 to vector<64x8xf32>
    %9 = arith.mulf %7, %8 : vector<64x8xf32>
    %c0_4 = arith.constant 0 : index
    %c0_5 = arith.constant 0 : index
    %c0_6 = arith.constant 0 : index
    %10 = vector.load %arg4[%c0_4, %c0_5, %c0_6] : memref<1x64x8xbf16, #tpu.memory_space<vmem>>, vector<1x64x8xbf16>
    %11 = vector.shape_cast %10 : vector<1x64x8xbf16> to vector<64x8xbf16>
    %12 = arith.extf %11 : vector<64x8xbf16> to vector<64x8xf32>
    %cst_7 = arith.constant 0.000000e+00 : f32
    %13 = vector.broadcast %cst_7 : f32 to vector<64x8xf32>
    %14 = arith.maximumf %12, %13 : vector<64x8xf32>
    %15 = tpu.transpose %14, [1, 0] : vector<64x8xf32> -> vector<8x64xf32>
    %cst_8 = arith.constant dense<0.000000e+00> : vector<64x64xf32>
    %16 = tpu.matmul %9, %15, %cst_8 {dimension_numbers = #tpu.dot_dimension_numbers<[1], [0], [0], [1], [0, 0, 1, 1], [], []>} : vector<64x8xf32>, vector<8x64xf32>, vector<64x64xf32> -> vector<64x64xf32>
    %c0_9 = arith.constant 0 : index
    %c0_10 = arith.constant 0 : index
    %17 = vector.load %arg7[%c0_9, %c0_10] : memref<64x1xf32, #tpu.memory_space<vmem>>, vector<64x1xf32>
    %cst_11 = arith.constant dense<0xFF800000> : vector<64xf32>
    %18 = vector.multi_reduction <maximumf>, %16, %cst_11 [1] : vector<64x64xf32> to vector<64xf32>
    %19 = vector.shape_cast %18 : vector<64xf32> to vector<64x1xf32>
    %20 = arith.maximumf %17, %19 : vector<64x1xf32>
    %21 = arith.subf %17, %20 : vector<64x1xf32>
    %22 = math.exp %21 : vector<64x1xf32>
    %23 = vector.broadcast %20 : vector<64x1xf32> to vector<64x64xf32>
    %24 = arith.subf %16, %23 : vector<64x64xf32>
    %25 = math.exp %24 : vector<64x64xf32>
    %c0_12 = arith.constant 0 : index
    %c0_13 = arith.constant 0 : index
    %26 = vector.load %arg8[%c0_12, %c0_13] : memref<64x1xf32, #tpu.memory_space<vmem>>, vector<64x1xf32>
    %27 = arith.mulf %22, %26 : vector<64x1xf32>
    %cst_14 = arith.constant dense<0.000000e+00> : vector<64xf32>
    %28 = vector.multi_reduction <add>, %25, %cst_14 [1] : vector<64x64xf32> to vector<64xf32>
    %29 = vector.shape_cast %28 : vector<64xf32> to vector<64x1xf32>
    %30 = arith.addf %27, %29 : vector<64x1xf32>
    %c0_15 = arith.constant 0 : index
    %c0_16 = arith.constant 0 : index
    %31 = vector.load %arg8[%c0_15, %c0_16] : memref<64x1xf32, #tpu.memory_space<vmem>>, vector<64x1xf32>
    tpu.vector_store %arg8[%c0_15, %c0_16], %30 {strides = array<i32>} : memref<64x1xf32, #tpu.memory_space<vmem>>, vector<64x1xf32>,
    %c0_17 = arith.constant 0 : index
    %c0_18 = arith.constant 0 : index
    %32 = vector.load %arg9[%c0_17, %c0_18] : memref<64x8xf32, #tpu.memory_space<vmem>>, vector<64x8xf32>
    %33 = vector.broadcast %22 : vector<64x1xf32> to vector<64x8xf32>
    %34 = arith.mulf %33, %32 : vector<64x8xf32>
    %35 = arith.truncf %25 : vector<64x64xf32> to vector<64x64xbf16>
    %c0_19 = arith.constant 0 : index
    %c0_20 = arith.constant 0 : index
    %c0_21 = arith.constant 0 : index
    %36 = vector.load %arg5[%c0_19, %c0_20, %c0_21] : memref<1x64x8xbf16, #tpu.memory_space<vmem>>, vector<1x64x8xbf16>
    %37 = vector.shape_cast %36 : vector<1x64x8xbf16> to vector<64x8xbf16>
    %cst_22 = arith.constant dense<0.000000e+00> : vector<64x8xf32>
    %38 = tpu.matmul %35, %37, %cst_22 {dimension_numbers = #tpu.dot_dimension_numbers<[1], [0], [0], [1], [0, 0, 1, 1], [], []>} : vector<64x64xbf16>, vector<64x8xbf16>, vector<64x8xf32> -> vector<64x8xf32>
    %39 = arith.addf %34, %38 : vector<64x8xf32>
    %c0_23 = arith.constant 0 : index
    %c0_24 = arith.constant 0 : index
    %40 = vector.load %arg9[%c0_23, %c0_24] : memref<64x8xf32, #tpu.memory_space<vmem>>, vector<64x8xf32>
    tpu.vector_store %arg9[%c0_23, %c0_24], %39 {strides = array<i32>} : memref<64x8xf32, #tpu.memory_space<vmem>>, vector<64x8xf32>,
    %c0_25 = arith.constant 0 : index
    %c0_26 = arith.constant 0 : index
    %41 = vector.load %arg7[%c0_25, %c0_26] : memref<64x1xf32, #tpu.memory_space<vmem>>, vector<64x1xf32>
    tpu.vector_store %arg7[%c0_25, %c0_26], %20 {strides = array<i32>} : memref<64x1xf32, #tpu.memory_space<vmem>>, vector<64x1xf32>,
    %c0_i32_27 = arith.constant 0 : i32
    %42 = arith.cmpi eq, %arg2, %c0_i32_27 : i32
    %43 = arith.extui %42 : i1 to i32
    %c0_i32_28 = arith.constant 0 : i32
    %44 = arith.cmpi ne, %43, %c0_i32_28 : i32
    scf.if %44 {
      %c0_29 = arith.constant 0 : index
      %c0_30 = arith.constant 0 : index
      %45 = vector.load %arg9[%c0_29, %c0_30] : memref<64x8xf32, #tpu.memory_space<vmem>>, vector<64x8xf32>
      %c0_31 = arith.constant 0 : index
      %c0_32 = arith.constant 0 : index
      %46 = vector.load %arg8[%c0_31, %c0_32] : memref<64x1xf32, #tpu.memory_space<vmem>>, vector<64x1xf32>
      %47 = tpu.reciprocal %46 {approx = true} : vector<64x1xf32> -> vector<64x1xf32>
      %48 = vector.broadcast %47 : vector<64x1xf32> to vector<64x8xf32>
      %49 = arith.mulf %45, %48 : vector<64x8xf32>
      %50 = arith.truncf %49 : vector<64x8xf32> to vector<64x8xbf16>
      %c0_33 = arith.constant 0 : index
      %c0_34 = arith.constant 0 : index
      %c0_35 = arith.constant 0 : index
      %51 = vector.load %arg6[%c0_33, %c0_34, %c0_35] : memref<1x64x8xbf16, #tpu.memory_space<vmem>>, vector<1x64x8xbf16>
      %52 = vector.shape_cast %51 : vector<1x64x8xbf16> to vector<64x8xbf16>
      %53 = vector.shape_cast %50 : vector<64x8xbf16> to vector<1x64x8xbf16>
      tpu.vector_store %arg6[%c0_33, %c0_34, %c0_35], %53 {strides = array<i32>} : memref<1x64x8xbf16, #tpu.memory_space<vmem>>, vector<1x64x8xbf16>,
    } else {
    }
    return
  }
  func.func @transform_0(%arg0: i32, %arg1: i32, %arg2: i32) -> (i32, i32, i32) {
    %c0_i32 = arith.constant 0 : i32
    %c0_i32_0 = arith.constant 0 : i32
    return %arg0, %arg1, %c0_i32 : i32, i32, i32
  }
  func.func @transform_1(%arg0: i32, %arg1: i32, %arg2: i32) -> (i32, i32, i32) {
    %c0_i32 = arith.constant 0 : i32
    %c0_i32_0 = arith.constant 0 : i32
    return %arg0, %arg2, %c0_i32 : i32, i32, i32
  }
  func.func @transform_2(%arg0: i32, %arg1: i32, %arg2: i32) -> (i32, i32, i32) {
    %c0_i32 = arith.constant 0 : i32
    %c0_i32_0 = arith.constant 0 : i32
    return %arg0, %arg2, %c0_i32 : i32, i32, i32
  }
  func.func @transform_3(%arg0: i32, %arg1: i32, %arg2: i32) -> (i32, i32, i32) {
    %c0_i32 = arith.constant 0 : i32
    %c0_i32_0 = arith.constant 0 : i32
    return %arg0, %arg1, %c0_i32 : i32, i32, i32
  }
}

module attributes {stable_mosaic.version = 11 : i64} {
  func.func @_mm2_kernel(%arg0: i32, %arg1: i32, %arg2: memref<128x8xbf16, #tpu.memory_space<vmem>>, %arg3: memref<8x128xbf16, #tpu.memory_space<vmem>>, %arg4: memref<128x128xbf16, #tpu.memory_space<vmem>>, %arg5: memref<128x128xbf16, #tpu.memory_space<vmem>>, %arg6: memref<1x128xf32, #tpu.memory_space<vmem>>, %arg7: memref<128x128xbf16, #tpu.memory_space<vmem>>) attributes {dimension_semantics = [#tpu.dimension_semantics<parallel>, #tpu.dimension_semantics<parallel>], iteration_bounds = array<i64: 1, 1>, scalar_prefetch = 0 : i64, scratch_operands = 0 : i64, tpu.core_type = #tpu.core_type<tc>, window_params = [{transform_indices = @transform_0, window_bounds = array<i64: 128, 8>}, {transform_indices = @transform_1, window_bounds = array<i64: 8, 128>}, {transform_indices = @transform_2, window_bounds = array<i64: 128, 128>}, {transform_indices = @transform_3, window_bounds = array<i64: 128, 128>}, {transform_indices = @transform_4, window_bounds = array<i64: 1, 128>}, {transform_indices = @transform_5, window_bounds = array<i64: 128, 128>}]} {
    %c0 = arith.constant 0 : index
    %c0_0 = arith.constant 0 : index
    %0 = vector.load %arg2[%c0, %c0_0] : memref<128x8xbf16, #tpu.memory_space<vmem>>, vector<128x8xbf16>
    %c0_1 = arith.constant 0 : index
    %c0_2 = arith.constant 0 : index
    %1 = vector.load %arg3[%c0_1, %c0_2] : memref<8x128xbf16, #tpu.memory_space<vmem>>, vector<8x128xbf16>
    %cst = arith.constant dense<0.000000e+00> : vector<128x128xf32>
    %2 = tpu.matmul %0, %1, %cst {dimension_numbers = #tpu.dot_dimension_numbers<[1], [0], [0], [1], [0, 0, 1, 1], [], []>} : vector<128x8xbf16>, vector<8x128xbf16>, vector<128x128xf32> -> vector<128x128xf32>
    %c0_3 = arith.constant 0 : index
    %c0_4 = arith.constant 0 : index
    %3 = vector.load %arg4[%c0_3, %c0_4] : memref<128x128xbf16, #tpu.memory_space<vmem>>, vector<128x128xbf16>
    %c0_5 = arith.constant 0 : index
    %c0_6 = arith.constant 0 : index
    %4 = vector.load %arg5[%c0_5, %c0_6] : memref<128x128xbf16, #tpu.memory_space<vmem>>, vector<128x128xbf16>
    %cst_7 = arith.constant dense<0.000000e+00> : vector<128x128xf32>
    %5 = tpu.matmul %3, %4, %cst_7 {dimension_numbers = #tpu.dot_dimension_numbers<[1], [0], [0], [1], [0, 0, 1, 1], [], []>} : vector<128x128xbf16>, vector<128x128xbf16>, vector<128x128xf32> -> vector<128x128xf32>
    %6 = arith.addf %2, %5 : vector<128x128xf32>
    %c0_8 = arith.constant 0 : index
    %c0_9 = arith.constant 0 : index
    %7 = vector.load %arg6[%c0_8, %c0_9] : memref<1x128xf32, #tpu.memory_space<vmem>>, vector<1x128xf32>
    %8 = vector.broadcast %7 : vector<1x128xf32> to vector<128x128xf32>
    %9 = arith.addf %6, %8 : vector<128x128xf32>
    %cst_10 = arith.constant 0.000000e+00 : f32
    %10 = vector.broadcast %cst_10 : f32 to vector<128x128xf32>
    %11 = arith.maximumf %9, %10 : vector<128x128xf32>
    %12 = arith.truncf %11 : vector<128x128xf32> to vector<128x128xbf16>
    %c0_11 = arith.constant 0 : index
    %c0_12 = arith.constant 0 : index
    %13 = vector.load %arg7[%c0_11, %c0_12] : memref<128x128xbf16, #tpu.memory_space<vmem>>, vector<128x128xbf16>
    tpu.vector_store %arg7[%c0_11, %c0_12], %12 {strides = array<i32>} : memref<128x128xbf16, #tpu.memory_space<vmem>>, vector<128x128xbf16>,
    return
  }
  func.func @transform_0(%arg0: i32, %arg1: i32) -> (i32, i32) {
    %c0_i32 = arith.constant 0 : i32
    %c0_i32_0 = arith.constant 0 : i32
    return %arg0, %c0_i32 : i32, i32
  }
  func.func @transform_1(%arg0: i32, %arg1: i32) -> (i32, i32) {
    %c0_i32 = arith.constant 0 : i32
    %c0_i32_0 = arith.constant 0 : i32
    return %c0_i32, %arg1 : i32, i32
  }
  func.func @transform_2(%arg0: i32, %arg1: i32) -> (i32, i32) {
    %c0_i32 = arith.constant 0 : i32
    %c0_i32_0 = arith.constant 0 : i32
    return %arg0, %c0_i32 : i32, i32
  }
  func.func @transform_3(%arg0: i32, %arg1: i32) -> (i32, i32) {
    %c0_i32 = arith.constant 0 : i32
    %c0_i32_0 = arith.constant 0 : i32
    return %c0_i32, %arg1 : i32, i32
  }
  func.func @transform_4(%arg0: i32, %arg1: i32) -> (i32, i32) {
    %c0_i32 = arith.constant 0 : i32
    %c0_i32_0 = arith.constant 0 : i32
    return %c0_i32, %arg1 : i32, i32
  }
  func.func @transform_5(%arg0: i32, %arg1: i32) -> (i32, i32) {
    %c0_i32 = arith.constant 0 : i32
    return %arg0, %arg1 : i32, i32
  }
}

module attributes {stable_mosaic.version = 11 : i64} {
  func.func @_mm_kernel(%arg0: i32, %arg1: i32, %arg2: i32, %arg3: memref<128x128xbf16, #tpu.memory_space<vmem>>, %arg4: memref<128x128xbf16, #tpu.memory_space<vmem>>, %arg5: memref<1x128xf32, #tpu.memory_space<vmem>>, %arg6: memref<128x128xf32, #tpu.memory_space<vmem>>, %arg7: memref<128x128xf32, #tpu.memory_space<vmem>>) attributes {dimension_semantics = [#tpu.dimension_semantics<parallel>, #tpu.dimension_semantics<parallel>, #tpu.dimension_semantics<arbitrary>], iteration_bounds = array<i64: 1, 1, 1>, scalar_prefetch = 0 : i64, scratch_operands = 1 : i64, tpu.core_type = #tpu.core_type<tc>, window_params = [{transform_indices = @transform_0, window_bounds = array<i64: 128, 128>}, {transform_indices = @transform_1, window_bounds = array<i64: 128, 128>}, {transform_indices = @transform_2, window_bounds = array<i64: 1, 128>}, {transform_indices = @transform_3, window_bounds = array<i64: 128, 128>}]} {
    %c0_i32 = arith.constant 0 : i32
    %0 = arith.cmpi eq, %arg2, %c0_i32 : i32
    %1 = arith.extui %0 : i1 to i32
    %c0_i32_0 = arith.constant 0 : i32
    %2 = arith.cmpi ne, %1, %c0_i32_0 : i32
    scf.if %2 {
      %cst_10 = arith.constant 0.000000e+00 : f32
      %12 = vector.broadcast %cst_10 : f32 to vector<128x128xf32>
      %c0_11 = arith.constant 0 : index
      %c0_12 = arith.constant 0 : index
      %13 = vector.load %arg7[%c0_11, %c0_12] : memref<128x128xf32, #tpu.memory_space<vmem>>, vector<128x128xf32>
      tpu.vector_store %arg7[%c0_11, %c0_12], %12 {strides = array<i32>} : memref<128x128xf32, #tpu.memory_space<vmem>>, vector<128x128xf32>,
    } else {
    }
    %c0 = arith.constant 0 : index
    %c0_1 = arith.constant 0 : index
    %3 = vector.load %arg7[%c0, %c0_1] : memref<128x128xf32, #tpu.memory_space<vmem>>, vector<128x128xf32>
    %c0_2 = arith.constant 0 : index
    %c0_3 = arith.constant 0 : index
    %4 = vector.load %arg3[%c0_2, %c0_3] : memref<128x128xbf16, #tpu.memory_space<vmem>>, vector<128x128xbf16>
    %c0_4 = arith.constant 0 : index
    %c0_5 = arith.constant 0 : index
    %5 = vector.load %arg4[%c0_4, %c0_5] : memref<128x128xbf16, #tpu.memory_space<vmem>>, vector<128x128xbf16>
    %cst = arith.constant dense<0.000000e+00> : vector<128x128xf32>
    %6 = tpu.matmul %4, %5, %cst {dimension_numbers = #tpu.dot_dimension_numbers<[1], [0], [0], [1], [0, 0, 1, 1], [], []>} : vector<128x128xbf16>, vector<128x128xbf16>, vector<128x128xf32> -> vector<128x128xf32>
    %7 = arith.addf %3, %6 : vector<128x128xf32>
    %c0_6 = arith.constant 0 : index
    %c0_7 = arith.constant 0 : index
    %8 = vector.load %arg7[%c0_6, %c0_7] : memref<128x128xf32, #tpu.memory_space<vmem>>, vector<128x128xf32>
    tpu.vector_store %arg7[%c0_6, %c0_7], %7 {strides = array<i32>} : memref<128x128xf32, #tpu.memory_space<vmem>>, vector<128x128xf32>,
    %c0_i32_8 = arith.constant 0 : i32
    %9 = arith.cmpi eq, %arg2, %c0_i32_8 : i32
    %10 = arith.extui %9 : i1 to i32
    %c0_i32_9 = arith.constant 0 : i32
    %11 = arith.cmpi ne, %10, %c0_i32_9 : i32
    scf.if %11 {
      %c0_10 = arith.constant 0 : index
      %c0_11 = arith.constant 0 : index
      %12 = vector.load %arg7[%c0_10, %c0_11] : memref<128x128xf32, #tpu.memory_space<vmem>>, vector<128x128xf32>
      %c0_12 = arith.constant 0 : index
      %c0_13 = arith.constant 0 : index
      %13 = vector.load %arg5[%c0_12, %c0_13] : memref<1x128xf32, #tpu.memory_space<vmem>>, vector<1x128xf32>
      %14 = vector.broadcast %13 : vector<1x128xf32> to vector<128x128xf32>
      %15 = arith.addf %12, %14 : vector<128x128xf32>
      %c0_14 = arith.constant 0 : index
      %c0_15 = arith.constant 0 : index
      %16 = vector.load %arg6[%c0_14, %c0_15] : memref<128x128xf32, #tpu.memory_space<vmem>>, vector<128x128xf32>
      tpu.vector_store %arg6[%c0_14, %c0_15], %15 {strides = array<i32>} : memref<128x128xf32, #tpu.memory_space<vmem>>, vector<128x128xf32>,
    } else {
    }
    return
  }
  func.func @transform_0(%arg0: i32, %arg1: i32, %arg2: i32) -> (i32, i32) {
    %c0_i32 = arith.constant 0 : i32
    return %arg0, %arg2 : i32, i32
  }
  func.func @transform_1(%arg0: i32, %arg1: i32, %arg2: i32) -> (i32, i32) {
    %c0_i32 = arith.constant 0 : i32
    return %arg2, %arg1 : i32, i32
  }
  func.func @transform_2(%arg0: i32, %arg1: i32, %arg2: i32) -> (i32, i32) {
    %c0_i32 = arith.constant 0 : i32
    %c0_i32_0 = arith.constant 0 : i32
    return %c0_i32, %arg1 : i32, i32
  }
  func.func @transform_3(%arg0: i32, %arg1: i32, %arg2: i32) -> (i32, i32) {
    %c0_i32 = arith.constant 0 : i32
    return %arg0, %arg1 : i32, i32
  }
}

module attributes {stable_mosaic.version = 11 : i64} {
  func.func @_upsample_kernel(%arg0: i32, %arg1: memref<16x8xf32, #tpu.memory_space<vmem>>, %arg2: memref<8x16xf32, #tpu.memory_space<vmem>>, %arg3: memref<1x8x8xf32, #tpu.memory_space<vmem>>, %arg4: memref<1x16x16xf32, #tpu.memory_space<vmem>>) attributes {dimension_semantics = [#tpu.dimension_semantics<parallel>], iteration_bounds = array<i64: 10>, scalar_prefetch = 0 : i64, scratch_operands = 0 : i64, tpu.core_type = #tpu.core_type<tc>, window_params = [{pipeline_mode = #tpu.pipeline_mode<synchronous>, transform_indices = @transform_0, window_bounds = array<i64: 16, 8>}, {pipeline_mode = #tpu.pipeline_mode<synchronous>, transform_indices = @transform_1, window_bounds = array<i64: 8, 16>}, {transform_indices = @transform_2, window_bounds = array<i64: 1, 8, 8>}, {transform_indices = @transform_3, window_bounds = array<i64: 1, 16, 16>}]} {
    %c0 = arith.constant 0 : index
    %c0_0 = arith.constant 0 : index
    %0 = vector.load %arg1[%c0, %c0_0] : memref<16x8xf32, #tpu.memory_space<vmem>>, vector<16x8xf32>
    %c0_1 = arith.constant 0 : index
    %c0_2 = arith.constant 0 : index
    %c0_3 = arith.constant 0 : index
    %1 = vector.load %arg3[%c0_1, %c0_2, %c0_3] : memref<1x8x8xf32, #tpu.memory_space<vmem>>, vector<1x8x8xf32>
    %2 = vector.shape_cast %1 : vector<1x8x8xf32> to vector<8x8xf32>
    %cst = arith.constant dense<0.000000e+00> : vector<16x8xf32>
    %3 = tpu.matmul %0, %2, %cst {dimension_numbers = #tpu.dot_dimension_numbers<[1], [0], [0], [1], [0, 0, 1, 1], [], []>} : vector<16x8xf32>, vector<8x8xf32>, vector<16x8xf32> -> vector<16x8xf32>
    %c0_4 = arith.constant 0 : index
    %c0_5 = arith.constant 0 : index
    %4 = vector.load %arg2[%c0_4, %c0_5] : memref<8x16xf32, #tpu.memory_space<vmem>>, vector<8x16xf32>
    %cst_6 = arith.constant dense<0.000000e+00> : vector<16x16xf32>
    %5 = tpu.matmul %3, %4, %cst_6 {dimension_numbers = #tpu.dot_dimension_numbers<[1], [0], [0], [1], [0, 0, 1, 1], [], []>} : vector<16x8xf32>, vector<8x16xf32>, vector<16x16xf32> -> vector<16x16xf32>
    %c0_7 = arith.constant 0 : index
    %c0_8 = arith.constant 0 : index
    %c0_9 = arith.constant 0 : index
    %6 = vector.load %arg4[%c0_7, %c0_8, %c0_9] : memref<1x16x16xf32, #tpu.memory_space<vmem>>, vector<1x16x16xf32>
    %7 = vector.shape_cast %6 : vector<1x16x16xf32> to vector<16x16xf32>
    %8 = vector.shape_cast %5 : vector<16x16xf32> to vector<1x16x16xf32>
    tpu.vector_store %arg4[%c0_7, %c0_8, %c0_9], %8 {strides = array<i32>} : memref<1x16x16xf32, #tpu.memory_space<vmem>>, vector<1x16x16xf32>,
    return
  }
  func.func @transform_0(%arg0: i32) -> (i32, i32) {
    %c0_i32 = arith.constant 0 : i32
    %c0_i32_0 = arith.constant 0 : i32
    %c0_i32_1 = arith.constant 0 : i32
    return %c0_i32, %c0_i32_0 : i32, i32
  }
  func.func @transform_1(%arg0: i32) -> (i32, i32) {
    %c0_i32 = arith.constant 0 : i32
    %c0_i32_0 = arith.constant 0 : i32
    %c0_i32_1 = arith.constant 0 : i32
    return %c0_i32, %c0_i32_0 : i32, i32
  }
  func.func @transform_2(%arg0: i32) -> (i32, i32, i32) {
    %c0_i32 = arith.constant 0 : i32
    %c0_i32_0 = arith.constant 0 : i32
    %c0_i32_1 = arith.constant 0 : i32
    return %arg0, %c0_i32, %c0_i32_0 : i32, i32, i32
  }
  func.func @transform_3(%arg0: i32) -> (i32, i32, i32) {
    %c0_i32 = arith.constant 0 : i32
    %c0_i32_0 = arith.constant 0 : i32
    %c0_i32_1 = arith.constant 0 : i32
    return %arg0, %c0_i32, %c0_i32_0 : i32, i32, i32
  }
}

</mosaic_0001>

<llo_original>
// kernel: resnet_base_oc_forward.9
$region0: #{resnet_base_oc_forward.9}
  #allocation0 [shape = 'u32[]', space=smem, size = 0x4, offset = 0x4, fixed_abs, tag = 'smem constant byte address 0x4 - core index']
  #allocation1 [shape = 'u32[144,128]{1,0:T(1,128)}', space=vmem, size = 0x12000, scoped, tag = 'internal scratch']
  #allocation2 [shape = 'f32[128,128]{1,0:T(8,128)}', space=vmem, size = 0x10000, scoped, tag = 'scratch operand']
  %s0 = inlined_call_operand.vmem [shape: bf16[128,128], index: 0, kind: input, shape index: {}]
  %s1 = inlined_call_operand.vmem [shape: bf16[128,128], index: 1, kind: input, shape index: {}]
  %s2 = inlined_call_operand.vmem [shape: f32[1,128], index: 2, kind: input, shape index: {}]
  %s3 = inlined_call_operand.vmem [shape: bf16[128,128], index: 3, kind: output, shape index: {}]
  %s4 = sld [smem:[#allocation0]]
  $region30: #{resnet_base_oc_forward.9} parent=0
    _
  %s6 = ssub.s32 1, %s4
  %s7 = scalar_select 0, %s6, %s4
  // Predicated region
  $region2: #{resnet_base_oc_forward.9} parent=0 // pred_check
    _
  $region3: #{resnet_base_oc_forward.9} parent=0 // pred_check_branch
    %9 = sbr.rel (0) target = $region5
  $region4: #{resnet_base_oc_forward.9} parent=0 // pred_region
    _
  $region5: #{resnet_base_oc_forward.9} parent=0 // pred_fallthru
    _
  // Predicated region
  $region6: #{resnet_base_oc_forward.9} parent=0 // pred_check
    _
  $region7: #{resnet_base_oc_forward.9} parent=0 // pred_check_branch
    %11 = sbr.rel (0) target = $region9
  $region8: #{resnet_base_oc_forward.9} parent=0 // pred_region
    _
  $region9: #{resnet_base_oc_forward.9} parent=0 // pred_fallthru
    _
  // Predicated region
  $region10: #{resnet_base_oc_forward.9} parent=0 // pred_check
    _
  $region11: #{resnet_base_oc_forward.9} parent=0 // pred_check_branch
    %13 = sbr.rel (0) target = $region13
  $region12: #{resnet_base_oc_forward.9} parent=0 // pred_region
    _
  $region13: #{resnet_base_oc_forward.9} parent=0 // pred_fallthru
    _
  %p15 = scmp.eq.s32.totalorder 0, 0
  // Predicated region
  $region14: #{resnet_base_oc_forward.9} parent=0 // pred_check
    %p16 = pneg %p15
  $region15: #{resnet_base_oc_forward.9} parent=0 // pred_check_branch
    %18 = sbr.rel (%p16) target = $region17
  $region16: #{resnet_base_oc_forward.9} parent=0 // pred_region
    %19 = vst [vmem:[#allocation2] sm:$0xff] 0.0
    %20 = vst [vmem:[#allocation2 + $0x8] sm:$0xff] 0.0
    %21 = vst [vmem:[#allocation2 + $0x10] sm:$0xff] 0.0
    %22 = vst [vmem:[#allocation2 + $0x18] sm:$0xff] 0.0
    %23 = vst [vmem:[#allocation2 + $0x20] sm:$0xff] 0.0
    %24 = vst [vmem:[#allocation2 + $0x28] sm:$0xff] 0.0
    %25 = vst [vmem:[#allocation2 + $0x30] sm:$0xff] 0.0
    %26 = vst [vmem:[#allocation2 + $0x38] sm:$0xff] 0.0
    %27 = vst [vmem:[#allocation2 + $0x40] sm:$0xff] 0.0
    %28 = vst [vmem:[#allocation2 + $0x48] sm:$0xff] 0.0
    %29 = vst [vmem:[#allocation2 + $0x50] sm:$0xff] 0.0
    %30 = vst [vmem:[#allocation2 + $0x58] sm:$0xff] 0.0
    %31 = vst [vmem:[#allocation2 + $0x60] sm:$0xff] 0.0
    %32 = vst [vmem:[#allocation2 + $0x68] sm:$0xff] 0.0
    %33 = vst [vmem:[#allocation2 + $0x70] sm:$0xff] 0.0
    %34 = vst [vmem:[#allocation2 + $0x78] sm:$0xff] 0.0
  $region17: #{resnet_base_oc_forward.9} parent=0 // pred_fallthru
    _
  %v35 = vld [vmem:[#allocation2] sm:$0xff]
  %v36 = vld [vmem:[#allocation2 + $0x8] sm:$0xff]
  %v37 = vld [vmem:[#allocation2 + $0x10] sm:$0xff]
  %v38 = vld [vmem:[#allocation2 + $0x18] sm:$0xff]
  %v39 = vld [vmem:[#allocation2 + $0x20] sm:$0xff]
  %v40 = vld [vmem:[#allocation2 + $0x28] sm:$0xff]
  %v41 = vld [vmem:[#allocation2 + $0x30] sm:$0xff]
  %v42 = vld [vmem:[#allocation2 + $0x38] sm:$0xff]
  %v43 = vld [vmem:[#allocation2 + $0x40] sm:$0xff]
  %v44 = vld [vmem:[#allocation2 + $0x48] sm:$0xff]
  %v45 = vld [vmem:[#allocation2 + $0x50] sm:$0xff]
  %v46 = vld [vmem:[#allocation2 + $0x58] sm:$0xff]
  %v47 = vld [vmem:[#allocation2 + $0x60] sm:$0xff]
  %v48 = vld [vmem:[#allocation2 + $0x68] sm:$0xff]
  %v49 = vld [vmem:[#allocation2 + $0x70] sm:$0xff]
  %v50 = vld [vmem:[#allocation2 + $0x78] sm:$0xff]
  %v51 = vld [vmem:[%s0] sm:$0xf]
  %v52 = vld [vmem:[%s0 + $0x4] sm:$0xf]
  %v53 = vld [vmem:[%s0 + $0x8] sm:$0xf]
  %v54 = vld [vmem:[%s0 + $0xc] sm:$0xf]
  %v55 = vld [vmem:[%s0 + $0x10] sm:$0xf]
  %v56 = vld [vmem:[%s0 + $0x14] sm:$0xf]
  %v57 = vld [vmem:[%s0 + $0x18] sm:$0xf]
  %v58 = vld [vmem:[%s0 + $0x1c] sm:$0xf]
  %v59 = vld [vmem:[%s0 + $0x20] sm:$0xf]
  %v60 = vld [vmem:[%s0 + $0x24] sm:$0xf]
  %v61 = vld [vmem:[%s0 + $0x28] sm:$0xf]
  %v62 = vld [vmem:[%s0 + $0x2c] sm:$0xf]
  %v63 = vld [vmem:[%s0 + $0x30] sm:$0xf]
  %v64 = vld [vmem:[%s0 + $0x34] sm:$0xf]
  %v65 = vld [vmem:[%s0 + $0x38] sm:$0xf]
  %v66 = vld [vmem:[%s0 + $0x3c] sm:$0xf]
  %v67 = vld [vmem:[%s1] sm:$0xf]
  %v68 = vld [vmem:[%s1 + $0x4] sm:$0xf]
  %v69 = vld [vmem:[%s1 + $0x8] sm:$0xf]
  %v70 = vld [vmem:[%s1 + $0xc] sm:$0xf]
  %v71 = vld [vmem:[%s1 + $0x10] sm:$0xf]
  %v72 = vld [vmem:[%s1 + $0x14] sm:$0xf]
  %v73 = vld [vmem:[%s1 + $0x18] sm:$0xf]
  %v74 = vld [vmem:[%s1 + $0x1c] sm:$0xf]
  %v75 = vld [vmem:[%s1 + $0x20] sm:$0xf]
  %v76 = vld [vmem:[%s1 + $0x24] sm:$0xf]
  %v77 = vld [vmem:[%s1 + $0x28] sm:$0xf]
  %v78 = vld [vmem:[%s1 + $0x2c] sm:$0xf]
  %v79 = vld [vmem:[%s1 + $0x30] sm:$0xf]
  %v80 = vld [vmem:[%s1 + $0x34] sm:$0xf]
  %v81 = vld [vmem:[%s1 + $0x38] sm:$0xf]
  %v82 = vld [vmem:[%s1 + $0x3c] sm:$0xf]
  %v99 = vunpack.c.l.b16 %v51
  %v100 = vunpack.c.l.b16 %v52
  %v101 = vunpack.c.l.b16 %v53
  %v102 = vunpack.c.l.b16 %v54
  %v103 = vunpack.c.l.b16 %v55
  %v104 = vunpack.c.l.b16 %v56
  %v105 = vunpack.c.l.b16 %v57
  %v106 = vunpack.c.l.b16 %v58
  %v107 = vunpack.c.l.b16 %v59
  %v108 = vunpack.c.l.b16 %v60
  %v109 = vunpack.c.l.b16 %v61
  %v110 = vunpack.c.l.b16 %v62
  %v111 = vunpack.c.l.b16 %v63
  %v112 = vunpack.c.l.b16 %v64
  %v113 = vunpack.c.l.b16 %v65
  %v114 = vunpack.c.l.b16 %v66
  %v115 = vpack.c.b16 %v100, %v99
  %v116 = vpack.c.b16 %v102, %v101
  %v117 = vpack.c.b16 %v104, %v103
  %v118 = vpack.c.b16 %v106, %v105
  %v119 = vpack.c.b16 %v108, %v107
  %v120 = vpack.c.b16 %v110, %v109
  %v121 = vpack.c.b16 %v112, %v111
  %v122 = vpack.c.b16 %v114, %v113
  %v147 = vunpack.c.l.b16 %v67
  %v148 = vunpack.c.l.b16 %v68
  %v149 = vunpack.c.l.b16 %v69
  %v150 = vunpack.c.l.b16 %v70
  %v151 = vunpack.c.l.b16 %v71
  %v152 = vunpack.c.l.b16 %v72
  %v153 = vunpack.c.l.b16 %v73
  %v154 = vunpack.c.l.b16 %v74
  %v155 = vunpack.c.l.b16 %v75
  %v156 = vunpack.c.l.b16 %v76
  %v157 = vunpack.c.l.b16 %v77
  %v158 = vunpack.c.l.b16 %v78
  %v159 = vunpack.c.l.b16 %v79
  %v160 = vunpack.c.l.b16 %v80
  %v161 = vunpack.c.l.b16 %v81
  %v162 = vunpack.c.l.b16 %v82
  %v163 = vpack.c.b16 %v148, %v147
  %v164 = vpack.c.b16 %v150, %v149
  %v165 = vpack.c.b16 %v152, %v151
  %v166 = vpack.c.b16 %v154, %v153
  %v167 = vpack.c.b16 %v156, %v155
  %v168 = vpack.c.b16 %v158, %v157
  %v169 = vpack.c.b16 %v160, %v159
  %v170 = vpack.c.b16 %v162, %v161
  %179 = vmatprep.subr.bf16.mxu0 0
  %180 = vmatpush1.bf16.msra.mxu0 %v163
  %181 = vmatprep.subr.bf16.mxu0 0
  %182 = vmatpush1.bf16.msra.mxu0 %v164
  %183 = vmatprep.subr.bf16.mxu0 0
  %184 = vmatpush1.bf16.msra.mxu0 %v165
  %185 = vmatprep.subr.bf16.mxu0 0
  %186 = vmatpush1.bf16.msra.mxu0 %v166
  %187 = vmatprep.subr.bf16.mxu0 0
  %188 = vmatpush1.bf16.msra.mxu0 %v167
  %189 = vmatprep.subr.bf16.mxu0 0
  %190 = vmatpush1.bf16.msra.mxu0 %v168
  %191 = vmatprep.subr.bf16.mxu0 0
  %192 = vmatpush1.bf16.msra.mxu0 %v169
  %193 = vmatprep.subr.bf16.mxu0 0
  %194 = vmatpush1.bf16.msra.mxu0 %v170
  %195 = vmatprep.subr.bf16.mxu0 0
  %196 = vmatpush1.bf16.msra.mxu0 0
  %197 = vmatprep.subr.bf16.mxu0 0
  %198 = vmatpush1.bf16.msra.mxu0 0
  %199 = vmatprep.subr.bf16.mxu0 0
  %200 = vmatpush1.bf16.msra.mxu0 0
  %201 = vmatprep.subr.bf16.mxu0 0
  %202 = vmatpush1.bf16.msra.mxu0 0
  %203 = vmatprep.subr.bf16.mxu0 0
  %204 = vmatpush1.bf16.msra.mxu0 0
  %205 = vmatprep.subr.bf16.mxu0 0
  %206 = vmatpush1.bf16.msra.mxu0 0
  %207 = vmatprep.subr.bf16.mxu0 0
  %208 = vmatpush1.bf16.msra.mxu0 0
  %209 = vmatprep.subr.bf16.mxu0 0
  %210 = vmatpush1.bf16.msra.mxu0 0
  %211 = vmatprep.mubr.bf16.mxu0 0
  %212 = vmatmul.mubr.bf16.gmra.mrb[0].mxu0 %v115
  %v213 = vpop.f32.mrb[0].mxu0
  %v214 = vadd.f32 0.0, %v213
  %v215 = vpop.f32.mrb[0].mxu0
  %v216 = vpop.f32.mrb[0].mxu0
  %v217 = vadd.f32 0.0, %v216
  %v218 = vpop.f32.mrb[0].mxu0
  %219 = vmatprep.mubr.bf16.mxu0 0
  %220 = vmatmul.mubr.bf16.gmra.mrb[0].mxu0 %v116
  %v221 = vpop.f32.mrb[0].mxu0
  %v222 = vadd.f32 0.0, %v221
  %v223 = vpop.f32.mrb[0].mxu0
  %v224 = vpop.f32.mrb[0].mxu0
  %v225 = vadd.f32 0.0, %v224
  %v226 = vpop.f32.mrb[0].mxu0
  %227 = vmatprep.mubr.bf16.mxu0 0
  %228 = vmatmul.mubr.bf16.gmra.mrb[0].mxu0 %v117
  %v229 = vpop.f32.mrb[0].mxu0
  %v230 = vadd.f32 0.0, %v229
  %v231 = vpop.f32.mrb[0].mxu0
  %v232 = vpop.f32.mrb[0].mxu0
  %v233 = vadd.f32 0.0, %v232
  %v234 = vpop.f32.mrb[0].mxu0
  %235 = vmatprep.mubr.bf16.mxu0 0
  %236 = vmatmul.mubr.bf16.gmra.mrb[0].mxu0 %v118
  %v237 = vpop.f32.mrb[0].mxu0
  %v238 = vadd.f32 0.0, %v237
  %v239 = vpop.f32.mrb[0].mxu0
  %v240 = vpop.f32.mrb[0].mxu0
  %v241 = vadd.f32 0.0, %v240
  %v242 = vpop.f32.mrb[0].mxu0
  %243 = vmatprep.mubr.bf16.mxu0 0
  %244 = vmatmul.mubr.bf16.gmra.mrb[0].mxu0 %v119
  %v245 = vpop.f32.mrb[0].mxu0
  %v246 = vadd.f32 0.0, %v245
  %v247 = vpop.f32.mrb[0].mxu0
  %v248 = vpop.f32.mrb[0].mxu0
  %v249 = vadd.f32 0.0, %v248
  %v250 = vpop.f32.mrb[0].mxu0
  %251 = vmatprep.mubr.bf16.mxu0 0
  %252 = vmatmul.mubr.bf16.gmra.mrb[0].mxu0 %v120
  %v253 = vpop.f32.mrb[0].mxu0
  %v254 = vadd.f32 0.0, %v253
  %v255 = vpop.f32.mrb[0].mxu0
  %v256 = vpop.f32.mrb[0].mxu0
  %v257 = vadd.f32 0.0, %v256
  %v258 = vpop.f32.mrb[0].mxu0
  %259 = vmatprep.mubr.bf16.mxu0 0
  %260 = vmatmul.mubr.bf16.gmra.mrb[0].mxu0 %v121
  %v261 = vpop.f32.mrb[0].mxu0
  %v262 = vadd.f32 0.0, %v261
  %v263 = vpop.f32.mrb[0].mxu0
  %v264 = vpop.f32.mrb[0].mxu0
  %v265 = vadd.f32 0.0, %v264
  %v266 = vpop.f32.mrb[0].mxu0
  %267 = vmatprep.mubr.bf16.mxu0 0
  %268 = vmatmul.mubr.bf16.gmra.mrb[0].mxu0 %v122
  %v269 = vpop.f32.mrb[0].mxu0
  %v270 = vadd.f32 0.0, %v269
  %v271 = vpop.f32.mrb[0].mxu0
  %v272 = vpop.f32.mrb[0].mxu0
  %v273 = vadd.f32 0.0, %v272
  %v274 = vpop.f32.mrb[0].mxu0
  %275 = vdwg.mxu0
  %v276 = vadd.f32 %v35, %v214
  %v277 = vadd.f32 %v36, %v217
  %v278 = vadd.f32 %v37, %v222
  %v279 = vadd.f32 %v38, %v225
  %v280 = vadd.f32 %v39, %v230
  %v281 = vadd.f32 %v40, %v233
  %v282 = vadd.f32 %v41, %v238
  %v283 = vadd.f32 %v42, %v241
  %v284 = vadd.f32 %v43, %v246
  %v285 = vadd.f32 %v44, %v249
  %v286 = vadd.f32 %v45, %v254
  %v287 = vadd.f32 %v46, %v257
  %v288 = vadd.f32 %v47, %v262
  %v289 = vadd.f32 %v48, %v265
  %v290 = vadd.f32 %v49, %v270
  %v291 = vadd.f32 %v50, %v273
  %292 = vst [vmem:[#allocation2] sm:$0xff] %v276
  %293 = vst [vmem:[#allocation2 + $0x8] sm:$0xff] %v277
  %294 = vst [vmem:[#allocation2 + $0x10] sm:$0xff] %v278
  %295 = vst [vmem:[#allocation2 + $0x18] sm:$0xff] %v279
  %296 = vst [vmem:[#allocation2 + $0x20] sm:$0xff] %v280
  %297 = vst [vmem:[#allocation2 + $0x28] sm:$0xff] %v281
  %298 = vst [vmem:[#allocation2 + $0x30] sm:$0xff] %v282
  %299 = vst [vmem:[#allocation2 + $0x38] sm:$0xff] %v283
  %300 = vst [vmem:[#allocation2 + $0x40] sm:$0xff] %v284
  %301 = vst [vmem:[#allocation2 + $0x48] sm:$0xff] %v285
  %302 = vst [vmem:[#allocation2 + $0x50] sm:$0xff] %v286
  %303 = vst [vmem:[#allocation2 + $0x58] sm:$0xff] %v287
  %304 = vst [vmem:[#allocation2 + $0x60] sm:$0xff] %v288
  %305 = vst [vmem:[#allocation2 + $0x68] sm:$0xff] %v289
  %306 = vst [vmem:[#allocation2 + $0x70] sm:$0xff] %v290
  %307 = vst [vmem:[#allocation2 + $0x78] sm:$0xff] %v291
  // Predicated region
  $region18: #{resnet_base_oc_forward.9} parent=0 // pred_check
    %p308 = pneg %p15
  $region19: #{resnet_base_oc_forward.9} parent=0 // pred_check_branch
    %310 = sbr.rel (%p308) target = $region21
  $region20: #{resnet_base_oc_forward.9} parent=0 // pred_region
    %v311 = vld [vmem:[#allocation2] sm:$0xff]
    %v312 = vld [vmem:[#allocation2 + $0x8] sm:$0xff]
    %v313 = vld [vmem:[#allocation2 + $0x10] sm:$0xff]
    %v314 = vld [vmem:[#allocation2 + $0x18] sm:$0xff]
    %v315 = vld [vmem:[#allocation2 + $0x20] sm:$0xff]
    %v316 = vld [vmem:[#allocation2 + $0x28] sm:$0xff]
    %v317 = vld [vmem:[#allocation2 + $0x30] sm:$0xff]
    %v318 = vld [vmem:[#allocation2 + $0x38] sm:$0xff]
    %v319 = vld [vmem:[#allocation2 + $0x40] sm:$0xff]
    %v320 = vld [vmem:[#allocation2 + $0x48] sm:$0xff]
    %v321 = vld [vmem:[#allocation2 + $0x50] sm:$0xff]
    %v322 = vld [vmem:[#allocation2 + $0x58] sm:$0xff]
    %v323 = vld [vmem:[#allocation2 + $0x60] sm:$0xff]
    %v324 = vld [vmem:[#allocation2 + $0x68] sm:$0xff]
    %v325 = vld [vmem:[#allocation2 + $0x70] sm:$0xff]
    %v326 = vld [vmem:[#allocation2 + $0x78] sm:$0xff]
    %v327 = vld [vmem:[%s2] sm:$0x1]
    %v329 = vlaneseq
    %v330 = vshrl.u32 %v329, 7
    %v331 = vsub.s32 0, %v330
    %v332 = vrot.slane %v327, %v331
    %v334 = vadd.f32 %v311, %v332
    %v335 = vadd.f32 %v312, %v332
    %v336 = vadd.f32 %v313, %v332
    %v337 = vadd.f32 %v314, %v332
    %v338 = vadd.f32 %v315, %v332
    %v339 = vadd.f32 %v316, %v332
    %v340 = vadd.f32 %v317, %v332
    %v341 = vadd.f32 %v318, %v332
    %v342 = vadd.f32 %v319, %v332
    %v343 = vadd.f32 %v320, %v332
    %v344 = vadd.f32 %v321, %v332
    %v345 = vadd.f32 %v322, %v332
    %v346 = vadd.f32 %v323, %v332
    %v347 = vadd.f32 %v324, %v332
    %v348 = vadd.f32 %v325, %v332
    %v349 = vadd.f32 %v326, %v332
    %v350 = vpack.c.bf16 %v335, %v334
    %v351 = vpack.c.bf16 %v337, %v336
    %v352 = vpack.c.bf16 %v339, %v338
    %v353 = vpack.c.bf16 %v341, %v340
    %v354 = vpack.c.bf16 %v343, %v342
    %v355 = vpack.c.bf16 %v345, %v344
    %v356 = vpack.c.bf16 %v347, %v346
    %v357 = vpack.c.bf16 %v349, %v348
    %v366 = vunpack.c.l.b16 %v350
    %v367 = vunpack.c.h.b16 %v350
    %v368 = vunpack.c.l.b16 %v351
    %v369 = vunpack.c.h.b16 %v351
    %v370 = vunpack.c.l.b16 %v352
    %v371 = vunpack.c.h.b16 %v352
    %v372 = vunpack.c.l.b16 %v353
    %v373 = vunpack.c.h.b16 %v353
    %v374 = vunpack.c.l.b16 %v354
    %v375 = vunpack.c.h.b16 %v354
    %v376 = vunpack.c.l.b16 %v355
    %v377 = vunpack.c.h.b16 %v355
    %v378 = vunpack.c.l.b16 %v356
    %v379 = vunpack.c.h.b16 %v356
    %v380 = vunpack.c.l.b16 %v357
    %v381 = vunpack.c.h.b16 %v357
    %v382 = vpack.c.b16 %v366, %v366
    %v383 = vpack.c.b16 %v367, %v367
    %v384 = vpack.c.b16 %v368, %v368
    %v385 = vpack.c.b16 %v369, %v369
    %v386 = vpack.c.b16 %v370, %v370
    %v387 = vpack.c.b16 %v371, %v371
    %v388 = vpack.c.b16 %v372, %v372
    %v389 = vpack.c.b16 %v373, %v373
    %v390 = vpack.c.b16 %v374, %v374
    %v391 = vpack.c.b16 %v375, %v375
    %v392 = vpack.c.b16 %v376, %v376
    %v393 = vpack.c.b16 %v377, %v377
    %v394 = vpack.c.b16 %v378, %v378
    %v395 = vpack.c.b16 %v379, %v379
    %v396 = vpack.c.b16 %v380, %v380
    %v397 = vpack.c.b16 %v381, %v381
    %414 = vst [vmem:[%s3] sm:$0xf] %v382
    %415 = vst [vmem:[%s3 + $0x4] sm:$0xf] %v383
    %416 = vst [vmem:[%s3 + $0x8] sm:$0xf] %v384
    %417 = vst [vmem:[%s3 + $0xc] sm:$0xf] %v385
    %418 = vst [vmem:[%s3 + $0x10] sm:$0xf] %v386
    %419 = vst [vmem:[%s3 + $0x14] sm:$0xf] %v387
    %420 = vst [vmem:[%s3 + $0x18] sm:$0xf] %v388
    %421 = vst [vmem:[%s3 + $0x1c] sm:$0xf] %v389
    %422 = vst [vmem:[%s3 + $0x20] sm:$0xf] %v390
    %423 = vst [vmem:[%s3 + $0x24] sm:$0xf] %v391
    %424 = vst [vmem:[%s3 + $0x28] sm:$0xf] %v392
    %425 = vst [vmem:[%s3 + $0x2c] sm:$0xf] %v393
    %426 = vst [vmem:[%s3 + $0x30] sm:$0xf] %v394
    %427 = vst [vmem:[%s3 + $0x34] sm:$0xf] %v395
    %428 = vst [vmem:[%s3 + $0x38] sm:$0xf] %v396
    %429 = vst [vmem:[%s3 + $0x3c] sm:$0xf] %v397
  $region21: #{resnet_base_oc_forward.9} parent=0 // pred_fallthru
    _
  // Predicated region
  $region22: #{resnet_base_oc_forward.9} parent=0 // pred_check
    _
  $region23: #{resnet_base_oc_forward.9} parent=0 // pred_check_branch
    %431 = sbr.rel (0) target = $region25
  $region24: #{resnet_base_oc_forward.9} parent=0 // pred_region
    _
  $region25: #{resnet_base_oc_forward.9} parent=0 // pred_fallthru
    _
  // Predicated region
  $region26: #{resnet_base_oc_forward.9} parent=0 // pred_check
    _
  $region27: #{resnet_base_oc_forward.9} parent=0 // pred_check_branch
    %433 = sbr.rel (0) target = $region29
  $region28: #{resnet_base_oc_forward.9} parent=0 // pred_region
    _
  $region29: #{resnet_base_oc_forward.9} parent=0 // pred_fallthru
    _

// kernel: resnet_base_oc_forward.7
$region0: #{resnet_base_oc_forward.7}
  #allocation0 [shape = 'u32[]', space=smem, size = 0x4, offset = 0x4, fixed_abs, tag = 'smem constant byte address 0x4 - core index']
  #allocation1 [shape = 'u32[144,128]{1,0:T(1,128)}', space=vmem, size = 0x12000, scoped, tag = 'internal scratch']
  #allocation2 [shape = 'f32[128,128]{1,0:T(8,128)}', space=vmem, size = 0x10000, scoped, tag = 'scratch operand']
  %s0 = inlined_call_operand.vmem [shape: bf16[128,36], index: 0, kind: input, shape index: {}]
  %s1 = inlined_call_operand.vmem [shape: bf16[36,128], index: 1, kind: input, shape index: {}]
  %s2 = inlined_call_operand.vmem [shape: f32[1,128], index: 2, kind: input, shape index: {}]
  %s3 = inlined_call_operand.vmem [shape: bf16[128,128], index: 3, kind: output, shape index: {}]
  %s4 = sld [smem:[#allocation0]]
  $region30: #{resnet_base_oc_forward.7} parent=0
    _
  %s6 = ssub.s32 1, %s4
  %s7 = scalar_select 0, %s6, %s4
  // Predicated region
  $region2: #{resnet_base_oc_forward.7} parent=0 // pred_check
    _
  $region3: #{resnet_base_oc_forward.7} parent=0 // pred_check_branch
    %9 = sbr.rel (0) target = $region5
  $region4: #{resnet_base_oc_forward.7} parent=0 // pred_region
    _
  $region5: #{resnet_base_oc_forward.7} parent=0 // pred_fallthru
    _
  // Predicated region
  $region6: #{resnet_base_oc_forward.7} parent=0 // pred_check
    _
  $region7: #{resnet_base_oc_forward.7} parent=0 // pred_check_branch
    %11 = sbr.rel (0) target = $region9
  $region8: #{resnet_base_oc_forward.7} parent=0 // pred_region
    _
  $region9: #{resnet_base_oc_forward.7} parent=0 // pred_fallthru
    _
  // Predicated region
  $region10: #{resnet_base_oc_forward.7} parent=0 // pred_check
    _
  $region11: #{resnet_base_oc_forward.7} parent=0 // pred_check_branch
    %13 = sbr.rel (0) target = $region13
  $region12: #{resnet_base_oc_forward.7} parent=0 // pred_region
    _
  $region13: #{resnet_base_oc_forward.7} parent=0 // pred_fallthru
    _
  %p15 = scmp.eq.s32.totalorder 0, 0
  // Predicated region
  $region14: #{resnet_base_oc_forward.7} parent=0 // pred_check
    %p16 = pneg %p15
  $region15: #{resnet_base_oc_forward.7} parent=0 // pred_check_branch
    %18 = sbr.rel (%p16) target = $region17
  $region16: #{resnet_base_oc_forward.7} parent=0 // pred_region
    %19 = vst [vmem:[#allocation2] sm:$0xff] 0.0
    %20 = vst [vmem:[#allocation2 + $0x8] sm:$0xff] 0.0
    %21 = vst [vmem:[#allocation2 + $0x10] sm:$0xff] 0.0
    %22 = vst [vmem:[#allocation2 + $0x18] sm:$0xff] 0.0
    %23 = vst [vmem:[#allocation2 + $0x20] sm:$0xff] 0.0
    %24 = vst [vmem:[#allocation2 + $0x28] sm:$0xff] 0.0
    %25 = vst [vmem:[#allocation2 + $0x30] sm:$0xff] 0.0
    %26 = vst [vmem:[#allocation2 + $0x38] sm:$0xff] 0.0
    %27 = vst [vmem:[#allocation2 + $0x40] sm:$0xff] 0.0
    %28 = vst [vmem:[#allocation2 + $0x48] sm:$0xff] 0.0
    %29 = vst [vmem:[#allocation2 + $0x50] sm:$0xff] 0.0
    %30 = vst [vmem:[#allocation2 + $0x58] sm:$0xff] 0.0
    %31 = vst [vmem:[#allocation2 + $0x60] sm:$0xff] 0.0
    %32 = vst [vmem:[#allocation2 + $0x68] sm:$0xff] 0.0
    %33 = vst [vmem:[#allocation2 + $0x70] sm:$0xff] 0.0
    %34 = vst [vmem:[#allocation2 + $0x78] sm:$0xff] 0.0
  $region17: #{resnet_base_oc_forward.7} parent=0 // pred_fallthru
    _
  %v35 = vld [vmem:[#allocation2] sm:$0xff]
  %v36 = vld [vmem:[#allocation2 + $0x8] sm:$0xff]
  %v37 = vld [vmem:[#allocation2 + $0x10] sm:$0xff]
  %v38 = vld [vmem:[#allocation2 + $0x18] sm:$0xff]
  %v39 = vld [vmem:[#allocation2 + $0x20] sm:$0xff]
  %v40 = vld [vmem:[#allocation2 + $0x28] sm:$0xff]
  %v41 = vld [vmem:[#allocation2 + $0x30] sm:$0xff]
  %v42 = vld [vmem:[#allocation2 + $0x38] sm:$0xff]
  %v43 = vld [vmem:[#allocation2 + $0x40] sm:$0xff]
  %v44 = vld [vmem:[#allocation2 + $0x48] sm:$0xff]
  %v45 = vld [vmem:[#allocation2 + $0x50] sm:$0xff]
  %v46 = vld [vmem:[#allocation2 + $0x58] sm:$0xff]
  %v47 = vld [vmem:[#allocation2 + $0x60] sm:$0xff]
  %v48 = vld [vmem:[#allocation2 + $0x68] sm:$0xff]
  %v49 = vld [vmem:[#allocation2 + $0x70] sm:$0xff]
  %v50 = vld [vmem:[#allocation2 + $0x78] sm:$0xff]
  %v51 = vld [vmem:[%s0] sm:$0xf]
  %v52 = vld [vmem:[%s0 + $0x4] sm:$0xf]
  %v53 = vld [vmem:[%s0 + $0x8] sm:$0xf]
  %v54 = vld [vmem:[%s0 + $0xc] sm:$0xf]
  %v55 = vld [vmem:[%s0 + $0x10] sm:$0xf]
  %v56 = vld [vmem:[%s0 + $0x14] sm:$0xf]
  %v57 = vld [vmem:[%s0 + $0x18] sm:$0xf]
  %v58 = vld [vmem:[%s0 + $0x1c] sm:$0xf]
  %v59 = vld [vmem:[%s0 + $0x20] sm:$0xf]
  %v60 = vld [vmem:[%s0 + $0x24] sm:$0xf]
  %v61 = vld [vmem:[%s0 + $0x28] sm:$0xf]
  %v62 = vld [vmem:[%s0 + $0x2c] sm:$0xf]
  %v63 = vld [vmem:[%s0 + $0x30] sm:$0xf]
  %v64 = vld [vmem:[%s0 + $0x34] sm:$0xf]
  %v65 = vld [vmem:[%s0 + $0x38] sm:$0xf]
  %v66 = vld [vmem:[%s0 + $0x3c] sm:$0xf]
  %v67 = vld [vmem:[%s1] sm:$0xf]
  %v68 = vld [vmem:[%s1 + $0x4] sm:$0xf]
  %v69 = vld [vmem:[%s1 + $0x8] sm:$0xf]
  %v70 = vld [vmem:[%s1 + $0xc] sm:$0xf]
  %v71 = vld [vmem:[%s1 + $0x10] sm:$0x3]
  %v88 = vunpack.c.l.b16 %v51
  %v89 = vunpack.c.l.b16 %v52
  %v90 = vunpack.c.l.b16 %v53
  %v91 = vunpack.c.l.b16 %v54
  %v92 = vunpack.c.l.b16 %v55
  %v93 = vunpack.c.l.b16 %v56
  %v94 = vunpack.c.l.b16 %v57
  %v95 = vunpack.c.l.b16 %v58
  %v96 = vunpack.c.l.b16 %v59
  %v97 = vunpack.c.l.b16 %v60
  %v98 = vunpack.c.l.b16 %v61
  %v99 = vunpack.c.l.b16 %v62
  %v100 = vunpack.c.l.b16 %v63
  %v101 = vunpack.c.l.b16 %v64
  %v102 = vunpack.c.l.b16 %v65
  %v103 = vunpack.c.l.b16 %v66
  %v104 = vpack.c.b16 %v89, %v88
  %v105 = vpack.c.b16 %v91, %v90
  %v106 = vpack.c.b16 %v93, %v92
  %v107 = vpack.c.b16 %v95, %v94
  %v108 = vpack.c.b16 %v97, %v96
  %v109 = vpack.c.b16 %v99, %v98
  %v110 = vpack.c.b16 %v101, %v100
  %v111 = vpack.c.b16 %v103, %v102
  %v117 = vunpack.c.l.b16 %v67
  %v118 = vunpack.c.l.b16 %v68
  %v119 = vunpack.c.l.b16 %v69
  %v120 = vunpack.c.l.b16 %v70
  %v121 = vunpack.c.l.b16 %v71
  %v122 = vpack.c.b16 %v118, %v117
  %v123 = vpack.c.b16 %v120, %v119
  %v124 = vpack.c.b16 %v121, %v121
  %vm127 = vcmask 293888
  %v129 = vsel %vm127, %v104, 0
  %v132 = vsel %vm127, %v105, 0
  %v135 = vsel %vm127, %v106, 0
  %v138 = vsel %vm127, %v107, 0
  %v141 = vsel %vm127, %v108, 0
  %v144 = vsel %vm127, %v109, 0
  %v147 = vsel %vm127, %v110, 0
  %v150 = vsel %vm127, %v111, 0
  %vm152 = vcmask 1041408
  %v154 = vsel %vm152, %v124, 0
  %156 = vmatprep.subr.bf16.mxu0 0
  %157 = vmatpush1.bf16.msra.mxu0 %v122
  %158 = vmatprep.subr.bf16.mxu0 0
  %159 = vmatpush1.bf16.msra.mxu0 %v123
  %160 = vmatprep.subr.bf16.mxu0 0
  %161 = vmatpush1.bf16.msra.mxu0 %v154
  %162 = vmatprep.subr.bf16.mxu0 0
  %163 = vmatpush1.bf16.msra.mxu0 0
  %164 = vmatprep.subr.bf16.mxu0 0
  %165 = vmatpush1.bf16.msra.mxu0 0
  %166 = vmatprep.subr.bf16.mxu0 0
  %167 = vmatpush1.bf16.msra.mxu0 0
  %168 = vmatprep.subr.bf16.mxu0 0
  %169 = vmatpush1.bf16.msra.mxu0 0
  %170 = vmatprep.subr.bf16.mxu0 0
  %171 = vmatpush1.bf16.msra.mxu0 0
  %172 = vmatprep.subr.bf16.mxu0 0
  %173 = vmatpush1.bf16.msra.mxu0 0
  %174 = vmatprep.subr.bf16.mxu0 0
  %175 = vmatpush1.bf16.msra.mxu0 0
  %176 = vmatprep.subr.bf16.mxu0 0
  %177 = vmatpush1.bf16.msra.mxu0 0
  %178 = vmatprep.subr.bf16.mxu0 0
  %179 = vmatpush1.bf16.msra.mxu0 0
  %180 = vmatprep.subr.bf16.mxu0 0
  %181 = vmatpush1.bf16.msra.mxu0 0
  %182 = vmatprep.subr.bf16.mxu0 0
  %183 = vmatpush1.bf16.msra.mxu0 0
  %184 = vmatprep.subr.bf16.mxu0 0
  %185 = vmatpush1.bf16.msra.mxu0 0
  %186 = vmatprep.subr.bf16.mxu0 0
  %187 = vmatpush1.bf16.msra.mxu0 0
  %188 = vmatprep.mubr.bf16.mxu0 0
  %189 = vmatmul.mubr.bf16.gmra.mrb[0].mxu0 %v129
  %v190 = vpop.f32.mrb[0].mxu0
  %v191 = vadd.f32 0.0, %v190
  %v192 = vpop.f32.mrb[0].mxu0
  %v193 = vpop.f32.mrb[0].mxu0
  %v194 = vadd.f32 0.0, %v193
  %v195 = vpop.f32.mrb[0].mxu0
  %196 = vmatprep.mubr.bf16.mxu0 0
  %197 = vmatmul.mubr.bf16.gmra.mrb[0].mxu0 %v132
  %v198 = vpop.f32.mrb[0].mxu0
  %v199 = vadd.f32 0.0, %v198
  %v200 = vpop.f32.mrb[0].mxu0
  %v201 = vpop.f32.mrb[0].mxu0
  %v202 = vadd.f32 0.0, %v201
  %v203 = vpop.f32.mrb[0].mxu0
  %204 = vmatprep.mubr.bf16.mxu0 0
  %205 = vmatmul.mubr.bf16.gmra.mrb[0].mxu0 %v135
  %v206 = vpop.f32.mrb[0].mxu0
  %v207 = vadd.f32 0.0, %v206
  %v208 = vpop.f32.mrb[0].mxu0
  %v209 = vpop.f32.mrb[0].mxu0
  %v210 = vadd.f32 0.0, %v209
  %v211 = vpop.f32.mrb[0].mxu0
  %212 = vmatprep.mubr.bf16.mxu0 0
  %213 = vmatmul.mubr.bf16.gmra.mrb[0].mxu0 %v138
  %v214 = vpop.f32.mrb[0].mxu0
  %v215 = vadd.f32 0.0, %v214
  %v216 = vpop.f32.mrb[0].mxu0
  %v217 = vpop.f32.mrb[0].mxu0
  %v218 = vadd.f32 0.0, %v217
  %v219 = vpop.f32.mrb[0].mxu0
  %220 = vmatprep.mubr.bf16.mxu0 0
  %221 = vmatmul.mubr.bf16.gmra.mrb[0].mxu0 %v141
  %v222 = vpop.f32.mrb[0].mxu0
  %v223 = vadd.f32 0.0, %v222
  %v224 = vpop.f32.mrb[0].mxu0
  %v225 = vpop.f32.mrb[0].mxu0
  %v226 = vadd.f32 0.0, %v225
  %v227 = vpop.f32.mrb[0].mxu0
  %228 = vmatprep.mubr.bf16.mxu0 0
  %229 = vmatmul.mubr.bf16.gmra.mrb[0].mxu0 %v144
  %v230 = vpop.f32.mrb[0].mxu0
  %v231 = vadd.f32 0.0, %v230
  %v232 = vpop.f32.mrb[0].mxu0
  %v233 = vpop.f32.mrb[0].mxu0
  %v234 = vadd.f32 0.0, %v233
  %v235 = vpop.f32.mrb[0].mxu0
  %236 = vmatprep.mubr.bf16.mxu0 0
  %237 = vmatmul.mubr.bf16.gmra.mrb[0].mxu0 %v147
  %v238 = vpop.f32.mrb[0].mxu0
  %v239 = vadd.f32 0.0, %v238
  %v240 = vpop.f32.mrb[0].mxu0
  %v241 = vpop.f32.mrb[0].mxu0
  %v242 = vadd.f32 0.0, %v241
  %v243 = vpop.f32.mrb[0].mxu0
  %244 = vmatprep.mubr.bf16.mxu0 0
  %245 = vmatmul.mubr.bf16.gmra.mrb[0].mxu0 %v150
  %v246 = vpop.f32.mrb[0].mxu0
  %v247 = vadd.f32 0.0, %v246
  %v248 = vpop.f32.mrb[0].mxu0
  %v249 = vpop.f32.mrb[0].mxu0
  %v250 = vadd.f32 0.0, %v249
  %v251 = vpop.f32.mrb[0].mxu0
  %252 = vdwg.mxu0
  %v253 = vadd.f32 %v35, %v191
  %v254 = vadd.f32 %v36, %v194
  %v255 = vadd.f32 %v37, %v199
  %v256 = vadd.f32 %v38, %v202
  %v257 = vadd.f32 %v39, %v207
  %v258 = vadd.f32 %v40, %v210
  %v259 = vadd.f32 %v41, %v215
  %v260 = vadd.f32 %v42, %v218
  %v261 = vadd.f32 %v43, %v223
  %v262 = vadd.f32 %v44, %v226
  %v263 = vadd.f32 %v45, %v231
  %v264 = vadd.f32 %v46, %v234
  %v265 = vadd.f32 %v47, %v239
  %v266 = vadd.f32 %v48, %v242
  %v267 = vadd.f32 %v49, %v247
  %v268 = vadd.f32 %v50, %v250
  %269 = vst [vmem:[#allocation2] sm:$0xff] %v253
  %270 = vst [vmem:[#allocation2 + $0x8] sm:$0xff] %v254
  %271 = vst [vmem:[#allocation2 + $0x10] sm:$0xff] %v255
  %272 = vst [vmem:[#allocation2 + $0x18] sm:$0xff] %v256
  %273 = vst [vmem:[#allocation2 + $0x20] sm:$0xff] %v257
  %274 = vst [vmem:[#allocation2 + $0x28] sm:$0xff] %v258
  %275 = vst [vmem:[#allocation2 + $0x30] sm:$0xff] %v259
  %276 = vst [vmem:[#allocation2 + $0x38] sm:$0xff] %v260
  %277 = vst [vmem:[#allocation2 + $0x40] sm:$0xff] %v261
  %278 = vst [vmem:[#allocation2 + $0x48] sm:$0xff] %v262
  %279 = vst [vmem:[#allocation2 + $0x50] sm:$0xff] %v263
  %280 = vst [vmem:[#allocation2 + $0x58] sm:$0xff] %v264
  %281 = vst [vmem:[#allocation2 + $0x60] sm:$0xff] %v265
  %282 = vst [vmem:[#allocation2 + $0x68] sm:$0xff] %v266
  %283 = vst [vmem:[#allocation2 + $0x70] sm:$0xff] %v267
  %284 = vst [vmem:[#allocation2 + $0x78] sm:$0xff] %v268
  // Predicated region
  $region18: #{resnet_base_oc_forward.7} parent=0 // pred_check
    %p285 = pneg %p15
  $region19: #{resnet_base_oc_forward.7} parent=0 // pred_check_branch
    %287 = sbr.rel (%p285) target = $region21
  $region20: #{resnet_base_oc_forward.7} parent=0 // pred_region
    %v288 = vld [vmem:[#allocation2] sm:$0xff]
    %v289 = vld [vmem:[#allocation2 + $0x8] sm:$0xff]
    %v290 = vld [vmem:[#allocation2 + $0x10] sm:$0xff]
    %v291 = vld [vmem:[#allocation2 + $0x18] sm:$0xff]
    %v292 = vld [vmem:[#allocation2 + $0x20] sm:$0xff]
    %v293 = vld [vmem:[#allocation2 + $0x28] sm:$0xff]
    %v294 = vld [vmem:[#allocation2 + $0x30] sm:$0xff]
    %v295 = vld [vmem:[#allocation2 + $0x38] sm:$0xff]
    %v296 = vld [vmem:[#allocation2 + $0x40] sm:$0xff]
    %v297 = vld [vmem:[#allocation2 + $0x48] sm:$0xff]
    %v298 = vld [vmem:[#allocation2 + $0x50] sm:$0xff]
    %v299 = vld [vmem:[#allocation2 + $0x58] sm:$0xff]
    %v300 = vld [vmem:[#allocation2 + $0x60] sm:$0xff]
    %v301 = vld [vmem:[#allocation2 + $0x68] sm:$0xff]
    %v302 = vld [vmem:[#allocation2 + $0x70] sm:$0xff]
    %v303 = vld [vmem:[#allocation2 + $0x78] sm:$0xff]
    %v304 = vld [vmem:[%s2] sm:$0x1]
    %v306 = vlaneseq
    %v307 = vshrl.u32 %v306, 7
    %v308 = vsub.s32 0, %v307
    %v309 = vrot.slane %v304, %v308
    %v311 = vadd.f32 %v288, %v309
    %v312 = vadd.f32 %v289, %v309
    %v313 = vadd.f32 %v290, %v309
    %v314 = vadd.f32 %v291, %v309
    %v315 = vadd.f32 %v292, %v309
    %v316 = vadd.f32 %v293, %v309
    %v317 = vadd.f32 %v294, %v309
    %v318 = vadd.f32 %v295, %v309
    %v319 = vadd.f32 %v296, %v309
    %v320 = vadd.f32 %v297, %v309
    %v321 = vadd.f32 %v298, %v309
    %v322 = vadd.f32 %v299, %v309
    %v323 = vadd.f32 %v300, %v309
    %v324 = vadd.f32 %v301, %v309
    %v325 = vadd.f32 %v302, %v309
    %v326 = vadd.f32 %v303, %v309
    %v327 = vmax.f32 %v311, 0.0
    %v328 = vmax.f32 %v312, 0.0
    %v329 = vmax.f32 %v313, 0.0
    %v330 = vmax.f32 %v314, 0.0
    %v331 = vmax.f32 %v315, 0.0
    %v332 = vmax.f32 %v316, 0.0
    %v333 = vmax.f32 %v317, 0.0
    %v334 = vmax.f32 %v318, 0.0
    %v335 = vmax.f32 %v319, 0.0
    %v336 = vmax.f32 %v320, 0.0
    %v337 = vmax.f32 %v321, 0.0
    %v338 = vmax.f32 %v322, 0.0
    %v339 = vmax.f32 %v323, 0.0
    %v340 = vmax.f32 %v324, 0.0
    %v341 = vmax.f32 %v325, 0.0
    %v342 = vmax.f32 %v326, 0.0
    %v343 = vpack.c.bf16 %v328, %v327
    %v344 = vpack.c.bf16 %v330, %v329
    %v345 = vpack.c.bf16 %v332, %v331
    %v346 = vpack.c.bf16 %v334, %v333
    %v347 = vpack.c.bf16 %v336, %v335
    %v348 = vpack.c.bf16 %v338, %v337
    %v349 = vpack.c.bf16 %v340, %v339
    %v350 = vpack.c.bf16 %v342, %v341
    %v359 = vunpack.c.l.b16 %v343
    %v360 = vunpack.c.h.b16 %v343
    %v361 = vunpack.c.l.b16 %v344
    %v362 = vunpack.c.h.b16 %v344
    %v363 = vunpack.c.l.b16 %v345
    %v364 = vunpack.c.h.b16 %v345
    %v365 = vunpack.c.l.b16 %v346
    %v366 = vunpack.c.h.b16 %v346
    %v367 = vunpack.c.l.b16 %v347
    %v368 = vunpack.c.h.b16 %v347
    %v369 = vunpack.c.l.b16 %v348
    %v370 = vunpack.c.h.b16 %v348
    %v371 = vunpack.c.l.b16 %v349
    %v372 = vunpack.c.h.b16 %v349
    %v373 = vunpack.c.l.b16 %v350
    %v374 = vunpack.c.h.b16 %v350
    %v375 = vpack.c.b16 %v359, %v359
    %v376 = vpack.c.b16 %v360, %v360
    %v377 = vpack.c.b16 %v361, %v361
    %v378 = vpack.c.b16 %v362, %v362
    %v379 = vpack.c.b16 %v363, %v363
    %v380 = vpack.c.b16 %v364, %v364
    %v381 = vpack.c.b16 %v365, %v365
    %v382 = vpack.c.b16 %v366, %v366
    %v383 = vpack.c.b16 %v367, %v367
    %v384 = vpack.c.b16 %v368, %v368
    %v385 = vpack.c.b16 %v369, %v369
    %v386 = vpack.c.b16 %v370, %v370
    %v387 = vpack.c.b16 %v371, %v371
    %v388 = vpack.c.b16 %v372, %v372
    %v389 = vpack.c.b16 %v373, %v373
    %v390 = vpack.c.b16 %v374, %v374
    %407 = vst [vmem:[%s3] sm:$0xf] %v375
    %408 = vst [vmem:[%s3 + $0x4] sm:$0xf] %v376
    %409 = vst [vmem:[%s3 + $0x8] sm:$0xf] %v377
    %410 = vst [vmem:[%s3 + $0xc] sm:$0xf] %v378
    %411 = vst [vmem:[%s3 + $0x10] sm:$0xf] %v379
    %412 = vst [vmem:[%s3 + $0x14] sm:$0xf] %v380
    %413 = vst [vmem:[%s3 + $0x18] sm:$0xf] %v381
    %414 = vst [vmem:[%s3 + $0x1c] sm:$0xf] %v382
    %415 = vst [vmem:[%s3 + $0x20] sm:$0xf] %v383
    %416 = vst [vmem:[%s3 + $0x24] sm:$0xf] %v384
    %417 = vst [vmem:[%s3 + $0x28] sm:$0xf] %v385
    %418 = vst [vmem:[%s3 + $0x2c] sm:$0xf] %v386
    %419 = vst [vmem:[%s3 + $0x30] sm:$0xf] %v387
    %420 = vst [vmem:[%s3 + $0x34] sm:$0xf] %v388
    %421 = vst [vmem:[%s3 + $0x38] sm:$0xf] %v389
    %422 = vst [vmem:[%s3 + $0x3c] sm:$0xf] %v390
  $region21: #{resnet_base_oc_forward.7} parent=0 // pred_fallthru
    _
  // Predicated region
  $region22: #{resnet_base_oc_forward.7} parent=0 // pred_check
    _
  $region23: #{resnet_base_oc_forward.7} parent=0 // pred_check_branch
    %424 = sbr.rel (0) target = $region25
  $region24: #{resnet_base_oc_forward.7} parent=0 // pred_region
    _
  $region25: #{resnet_base_oc_forward.7} parent=0 // pred_fallthru
    _
  // Predicated region
  $region26: #{resnet_base_oc_forward.7} parent=0 // pred_check
    _
  $region27: #{resnet_base_oc_forward.7} parent=0 // pred_check_branch
    %426 = sbr.rel (0) target = $region29
  $region28: #{resnet_base_oc_forward.7} parent=0 // pred_region
    _
  $region29: #{resnet_base_oc_forward.7} parent=0 // pred_fallthru
    _

// kernel: resnet_base_oc_forward.10
$region0: #{resnet_base_oc_forward.10}
  #allocation0 [shape = 'u32[]', space=smem, size = 0x4, offset = 0x4, fixed_abs, tag = 'smem constant byte address 0x4 - core index']
  #allocation1 [shape = 'u32[144,128]{1,0:T(1,128)}', space=vmem, size = 0x12000, scoped, tag = 'internal scratch']
  #allocation2 [shape = 'f32[64,1]{1,0:T(8,128)}', space=vmem, size = 0x8000, scoped, tag = 'scratch operand']
  #allocation3 [shape = 'f32[64,1]{1,0:T(8,128)}', space=vmem, size = 0x8000, scoped, tag = 'scratch operand']
  #allocation4 [shape = 'f32[64,8]{1,0:T(8,128)}', space=vmem, size = 0x8000, scoped, tag = 'scratch operand']
  %s0 = inlined_call_operand.vmem [shape: bf16[2,64,8], index: 0, kind: input, shape index: {}, may-alias: {0,1}]
  %s1 = inlined_call_operand.vmem [shape: bf16[2,64,8], index: 1, kind: input, shape index: {}, may-alias: {0,1}]
  %s2 = inlined_call_operand.vmem [shape: bf16[2,64,8], index: 2, kind: input, shape index: {}]
  %s3 = inlined_call_operand.vmem [shape: bf16[2,64,8], index: 3, kind: output, shape index: {}]
  %s4 = sld [smem:[#allocation0]]
  $region53: #{resnet_base_oc_forward.10} parent=0
    _
  %s6 = ssub.s32 1, %s4
  %s7 = scalar_select 0, %s6, %s4
  loop: start=0, step=1, limit=4
  $region2: #{resnet_base_oc_forward.10} parent=0 // loop_pre_header
    _
  $region3: #{resnet_base_oc_forward.10} parent=0 // loop_header
    %s9 = sphi 0, %s13
    %p10 = scmp.ge.s32.totalorder %s9, 4
    %s16 = sphi 0, %s35
    %s17 = sphi 0, %s31
    %s18 = sphi 0, %s27
    %s19 = sphi 0, %s16
    %s20 = sphi 0, %s17
    %s21 = sphi 0, %s18
    %s22 = sphi 0, %s19
    %s23 = sphi 0, %s20
    %s24 = sphi 0, %s21
    %s40 = sphi 0, %s42
    %s43 = sphi 0, %s40
    %s44 = sphi 0, %s43
    %s60 = sphi 0, %s44
    %s68 = sphi 0, %s70
    %s71 = sphi 0, %s68
    %s72 = sphi 0, %s71
    %s88 = sphi 0, %s72
    %s96 = sphi 0, %s98
    %s99 = sphi 0, %s96
    %s100 = sphi 0, %s99
    %s116 = sphi 0, %s100
    %s124 = sphi 0, %s126
    %s127 = sphi 0, %s124
    %s128 = sphi 0, %s127
    %s144 = sphi 0, %s128
  $region4: #{resnet_base_oc_forward.10} parent=0 // loop_header_branch
    %12 = sbr.rel (%p10) target = $region8
  $region5: #{resnet_base_oc_forward.10} parent=0 // loop_body
    %s14 = ssub.s32 %s9, 1
    %s15 = ssub.s32 %s9, 2
    %s25 = sadd.s32 1, %s18
    %p26 = scmp.ge.s32.totalorder %s25, 1
    %s27 = scalar_select %p26, 0, %s25
    %s28 = sadd.s32 1, %s17
    %s29 = scalar_select %p26, %s28, %s17
    %p30 = scmp.ge.s32.totalorder %s29, 1
    %s31 = scalar_select %p30, 0, %s29
    %s32 = sadd.s32 1, %s16
    %s33 = scalar_select %p30, %s32, %s16
    %p34 = scmp.ge.s32.totalorder %s33, 2
    %s35 = scalar_select %p34, 0, %s33
    %s36 = ssub.s32 %s16, %s35
    %s37 = ssub.s32 %s17, %s31
    %s38 = sor.u32 %s36, %s37
    %p39 = scmp.eq.s32.totalorder %s38, 0
    %s41 = sadd.s32 %s40, 1
    %s42 = scalar_select %p39, %s40, %s41
    %p45 = pneg %p39
    %p46 = scmp.eq.s32.totalorder %s9, 1
    %p47 = por %p45, %p46
    %p48 = scmp.ne.s32.totalorder %s40, %s43
    %p49 = scmp.eq.s32.totalorder %s9, 0
    %p50 = por %p48, %p49
    %p51 = scmp.ne.s32.totalorder %s40, %s43
    %p52 = scmp.eq.s32.totalorder %s14, 1
    %p53 = por %p51, %p52
    %p54 = scmp.ne.s32.totalorder %s43, %s44
    %p55 = scmp.eq.s32.totalorder %s14, 0
    %p56 = por %p54, %p55
    %p57 = scmp.ne.s32.totalorder %s43, %s44
    %p58 = scmp.eq.s32.totalorder %s15, 1
    %p59 = por %p57, %p58
    %p61 = scmp.ne.s32.totalorder %s44, %s60
    %p62 = scmp.eq.s32.totalorder %s15, 0
    %p63 = por %p61, %p62
    %s64 = ssub.s32 %s16, %s35
    %s65 = ssub.s32 %s18, %s27
    %s66 = sor.u32 %s64, %s65
    %p67 = scmp.eq.s32.totalorder %s66, 0
    %s69 = sadd.s32 %s68, 1
    %s70 = scalar_select %p67, %s68, %s69
    %p73 = pneg %p67
    %p74 = scmp.eq.s32.totalorder %s9, 1
    %p75 = por %p73, %p74
    %p76 = scmp.ne.s32.totalorder %s68, %s71
    %p77 = scmp.eq.s32.totalorder %s9, 0
    %p78 = por %p76, %p77
    %p79 = scmp.ne.s32.totalorder %s68, %s71
    %p80 = scmp.eq.s32.totalorder %s14, 1
    %p81 = por %p79, %p80
    %p82 = scmp.ne.s32.totalorder %s71, %s72
    %p83 = scmp.eq.s32.totalorder %s14, 0
    %p84 = por %p82, %p83
    %p85 = scmp.ne.s32.totalorder %s71, %s72
    %p86 = scmp.eq.s32.totalorder %s15, 1
    %p87 = por %p85, %p86
    %p89 = scmp.ne.s32.totalorder %s72, %s88
    %p90 = scmp.eq.s32.totalorder %s15, 0
    %p91 = por %p89, %p90
    %s92 = ssub.s32 %s16, %s35
    %s93 = ssub.s32 %s18, %s27
    %s94 = sor.u32 %s92, %s93
    %p95 = scmp.eq.s32.totalorder %s94, 0
    %s97 = sadd.s32 %s96, 1
    %s98 = scalar_select %p95, %s96, %s97
    %p101 = pneg %p95
    %p102 = scmp.eq.s32.totalorder %s9, 1
    %p103 = por %p101, %p102
    %p104 = scmp.ne.s32.totalorder %s96, %s99
    %p105 = scmp.eq.s32.totalorder %s9, 0
    %p106 = por %p104, %p105
    %p107 = scmp.ne.s32.totalorder %s96, %s99
    %p108 = scmp.eq.s32.totalorder %s14, 1
    %p109 = por %p107, %p108
    %p110 = scmp.ne.s32.totalorder %s99, %s100
    %p111 = scmp.eq.s32.totalorder %s14, 0
    %p112 = por %p110, %p111
    %p113 = scmp.ne.s32.totalorder %s99, %s100
    %p114 = scmp.eq.s32.totalorder %s15, 1
    %p115 = por %p113, %p114
    %p117 = scmp.ne.s32.totalorder %s100, %s116
    %p118 = scmp.eq.s32.totalorder %s15, 0
    %p119 = por %p117, %p118
    %s120 = ssub.s32 %s16, %s35
    %s121 = ssub.s32 %s17, %s31
    %s122 = sor.u32 %s120, %s121
    %p123 = scmp.eq.s32.totalorder %s122, 0
    %s125 = sadd.s32 %s124, 1
    %s126 = scalar_select %p123, %s124, %s125
    %p129 = pneg %p123
    %p130 = scmp.eq.s32.totalorder %s9, 1
    %p131 = por %p129, %p130
    %p132 = scmp.ne.s32.totalorder %s124, %s127
    %p133 = scmp.eq.s32.totalorder %s9, 0
    %p134 = por %p132, %p133
    %p135 = scmp.ne.s32.totalorder %s124, %s127
    %p136 = scmp.eq.s32.totalorder %s14, 1
    %p137 = por %p135, %p136
    %p138 = scmp.ne.s32.totalorder %s127, %s128
    %p139 = scmp.eq.s32.totalorder %s14, 0
    %p140 = por %p138, %p139
    %p141 = scmp.ne.s32.totalorder %s127, %s128
    %p142 = scmp.eq.s32.totalorder %s15, 1
    %p143 = por %p141, %p142
    %p145 = scmp.ne.s32.totalorder %s128, %s144
    %p146 = scmp.eq.s32.totalorder %s15, 0
    %p147 = por %p145, %p146
    %p148 = scmp.le.s32.totalorder 1, %s9
    %p149 = scmp.lt.s32.totalorder %s9, 3
    %p150 = pnand %p148, %p149
    %p151 = pneg %p150
    // Predicated region
    $region9: #{resnet_base_oc_forward.10} parent=5 // pred_check
      _
    $region10: #{resnet_base_oc_forward.10} parent=5 // pred_check_branch
      %153 = sbr.rel (%p150) target = $region12
    $region11: #{resnet_base_oc_forward.10} parent=5 // pred_region
      %s154 = ssub.s32 %s9, 1
    $region12: #{resnet_base_oc_forward.10} parent=5 // pred_fallthru
      _
    %p155 = scmp.lt.s32.totalorder %s9, 2
    // Predicated region
    $region13: #{resnet_base_oc_forward.10} parent=5 // pred_check
      %p156 = pneg %p155
    $region14: #{resnet_base_oc_forward.10} parent=5 // pred_check_branch
      %158 = sbr.rel (%p156) target = $region16
    $region15: #{resnet_base_oc_forward.10} parent=5 // pred_region
      // Predicated region
      $region17: #{resnet_base_oc_forward.10} parent=15 // pred_check
        %p159 = pneg %p50
      $region18: #{resnet_base_oc_forward.10} parent=15 // pred_check_branch
        %161 = sbr.rel (%p159) target = $region20
      $region19: #{resnet_base_oc_forward.10} parent=15 // pred_region
        %s162 = smul.u32 8, %s17
        %p163 = scmp.lt.s32.totalorder %s16, 1
        %s164 = scalar_select %p163, %s16, 1
        %p165 = scmp.lt.s32.totalorder %s162, 7
        %s166 = scalar_select %p165, %s162, 7
        %s167 = smul.addr %s164, 8
        %s168 = sadd.s32 %s166, %s167
        %s169 = smul.addr %s168, 4
        %s170 = scalar_lea.vmem %s0, %s169
        %s171 = smul.u32 8, %s17
      $region20: #{resnet_base_oc_forward.10} parent=15 // pred_fallthru
        _
      // Predicated region
      $region21: #{resnet_base_oc_forward.10} parent=15 // pred_check
        %p172 = pneg %p78
      $region22: #{resnet_base_oc_forward.10} parent=15 // pred_check_branch
        %174 = sbr.rel (%p172) target = $region24
      $region23: #{resnet_base_oc_forward.10} parent=15 // pred_region
        %s175 = smul.u32 8, %s18
        %p176 = scmp.lt.s32.totalorder %s16, 1
        %s177 = scalar_select %p176, %s16, 1
        %p178 = scmp.lt.s32.totalorder %s175, 7
        %s179 = scalar_select %p178, %s175, 7
        %s180 = smul.addr %s177, 8
        %s181 = sadd.s32 %s179, %s180
        %s182 = smul.addr %s181, 4
        %s183 = scalar_lea.vmem %s1, %s182
        %s184 = smul.u32 8, %s18
      $region24: #{resnet_base_oc_forward.10} parent=15 // pred_fallthru
        _
      // Predicated region
      $region25: #{resnet_base_oc_forward.10} parent=15 // pred_check
        %p185 = pneg %p106
      $region26: #{resnet_base_oc_forward.10} parent=15 // pred_check_branch
        %187 = sbr.rel (%p185) target = $region28
      $region27: #{resnet_base_oc_forward.10} parent=15 // pred_region
        %s188 = smul.u32 8, %s18
        %p189 = scmp.lt.s32.totalorder %s16, 1
        %s190 = scalar_select %p189, %s16, 1
        %p191 = scmp.lt.s32.totalorder %s188, 7
        %s192 = scalar_select %p191, %s188, 7
        %s193 = smul.addr %s190, 8
        %s194 = sadd.s32 %s192, %s193
        %s195 = smul.addr %s194, 4
        %s196 = scalar_lea.vmem %s2, %s195
        %s197 = smul.u32 8, %s18
      $region28: #{resnet_base_oc_forward.10} parent=15 // pred_fallthru
        _
    $region16: #{resnet_base_oc_forward.10} parent=5 // pred_fallthru
      _
    %p198 = scmp.le.s32.totalorder 1, %s9
    %p199 = scmp.lt.s32.totalorder %s9, 3
    %p200 = pnand %p198, %p199
    %p201 = pneg %p200
    // Predicated region
    $region29: #{resnet_base_oc_forward.10} parent=5 // pred_check
      _
    $region30: #{resnet_base_oc_forward.10} parent=5 // pred_check_branch
      %203 = sbr.rel (%p200) target = $region32
    $region31: #{resnet_base_oc_forward.10} parent=5 // pred_region
      %s204 = ssub.s32 %s9, 1
      %s205 = smul.u32 8, %s20
      %p206 = scmp.lt.s32.totalorder %s19, 1
      %s207 = scalar_select %p206, %s19, 1
      %p208 = scmp.lt.s32.totalorder %s205, 7
      %s209 = scalar_select %p208, %s205, 7
      %s210 = smul.addr %s207, 8
      %s211 = sadd.s32 %s209, %s210
      %s212 = smul.addr %s211, 4
      %s213 = scalar_lea.vmem %s0, %s212
      %p214 = pneg %p56
      %p215 = pneg %p53
      %s216 = smul.u32 8, %s21
      %p217 = scmp.lt.s32.totalorder %s19, 1
      %s218 = scalar_select %p217, %s19, 1
      %p219 = scmp.lt.s32.totalorder %s216, 7
      %s220 = scalar_select %p219, %s216, 7
      %s221 = smul.addr %s218, 8
      %s222 = sadd.s32 %s220, %s221
      %s223 = smul.addr %s222, 4
      %s224 = scalar_lea.vmem %s1, %s223
      %p225 = pneg %p84
      %p226 = pneg %p81
      %s227 = smul.u32 8, %s21
      %p228 = scmp.lt.s32.totalorder %s19, 1
      %s229 = scalar_select %p228, %s19, 1
      %p230 = scmp.lt.s32.totalorder %s227, 7
      %s231 = scalar_select %p230, %s227, 7
      %s232 = smul.addr %s229, 8
      %s233 = sadd.s32 %s231, %s232
      %s234 = smul.addr %s233, 4
      %s235 = scalar_lea.vmem %s2, %s234
      %p236 = pneg %p112
      %p237 = pneg %p109
      %p238 = pneg %p140
      %p239 = pneg %p137
      %s240 = smul.u32 8, %s20
      %p241 = scmp.lt.s32.totalorder %s19, 1
      %s242 = scalar_select %p241, %s19, 1
      %p243 = scmp.lt.s32.totalorder %s240, 7
      %s244 = scalar_select %p243, %s240, 7
      %s245 = smul.addr %s242, 8
      %s246 = sadd.s32 %s244, %s245
      %s247 = smul.addr %s246, 4
      %s248 = scalar_lea.vmem %s3, %s247
      %s249 = smul.u32 8, %s20
      %p250 = scmp.lt.s32.totalorder %s19, 1
      %s251 = scalar_select %p250, %s19, 1
      %p252 = scmp.lt.s32.totalorder %s249, 7
      %s253 = scalar_select %p252, %s249, 7
      %s254 = smul.addr %s251, 8
      %s255 = sadd.s32 %s253, %s254
      %s256 = smul.addr %s255, 4
      %s257 = scalar_lea.vmem %s0, %s256
      %s258 = smul.u32 8, %s20
      %s259 = smul.u32 8, %s21
      %p260 = scmp.lt.s32.totalorder %s19, 1
      %s261 = scalar_select %p260, %s19, 1
      %p262 = scmp.lt.s32.totalorder %s259, 7
      %s263 = scalar_select %p262, %s259, 7
      %s264 = smul.addr %s261, 8
      %s265 = sadd.s32 %s263, %s264
      %s266 = smul.addr %s265, 4
      %s267 = scalar_lea.vmem %s1, %s266
      %s268 = smul.u32 8, %s21
      %s269 = smul.u32 8, %s21
      %p270 = scmp.lt.s32.totalorder %s19, 1
      %s271 = scalar_select %p270, %s19, 1
      %p272 = scmp.lt.s32.totalorder %s269, 7
      %s273 = scalar_select %p272, %s269, 7
      %s274 = smul.addr %s271, 8
      %s275 = sadd.s32 %s273, %s274
      %s276 = smul.addr %s275, 4
      %s277 = scalar_lea.vmem %s2, %s276
      %s278 = smul.u32 8, %s21
      %s279 = smul.u32 8, %s20
      %p280 = scmp.lt.s32.totalorder %s19, 1
      %s281 = scalar_select %p280, %s19, 1
      %p282 = scmp.lt.s32.totalorder %s279, 7
      %s283 = scalar_select %p282, %s279, 7
      %s284 = smul.addr %s281, 8
      %s285 = sadd.s32 %s283, %s284
      %s286 = smul.addr %s285, 4
      %s287 = scalar_lea.vmem %s3, %s286
      %s288 = smul.u32 8, %s20
      %p290 = scmp.eq.s32.totalorder %s21, 0
      // Predicated region
      $region33: #{resnet_base_oc_forward.10} parent=31 // pred_check
        %p291 = pneg %p290
      $region34: #{resnet_base_oc_forward.10} parent=31 // pred_check_branch
        %293 = sbr.rel (%p291) target = $region36
      $region35: #{resnet_base_oc_forward.10} parent=31 // pred_region
        %vm294 = vcmask 7168
        %295 = vst.msk [vmem:[#allocation2] sm:$0xff] %vm294, -inf
        %296 = vst.msk [vmem:[#allocation2 + $0x8] sm:$0xff] %vm294, -inf
        %297 = vst.msk [vmem:[#allocation2 + $0x10] sm:$0xff] %vm294, -inf
        %298 = vst.msk [vmem:[#allocation2 + $0x18] sm:$0xff] %vm294, -inf
        %299 = vst.msk [vmem:[#allocation2 + $0x20] sm:$0xff] %vm294, -inf
        %300 = vst.msk [vmem:[#allocation2 + $0x28] sm:$0xff] %vm294, -inf
        %301 = vst.msk [vmem:[#allocation2 + $0x30] sm:$0xff] %vm294, -inf
        %302 = vst.msk [vmem:[#allocation2 + $0x38] sm:$0xff] %vm294, -inf
        %303 = vst.msk [vmem:[#allocation3] sm:$0xff] %vm294, 0.0
        %304 = vst.msk [vmem:[#allocation3 + $0x8] sm:$0xff] %vm294, 0.0
        %305 = vst.msk [vmem:[#allocation3 + $0x10] sm:$0xff] %vm294, 0.0
        %306 = vst.msk [vmem:[#allocation3 + $0x18] sm:$0xff] %vm294, 0.0
        %307 = vst.msk [vmem:[#allocation3 + $0x20] sm:$0xff] %vm294, 0.0
        %308 = vst.msk [vmem:[#allocation3 + $0x28] sm:$0xff] %vm294, 0.0
        %309 = vst.msk [vmem:[#allocation3 + $0x30] sm:$0xff] %vm294, 0.0
        %310 = vst.msk [vmem:[#allocation3 + $0x38] sm:$0xff] %vm294, 0.0
        %vm311 = vcmask 64512
        %312 = vst.msk [vmem:[#allocation4] sm:$0xff] %vm311, 0.0
        %313 = vst.msk [vmem:[#allocation4 + $0x8] sm:$0xff] %vm311, 0.0
        %314 = vst.msk [vmem:[#allocation4 + $0x10] sm:$0xff] %vm311, 0.0
        %315 = vst.msk [vmem:[#allocation4 + $0x18] sm:$0xff] %vm311, 0.0
        %316 = vst.msk [vmem:[#allocation4 + $0x20] sm:$0xff] %vm311, 0.0
        %317 = vst.msk [vmem:[#allocation4 + $0x28] sm:$0xff] %vm311, 0.0
        %318 = vst.msk [vmem:[#allocation4 + $0x30] sm:$0xff] %vm311, 0.0
        %319 = vst.msk [vmem:[#allocation4 + $0x38] sm:$0xff] %vm311, 0.0
      $region36: #{resnet_base_oc_forward.10} parent=31 // pred_fallthru
        _
      %v320 = vld [vmem:[%s257] sm:$0xf]
      %v321 = vld [vmem:[%s257 + $0x4] sm:$0xf]
      %v322 = vld [vmem:[%s257 + $0x8] sm:$0xf]
      %v323 = vld [vmem:[%s257 + $0xc] sm:$0xf]
      %v324 = vld [vmem:[%s257 + $0x10] sm:$0xf]
      %v325 = vld [vmem:[%s257 + $0x14] sm:$0xf]
      %v326 = vld [vmem:[%s257 + $0x18] sm:$0xf]
      %v327 = vld [vmem:[%s257 + $0x1c] sm:$0xf]
      %v328 = vunpack.c.l.bf16 %v320
      %v329 = vunpack.c.l.bf16 %v321
      %v330 = vunpack.c.l.bf16 %v322
      %v331 = vunpack.c.l.bf16 %v323
      %v332 = vunpack.c.l.bf16 %v324
      %v333 = vunpack.c.l.bf16 %v325
      %v334 = vunpack.c.l.bf16 %v326
      %v335 = vunpack.c.l.bf16 %v327
      %v336 = vmax.f32 %v328, 0.0
      %v337 = vmax.f32 %v329, 0.0
      %v338 = vmax.f32 %v330, 0.0
      %v339 = vmax.f32 %v331, 0.0
      %v340 = vmax.f32 %v332, 0.0
      %v341 = vmax.f32 %v333, 0.0
      %v342 = vmax.f32 %v334, 0.0
      %v343 = vmax.f32 %v335, 0.0
      %v344 = vmul.f32 %v336, 0.35355338
      %v345 = vmul.f32 %v337, 0.35355338
      %v346 = vmul.f32 %v338, 0.35355338
      %v347 = vmul.f32 %v339, 0.35355338
      %v348 = vmul.f32 %v340, 0.35355338
      %v349 = vmul.f32 %v341, 0.35355338
      %v350 = vmul.f32 %v342, 0.35355338
      %v351 = vmul.f32 %v343, 0.35355338
      %v352 = vld [vmem:[%s267] sm:$0xf]
      %v353 = vld [vmem:[%s267 + $0x4] sm:$0xf]
      %v354 = vld [vmem:[%s267 + $0x8] sm:$0xf]
      %v355 = vld [vmem:[%s267 + $0xc] sm:$0xf]
      %v356 = vld [vmem:[%s267 + $0x10] sm:$0xf]
      %v357 = vld [vmem:[%s267 + $0x14] sm:$0xf]
      %v358 = vld [vmem:[%s267 + $0x18] sm:$0xf]
      %v359 = vld [vmem:[%s267 + $0x1c] sm:$0xf]
      %v360 = vunpack.c.l.bf16 %v352
      %v361 = vunpack.c.l.bf16 %v353
      %v362 = vunpack.c.l.bf16 %v354
      %v363 = vunpack.c.l.bf16 %v355
      %v364 = vunpack.c.l.bf16 %v356
      %v365 = vunpack.c.l.bf16 %v357
      %v366 = vunpack.c.l.bf16 %v358
      %v367 = vunpack.c.l.bf16 %v359
      %v368 = vmax.f32 %v360, 0.0
      %v369 = vmax.f32 %v361, 0.0
      %v370 = vmax.f32 %v362, 0.0
      %v371 = vmax.f32 %v363, 0.0
      %v372 = vmax.f32 %v364, 0.0
      %v373 = vmax.f32 %v365, 0.0
      %v374 = vmax.f32 %v366, 0.0
      %v375 = vmax.f32 %v367, 0.0
      %vm376 = vcmask 64512
      %v378 = vsel %vm376, %v344, 0
      %v381 = vsel %vm376, %v345, 0
      %v384 = vsel %vm376, %v346, 0
      %v387 = vsel %vm376, %v347, 0
      %v390 = vsel %vm376, %v348, 0
      %v393 = vsel %vm376, %v349, 0
      %v396 = vsel %vm376, %v350, 0
      %v399 = vsel %vm376, %v351, 0
      %v402 = vsel %vm376, %v368, 0
      %v405 = vsel %vm376, %v369, 0
      %v408 = vsel %vm376, %v370, 0
      %v411 = vsel %vm376, %v371, 0
      %v414 = vsel %vm376, %v372, 0
      %v417 = vsel %vm376, %v373, 0
      %v420 = vsel %vm376, %v374, 0
      %v423 = vsel %vm376, %v375, 0
      %425 = vmatprep.subr.mxu0 0.0
      %426 = vmatpush1.xpose.msra.mxu0 %v402
      %427 = vmatprep.subr.mxu0 0.0
      %428 = vmatpush1.xpose.msra.mxu0 %v405
      %429 = vmatprep.subr.mxu0 0.0
      %430 = vmatpush1.xpose.msra.mxu0 %v408
      %431 = vmatprep.subr.mxu0 0.0
      %432 = vmatpush1.xpose.msra.mxu0 %v411
      %433 = vmatprep.subr.mxu0 0.0
      %434 = vmatpush1.xpose.msra.mxu0 %v414
      %435 = vmatprep.subr.mxu0 0.0
      %436 = vmatpush1.xpose.msra.mxu0 %v417
      %437 = vmatprep.subr.mxu0 0.0
      %438 = vmatpush1.xpose.msra.mxu0 %v420
      %439 = vmatprep.subr.mxu0 0.0
      %440 = vmatpush1.xpose.msra.mxu0 %v423
      %441 = vmatprep.subr.mxu0 0.0
      %442 = vmatpush1.xpose.msra.mxu0 0.0
      %443 = vmatprep.subr.mxu0 0.0
      %444 = vmatpush1.xpose.msra.mxu0 0.0
      %445 = vmatprep.subr.mxu0 0.0
      %446 = vmatpush1.xpose.msra.mxu0 0.0
      %447 = vmatprep.subr.mxu0 0.0
      %448 = vmatpush1.xpose.msra.mxu0 0.0
      %449 = vmatprep.subr.mxu0 0.0
      %450 = vmatpush1.xpose.msra.mxu0 0.0
      %451 = vmatprep.subr.mxu0 0.0
      %452 = vmatpush1.xpose.msra.mxu0 0.0
      %453 = vmatprep.subr.mxu0 0.0
      %454 = vmatpush1.xpose.msra.mxu0 0.0
      %455 = vmatprep.subr.mxu0 0.0
      %456 = vmatpush1.xpose.msra.mxu0 0.0
      %457 = vmatprep.subr.mxu0 0.0
      %458 = vmatpush1.xpose.msra.mxu0 0.0
      %459 = vmatprep.subr.mxu0 0.0
      %460 = vmatpush1.xpose.msra.mxu0 0.0
      %461 = vmatprep.subr.mxu0 0.0
      %462 = vmatpush1.xpose.msra.mxu0 0.0
      %463 = vmatprep.subr.mxu0 0.0
      %464 = vmatpush1.xpose.msra.mxu0 0.0
      %465 = vmatprep.subr.mxu0 0.0
      %466 = vmatpush1.xpose.msra.mxu0 0.0
      %467 = vmatprep.subr.mxu0 0.0
      %468 = vmatpush1.xpose.msra.mxu0 0.0
      %469 = vmatprep.subr.mxu0 0.0
      %470 = vmatpush1.xpose.msra.mxu0 0.0
      %471 = vmatprep.subr.mxu0 0.0
      %472 = vmatpush1.xpose.msra.mxu0 0.0
      %473 = vmatprep.subr.mxu0 0.0
      %474 = vmatpush1.xpose.msra.mxu0 0.0
      %475 = vmatprep.subr.mxu0 0.0
      %476 = vmatpush1.xpose.msra.mxu0 0.0
      %477 = vmatprep.subr.mxu0 0.0
      %478 = vmatpush1.xpose.msra.mxu0 0.0
      %479 = vmatprep.subr.mxu0 0.0
      %480 = vmatpush1.xpose.msra.mxu0 0.0
      %481 = vmatprep.subr.mxu0 0.0
      %482 = vmatpush1.xpose.msra.mxu0 0.0
      %483 = vmatprep.subr.mxu0 0.0
      %484 = vmatpush1.xpose.msra.mxu0 0.0
      %485 = vmatprep.subr.mxu0 0.0
      %486 = vmatpush1.xpose.msra.mxu0 0.0
      %487 = vmatprep.subr.mxu0 0.0
      %488 = vmatpush1.xpose.msra.mxu0 0.0
      %489 = vmatprep.mubr.f32.mxu0 0.0
      %490 = vmatmul.mubr.f32.gmra.mrb[0].mxu0 %v378
      %v491 = vpop.f32.mrb[0].mxu0
      %v492 = vadd.f32 0.0, %v491
      %v493 = vpop.f32.mrb[0].mxu0
      %494 = vmatprep.mubr.f32.mxu0 0.0
      %495 = vmatmul.mubr.f32.gmra.mrb[0].mxu0 %v381
      %v496 = vpop.f32.mrb[0].mxu0
      %v497 = vadd.f32 0.0, %v496
      %v498 = vpop.f32.mrb[0].mxu0
      %499 = vmatprep.mubr.f32.mxu0 0.0
      %500 = vmatmul.mubr.f32.gmra.mrb[0].mxu0 %v384
      %v501 = vpop.f32.mrb[0].mxu0
      %v502 = vadd.f32 0.0, %v501
      %v503 = vpop.f32.mrb[0].mxu0
      %504 = vmatprep.mubr.f32.mxu0 0.0
      %505 = vmatmul.mubr.f32.gmra.mrb[0].mxu0 %v387
      %v506 = vpop.f32.mrb[0].mxu0
      %v507 = vadd.f32 0.0, %v506
      %v508 = vpop.f32.mrb[0].mxu0
      %509 = vmatprep.mubr.f32.mxu0 0.0
      %510 = vmatmul.mubr.f32.gmra.mrb[0].mxu0 %v390
      %v511 = vpop.f32.mrb[0].mxu0
      %v512 = vadd.f32 0.0, %v511
      %v513 = vpop.f32.mrb[0].mxu0
      %514 = vmatprep.mubr.f32.mxu0 0.0
      %515 = vmatmul.mubr.f32.gmra.mrb[0].mxu0 %v393
      %v516 = vpop.f32.mrb[0].mxu0
      %v517 = vadd.f32 0.0, %v516
      %v518 = vpop.f32.mrb[0].mxu0
      %519 = vmatprep.mubr.f32.mxu0 0.0
      %520 = vmatmul.mubr.f32.gmra.mrb[0].mxu0 %v396
      %v521 = vpop.f32.mrb[0].mxu0
      %v522 = vadd.f32 0.0, %v521
      %v523 = vpop.f32.mrb[0].mxu0
      %524 = vmatprep.mubr.f32.mxu0 0.0
      %525 = vmatmul.mubr.f32.gmra.mrb[0].mxu0 %v399
      %v526 = vpop.f32.mrb[0].mxu0
      %v527 = vadd.f32 0.0, %v526
      %v528 = vpop.f32.mrb[0].mxu0
      %529 = vdwg.mxu0
      %v530 = vld [vmem:[#allocation2] sm:$0xff]
      %v531 = vld [vmem:[#allocation2 + $0x8] sm:$0xff]
      %v532 = vld [vmem:[#allocation2 + $0x10] sm:$0xff]
      %v533 = vld [vmem:[#allocation2 + $0x18] sm:$0xff]
      %v534 = vld [vmem:[#allocation2 + $0x20] sm:$0xff]
      %v535 = vld [vmem:[#allocation2 + $0x28] sm:$0xff]
      %v536 = vld [vmem:[#allocation2 + $0x30] sm:$0xff]
      %v537 = vld [vmem:[#allocation2 + $0x38] sm:$0xff]
      %vm538 = vcmask 523264
      %v539 = vsel %vm538, %v492, -inf
      %540 = vmax.xlane.f32.xlu0 %v539
      %v541 = vpop.xlane.xlu0 %540
      %v542 = vsel %vm538, %v497, -inf
      %543 = vmax.xlane.f32.xlu0 %v542
      %v544 = vpop.xlane.xlu0 %543
      %v545 = vsel %vm538, %v502, -inf
      %546 = vmax.xlane.f32.xlu0 %v545
      %v547 = vpop.xlane.xlu0 %546
      %v548 = vsel %vm538, %v507, -inf
      %549 = vmax.xlane.f32.xlu0 %v548
      %v550 = vpop.xlane.xlu0 %549
      %v551 = vsel %vm538, %v512, -inf
      %552 = vmax.xlane.f32.xlu0 %v551
      %v553 = vpop.xlane.xlu0 %552
      %v554 = vsel %vm538, %v517, -inf
      %555 = vmax.xlane.f32.xlu0 %v554
      %v556 = vpop.xlane.xlu0 %555
      %v557 = vsel %vm538, %v522, -inf
      %558 = vmax.xlane.f32.xlu0 %v557
      %v559 = vpop.xlane.xlu0 %558
      %v560 = vsel %vm538, %v527, -inf
      %561 = vmax.xlane.f32.xlu0 %v560
      %v562 = vpop.xlane.xlu0 %561
      %v563 = vmax.f32 %v530, %v541
      %v564 = vmax.f32 %v531, %v544
      %v565 = vmax.f32 %v532, %v547
      %v566 = vmax.f32 %v533, %v550
      %v567 = vmax.f32 %v534, %v553
      %v568 = vmax.f32 %v535, %v556
      %v569 = vmax.f32 %v536, %v559
      %v570 = vmax.f32 %v537, %v562
      %v571 = vsub.f32 %v530, %v563
      %v572 = vsub.f32 %v531, %v564
      %v573 = vsub.f32 %v532, %v565
      %v574 = vsub.f32 %v533, %v566
      %v575 = vsub.f32 %v534, %v567
      %v576 = vsub.f32 %v535, %v568
      %v577 = vsub.f32 %v536, %v569
      %v578 = vsub.f32 %v537, %v570
      %v579 = vmul.f32 %v571, 1.442695
      %v580 = vpow.pop %v579
      %v581 = vmul.f32 %v572, 1.442695
      %v582 = vpow.pop %v581
      %v583 = vmul.f32 %v573, 1.442695
      %v584 = vpow.pop %v583
      %v585 = vmul.f32 %v574, 1.442695
      %v586 = vpow.pop %v585
      %v587 = vmul.f32 %v575, 1.442695
      %v588 = vpow.pop %v587
      %v589 = vmul.f32 %v576, 1.442695
      %v590 = vpow.pop %v589
      %v591 = vmul.f32 %v577, 1.442695
      %v592 = vpow.pop %v591
      %v593 = vmul.f32 %v578, 1.442695
      %v594 = vpow.pop %v593
      %596 = vset.pattern.permute.xlu0 0
      %597 = vperm.xlu0 %596, %v563
      %v598 = vpop.permute.xlu0 %597
      %601 = vset.pattern.permute.xlu0 0
      %602 = vperm.xlu0 %601, %v564
      %v603 = vpop.permute.xlu0 %602
      %606 = vset.pattern.permute.xlu0 0
      %607 = vperm.xlu0 %606, %v565
      %v608 = vpop.permute.xlu0 %607
      %611 = vset.pattern.permute.xlu0 0
      %612 = vperm.xlu0 %611, %v566
      %v613 = vpop.permute.xlu0 %612
      %616 = vset.pattern.permute.xlu0 0
      %617 = vperm.xlu0 %616, %v567
      %v618 = vpop.permute.xlu0 %617
      %621 = vset.pattern.permute.xlu0 0
      %622 = vperm.xlu0 %621, %v568
      %v623 = vpop.permute.xlu0 %622
      %626 = vset.pattern.permute.xlu0 0
      %627 = vperm.xlu0 %626, %v569
      %v628 = vpop.permute.xlu0 %627
      %631 = vset.pattern.permute.xlu0 0
      %632 = vperm.xlu0 %631, %v570
      %v633 = vpop.permute.xlu0 %632
      %v635 = vsub.f32 %v492, %v598
      %v636 = vsub.f32 %v497, %v603
      %v637 = vsub.f32 %v502, %v608
      %v638 = vsub.f32 %v507, %v613
      %v639 = vsub.f32 %v512, %v618
      %v640 = vsub.f32 %v517, %v623
      %v641 = vsub.f32 %v522, %v628
      %v642 = vsub.f32 %v527, %v633
      %v643 = vmul.f32 %v635, 1.442695
      %v644 = vpow.pop %v643
      %v645 = vmul.f32 %v636, 1.442695
      %v646 = vpow.pop %v645
      %v647 = vmul.f32 %v637, 1.442695
      %v648 = vpow.pop %v647
      %v649 = vmul.f32 %v638, 1.442695
      %v650 = vpow.pop %v649
      %v651 = vmul.f32 %v639, 1.442695
      %v652 = vpow.pop %v651
      %v653 = vmul.f32 %v640, 1.442695
      %v654 = vpow.pop %v653
      %v655 = vmul.f32 %v641, 1.442695
      %v656 = vpow.pop %v655
      %v657 = vmul.f32 %v642, 1.442695
      %v658 = vpow.pop %v657
      %v659 = vld [vmem:[#allocation3] sm:$0xff]
      %v660 = vld [vmem:[#allocation3 + $0x8] sm:$0xff]
      %v661 = vld [vmem:[#allocation3 + $0x10] sm:$0xff]
      %v662 = vld [vmem:[#allocation3 + $0x18] sm:$0xff]
      %v663 = vld [vmem:[#allocation3 + $0x20] sm:$0xff]
      %v664 = vld [vmem:[#allocation3 + $0x28] sm:$0xff]
      %v665 = vld [vmem:[#allocation3 + $0x30] sm:$0xff]
      %v666 = vld [vmem:[#allocation3 + $0x38] sm:$0xff]
      %v667 = vmul.f32 %v580, %v659
      %v668 = vmul.f32 %v582, %v660
      %v669 = vmul.f32 %v584, %v661
      %v670 = vmul.f32 %v586, %v662
      %v671 = vmul.f32 %v588, %v663
      %v672 = vmul.f32 %v590, %v664
      %v673 = vmul.f32 %v592, %v665
      %v674 = vmul.f32 %v594, %v666
      %v675 = vsel %vm538, %v644, 0.0
      %676 = vadd.xlane.f32.xlu0 %v675
      %v677 = vpop.xlane.xlu0 %676
      %v678 = vsel %vm538, %v646, 0.0
      %679 = vadd.xlane.f32.xlu0 %v678
      %v680 = vpop.xlane.xlu0 %679
      %v681 = vsel %vm538, %v648, 0.0
      %682 = vadd.xlane.f32.xlu0 %v681
      %v683 = vpop.xlane.xlu0 %682
      %v684 = vsel %vm538, %v650, 0.0
      %685 = vadd.xlane.f32.xlu0 %v684
      %v686 = vpop.xlane.xlu0 %685
      %v687 = vsel %vm538, %v652, 0.0
      %688 = vadd.xlane.f32.xlu0 %v687
      %v689 = vpop.xlane.xlu0 %688
      %v690 = vsel %vm538, %v654, 0.0
      %691 = vadd.xlane.f32.xlu0 %v690
      %v692 = vpop.xlane.xlu0 %691
      %v693 = vsel %vm538, %v656, 0.0
      %694 = vadd.xlane.f32.xlu0 %v693
      %v695 = vpop.xlane.xlu0 %694
      %v696 = vsel %vm538, %v658, 0.0
      %697 = vadd.xlane.f32.xlu0 %v696
      %v698 = vpop.xlane.xlu0 %697
      %v699 = vadd.f32 %v667, %v677
      %v700 = vadd.f32 %v668, %v680
      %v701 = vadd.f32 %v669, %v683
      %v702 = vadd.f32 %v670, %v686
      %v703 = vadd.f32 %v671, %v689
      %v704 = vadd.f32 %v672, %v692
      %v705 = vadd.f32 %v673, %v695
      %v706 = vadd.f32 %v674, %v698
      %vm707 = vcmask 7168
      %708 = vst.msk [vmem:[#allocation3] sm:$0xff] %vm707, %v699
      %709 = vst.msk [vmem:[#allocation3 + $0x8] sm:$0xff] %vm707, %v700
      %710 = vst.msk [vmem:[#allocation3 + $0x10] sm:$0xff] %vm707, %v701
      %711 = vst.msk [vmem:[#allocation3 + $0x18] sm:$0xff] %vm707, %v702
      %712 = vst.msk [vmem:[#allocation3 + $0x20] sm:$0xff] %vm707, %v703
      %713 = vst.msk [vmem:[#allocation3 + $0x28] sm:$0xff] %vm707, %v704
      %714 = vst.msk [vmem:[#allocation3 + $0x30] sm:$0xff] %vm707, %v705
      %715 = vst.msk [vmem:[#allocation3 + $0x38] sm:$0xff] %vm707, %v706
      %v716 = vld [vmem:[#allocation4] sm:$0xff]
      %v717 = vld [vmem:[#allocation4 + $0x8] sm:$0xff]
      %v718 = vld [vmem:[#allocation4 + $0x10] sm:$0xff]
      %v719 = vld [vmem:[#allocation4 + $0x18] sm:$0xff]
      %v720 = vld [vmem:[#allocation4 + $0x20] sm:$0xff]
      %v721 = vld [vmem:[#allocation4 + $0x28] sm:$0xff]
      %v722 = vld [vmem:[#allocation4 + $0x30] sm:$0xff]
      %v723 = vld [vmem:[#allocation4 + $0x38] sm:$0xff]
      %725 = vset.pattern.permute.xlu0 0
      %726 = vperm.xlu0 %725, %v580
      %v727 = vpop.permute.xlu0 %726
      %730 = vset.pattern.permute.xlu0 0
      %731 = vperm.xlu0 %730, %v582
      %v732 = vpop.permute.xlu0 %731
      %735 = vset.pattern.permute.xlu0 0
      %736 = vperm.xlu0 %735, %v584
      %v737 = vpop.permute.xlu0 %736
      %740 = vset.pattern.permute.xlu0 0
      %741 = vperm.xlu0 %740, %v586
      %v742 = vpop.permute.xlu0 %741
      %745 = vset.pattern.permute.xlu0 0
      %746 = vperm.xlu0 %745, %v588
      %v747 = vpop.permute.xlu0 %746
      %750 = vset.pattern.permute.xlu0 0
      %751 = vperm.xlu0 %750, %v590
      %v752 = vpop.permute.xlu0 %751
      %755 = vset.pattern.permute.xlu0 0
      %756 = vperm.xlu0 %755, %v592
      %v757 = vpop.permute.xlu0 %756
      %760 = vset.pattern.permute.xlu0 0
      %761 = vperm.xlu0 %760, %v594
      %v762 = vpop.permute.xlu0 %761
      %v764 = vmul.f32 %v727, %v716
      %v765 = vmul.f32 %v732, %v717
      %v766 = vmul.f32 %v737, %v718
      %v767 = vmul.f32 %v742, %v719
      %v768 = vmul.f32 %v747, %v720
      %v769 = vmul.f32 %v752, %v721
      %v770 = vmul.f32 %v757, %v722
      %v771 = vmul.f32 %v762, %v723
      %v772 = vpack.c.bf16 %v646, %v644
      %v773 = vpack.c.bf16 %v650, %v648
      %v774 = vpack.c.bf16 %v654, %v652
      %v775 = vpack.c.bf16 %v658, %v656
      %v776 = vld [vmem:[%s277] sm:$0xf]
      %v777 = vld [vmem:[%s277 + $0x4] sm:$0xf]
      %v778 = vld [vmem:[%s277 + $0x8] sm:$0xf]
      %v779 = vld [vmem:[%s277 + $0xc] sm:$0xf]
      %v780 = vld [vmem:[%s277 + $0x10] sm:$0xf]
      %v781 = vld [vmem:[%s277 + $0x14] sm:$0xf]
      %v782 = vld [vmem:[%s277 + $0x18] sm:$0xf]
      %v783 = vld [vmem:[%s277 + $0x1c] sm:$0xf]
      %v792 = vunpack.c.l.b16 %v776
      %v793 = vunpack.c.l.b16 %v777
      %v794 = vunpack.c.l.b16 %v778
      %v795 = vunpack.c.l.b16 %v779
      %v796 = vunpack.c.l.b16 %v780
      %v797 = vunpack.c.l.b16 %v781
      %v798 = vunpack.c.l.b16 %v782
      %v799 = vunpack.c.l.b16 %v783
      %v800 = vpack.c.b16 %v793, %v792
      %v801 = vpack.c.b16 %v795, %v794
      %v802 = vpack.c.b16 %v797, %v796
      %v803 = vpack.c.b16 %v799, %v798
      %v809 = vsel %vm538, %v772, 0
      %v812 = vsel %vm538, %v773, 0
      %v815 = vsel %vm538, %v774, 0
      %v818 = vsel %vm538, %v775, 0
      %820 = vmatprep.subr.bf16.mxu0 0
      %821 = vmatpush1.bf16.msra.mxu0 %v800
      %822 = vmatprep.subr.bf16.mxu0 0
      %823 = vmatpush1.bf16.msra.mxu0 %v801
      %824 = vmatprep.subr.bf16.mxu0 0
      %825 = vmatpush1.bf16.msra.mxu0 %v802
      %826 = vmatprep.subr.bf16.mxu0 0
      %827 = vmatpush1.bf16.msra.mxu0 %v803
      %828 = vmatprep.subr.bf16.mxu0 0
      %829 = vmatpush1.bf16.msra.mxu0 0
      %830 = vmatprep.subr.bf16.mxu0 0
      %831 = vmatpush1.bf16.msra.mxu0 0
      %832 = vmatprep.subr.bf16.mxu0 0
      %833 = vmatpush1.bf16.msra.mxu0 0
      %834 = vmatprep.subr.bf16.mxu0 0
      %835 = vmatpush1.bf16.msra.mxu0 0
      %836 = vmatprep.subr.bf16.mxu0 0
      %837 = vmatpush1.bf16.msra.mxu0 0
      %838 = vmatprep.subr.bf16.mxu0 0
      %839 = vmatpush1.bf16.msra.mxu0 0
      %840 = vmatprep.subr.bf16.mxu0 0
      %841 = vmatpush1.bf16.msra.mxu0 0
      %842 = vmatprep.subr.bf16.mxu0 0
      %843 = vmatpush1.bf16.msra.mxu0 0
      %844 = vmatprep.subr.bf16.mxu0 0
      %845 = vmatpush1.bf16.msra.mxu0 0
      %846 = vmatprep.subr.bf16.mxu0 0
      %847 = vmatpush1.bf16.msra.mxu0 0
      %848 = vmatprep.subr.bf16.mxu0 0
      %849 = vmatpush1.bf16.msra.mxu0 0
      %850 = vmatprep.subr.bf16.mxu0 0
      %851 = vmatpush1.bf16.msra.mxu0 0
      %852 = vmatprep.mubr.bf16.mxu0 0
      %853 = vmatmul.mubr.bf16.gmra.mrb[0].mxu0 %v809
      %v854 = vpop.f32.mrb[0].mxu0
      %v855 = vadd.f32 0.0, %v854
      %v856 = vpop.f32.mrb[0].mxu0
      %v857 = vpop.f32.mrb[0].mxu0
      %v858 = vadd.f32 0.0, %v857
      %v859 = vpop.f32.mrb[0].mxu0
      %860 = vmatprep.mubr.bf16.mxu0 0
      %861 = vmatmul.mubr.bf16.gmra.mrb[0].mxu0 %v812
      %v862 = vpop.f32.mrb[0].mxu0
      %v863 = vadd.f32 0.0, %v862
      %v864 = vpop.f32.mrb[0].mxu0
      %v865 = vpop.f32.mrb[0].mxu0
      %v866 = vadd.f32 0.0, %v865
      %v867 = vpop.f32.mrb[0].mxu0
      %868 = vmatprep.mubr.bf16.mxu0 0
      %869 = vmatmul.mubr.bf16.gmra.mrb[0].mxu0 %v815
      %v870 = vpop.f32.mrb[0].mxu0
      %v871 = vadd.f32 0.0, %v870
      %v872 = vpop.f32.mrb[0].mxu0
      %v873 = vpop.f32.mrb[0].mxu0
      %v874 = vadd.f32 0.0, %v873
      %v875 = vpop.f32.mrb[0].mxu0
      %876 = vmatprep.mubr.bf16.mxu0 0
      %877 = vmatmul.mubr.bf16.gmra.mrb[0].mxu0 %v818
      %v878 = vpop.f32.mrb[0].mxu0
      %v879 = vadd.f32 0.0, %v878
      %v880 = vpop.f32.mrb[0].mxu0
      %v881 = vpop.f32.mrb[0].mxu0
      %v882 = vadd.f32 0.0, %v881
      %v883 = vpop.f32.mrb[0].mxu0
      %884 = vdwg.mxu0
      %v885 = vadd.f32 %v764, %v855
      %v886 = vadd.f32 %v765, %v858
      %v887 = vadd.f32 %v766, %v863
      %v888 = vadd.f32 %v767, %v866
      %v889 = vadd.f32 %v768, %v871
      %v890 = vadd.f32 %v769, %v874
      %v891 = vadd.f32 %v770, %v879
      %v892 = vadd.f32 %v771, %v882
      %893 = vst.msk [vmem:[#allocation4] sm:$0xff] %vm376, %v885
      %894 = vst.msk [vmem:[#allocation4 + $0x8] sm:$0xff] %vm376, %v886
      %895 = vst.msk [vmem:[#allocation4 + $0x10] sm:$0xff] %vm376, %v887
      %896 = vst.msk [vmem:[#allocation4 + $0x18] sm:$0xff] %vm376, %v888
      %897 = vst.msk [vmem:[#allocation4 + $0x20] sm:$0xff] %vm376, %v889
      %898 = vst.msk [vmem:[#allocation4 + $0x28] sm:$0xff] %vm376, %v890
      %899 = vst.msk [vmem:[#allocation4 + $0x30] sm:$0xff] %vm376, %v891
      %900 = vst.msk [vmem:[#allocation4 + $0x38] sm:$0xff] %vm376, %v892
      %901 = vst.msk [vmem:[#allocation2] sm:$0xff] %vm707, %v563
      %902 = vst.msk [vmem:[#allocation2 + $0x8] sm:$0xff] %vm707, %v564
      %903 = vst.msk [vmem:[#allocation2 + $0x10] sm:$0xff] %vm707, %v565
      %904 = vst.msk [vmem:[#allocation2 + $0x18] sm:$0xff] %vm707, %v566
      %905 = vst.msk [vmem:[#allocation2 + $0x20] sm:$0xff] %vm707, %v567
      %906 = vst.msk [vmem:[#allocation2 + $0x28] sm:$0xff] %vm707, %v568
      %907 = vst.msk [vmem:[#allocation2 + $0x30] sm:$0xff] %vm707, %v569
      %908 = vst.msk [vmem:[#allocation2 + $0x38] sm:$0xff] %vm707, %v570
      // Predicated region
      $region37: #{resnet_base_oc_forward.10} parent=31 // pred_check
        %p909 = pneg %p290
      $region38: #{resnet_base_oc_forward.10} parent=31 // pred_check_branch
        %911 = sbr.rel (%p909) target = $region40
      $region39: #{resnet_base_oc_forward.10} parent=31 // pred_region
        %v912 = vld [vmem:[#allocation4] sm:$0xff]
        %v913 = vld [vmem:[#allocation4 + $0x8] sm:$0xff]
        %v914 = vld [vmem:[#allocation4 + $0x10] sm:$0xff]
        %v915 = vld [vmem:[#allocation4 + $0x18] sm:$0xff]
        %v916 = vld [vmem:[#allocation4 + $0x20] sm:$0xff]
        %v917 = vld [vmem:[#allocation4 + $0x28] sm:$0xff]
        %v918 = vld [vmem:[#allocation4 + $0x30] sm:$0xff]
        %v919 = vld [vmem:[#allocation4 + $0x38] sm:$0xff]
        %v920 = vld [vmem:[#allocation3] sm:$0xff]
        %v921 = vld [vmem:[#allocation3 + $0x8] sm:$0xff]
        %v922 = vld [vmem:[#allocation3 + $0x10] sm:$0xff]
        %v923 = vld [vmem:[#allocation3 + $0x18] sm:$0xff]
        %v924 = vld [vmem:[#allocation3 + $0x20] sm:$0xff]
        %v925 = vld [vmem:[#allocation3 + $0x28] sm:$0xff]
        %v926 = vld [vmem:[#allocation3 + $0x30] sm:$0xff]
        %v927 = vld [vmem:[#allocation3 + $0x38] sm:$0xff]
        %v928 = vrcp.pop %v920
        %v929 = vrcp.pop %v921
        %v930 = vrcp.pop %v922
        %v931 = vrcp.pop %v923
        %v932 = vrcp.pop %v924
        %v933 = vrcp.pop %v925
        %v934 = vrcp.pop %v926
        %v935 = vrcp.pop %v927
        %937 = vset.pattern.permute.xlu0 0
        %938 = vperm.xlu0 %937, %v928
        %v939 = vpop.permute.xlu0 %938
        %942 = vset.pattern.permute.xlu0 0
        %943 = vperm.xlu0 %942, %v929
        %v944 = vpop.permute.xlu0 %943
        %947 = vset.pattern.permute.xlu0 0
        %948 = vperm.xlu0 %947, %v930
        %v949 = vpop.permute.xlu0 %948
        %952 = vset.pattern.permute.xlu0 0
        %953 = vperm.xlu0 %952, %v931
        %v954 = vpop.permute.xlu0 %953
        %957 = vset.pattern.permute.xlu0 0
        %958 = vperm.xlu0 %957, %v932
        %v959 = vpop.permute.xlu0 %958
        %962 = vset.pattern.permute.xlu0 0
        %963 = vperm.xlu0 %962, %v933
        %v964 = vpop.permute.xlu0 %963
        %967 = vset.pattern.permute.xlu0 0
        %968 = vperm.xlu0 %967, %v934
        %v969 = vpop.permute.xlu0 %968
        %972 = vset.pattern.permute.xlu0 0
        %973 = vperm.xlu0 %972, %v935
        %v974 = vpop.permute.xlu0 %973
        %v976 = vmul.f32 %v912, %v939
        %v977 = vmul.f32 %v913, %v944
        %v978 = vmul.f32 %v914, %v949
        %v979 = vmul.f32 %v915, %v954
        %v980 = vmul.f32 %v916, %v959
        %v981 = vmul.f32 %v917, %v964
        %v982 = vmul.f32 %v918, %v969
        %v983 = vmul.f32 %v919, %v974
        %v984 = vpack.c.bf16 %v977, %v976
        %v985 = vpack.c.bf16 %v979, %v978
        %v986 = vpack.c.bf16 %v981, %v980
        %v987 = vpack.c.bf16 %v983, %v982
        %v992 = vunpack.c.l.b16 %v984
        %v993 = vunpack.c.h.b16 %v984
        %v994 = vunpack.c.l.b16 %v985
        %v995 = vunpack.c.h.b16 %v985
        %v996 = vunpack.c.l.b16 %v986
        %v997 = vunpack.c.h.b16 %v986
        %v998 = vunpack.c.l.b16 %v987
        %v999 = vunpack.c.h.b16 %v987
        %v1000 = vpack.c.b16 %v992, %v992
        %v1001 = vpack.c.b16 %v993, %v993
        %v1002 = vpack.c.b16 %v994, %v994
        %v1003 = vpack.c.b16 %v995, %v995
        %v1004 = vpack.c.b16 %v996, %v996
        %v1005 = vpack.c.b16 %v997, %v997
        %v1006 = vpack.c.b16 %v998, %v998
        %v1007 = vpack.c.b16 %v999, %v999
        %vm1016 = vcmask 60416
        %1017 = vst.msk [vmem:[%s287] sm:$0xf] %vm1016, %v1000
        %1018 = vst.msk [vmem:[%s287 + $0x4] sm:$0xf] %vm1016, %v1001
        %1019 = vst.msk [vmem:[%s287 + $0x8] sm:$0xf] %vm1016, %v1002
        %1020 = vst.msk [vmem:[%s287 + $0xc] sm:$0xf] %vm1016, %v1003
        %1021 = vst.msk [vmem:[%s287 + $0x10] sm:$0xf] %vm1016, %v1004
        %1022 = vst.msk [vmem:[%s287 + $0x14] sm:$0xf] %vm1016, %v1005
        %1023 = vst.msk [vmem:[%s287 + $0x18] sm:$0xf] %vm1016, %v1006
        %1024 = vst.msk [vmem:[%s287 + $0x1c] sm:$0xf] %vm1016, %v1007
      $region40: #{resnet_base_oc_forward.10} parent=31 // pred_fallthru
        _
      %s1025 = smul.u32 8, %s20
      %p1026 = scmp.lt.s32.totalorder %s19, 1
      %s1027 = scalar_select %p1026, %s19, 1
      %p1028 = scmp.lt.s32.totalorder %s1025, 7
      %s1029 = scalar_select %p1028, %s1025, 7
      %s1030 = smul.addr %s1027, 8
      %s1031 = sadd.s32 %s1029, %s1030
      %s1032 = smul.addr %s1031, 4
      %s1033 = scalar_lea.vmem %s3, %s1032
      // Predicated region
      $region41: #{resnet_base_oc_forward.10} parent=31 // pred_check
        %p1034 = pneg %p137
      $region42: #{resnet_base_oc_forward.10} parent=31 // pred_check_branch
        %1036 = sbr.rel (%p1034) target = $region44
      $region43: #{resnet_base_oc_forward.10} parent=31 // pred_region
        %s1037 = smul.u32 8, %s20
      $region44: #{resnet_base_oc_forward.10} parent=31 // pred_fallthru
        _
    $region32: #{resnet_base_oc_forward.10} parent=5 // pred_fallthru
      _
    %p1038 = scmp.le.s32.totalorder 2, %s9
    // Predicated region
    $region45: #{resnet_base_oc_forward.10} parent=5 // pred_check
      %p1039 = pneg %p1038
    $region46: #{resnet_base_oc_forward.10} parent=5 // pred_check_branch
      %1041 = sbr.rel (%p1039) target = $region48
    $region47: #{resnet_base_oc_forward.10} parent=5 // pred_region
      %s1042 = ssub.s32 %s9, 2
      // Predicated region
      $region49: #{resnet_base_oc_forward.10} parent=47 // pred_check
        %p1043 = pneg %p143
      $region50: #{resnet_base_oc_forward.10} parent=47 // pred_check_branch
        %1045 = sbr.rel (%p1043) target = $region52
      $region51: #{resnet_base_oc_forward.10} parent=47 // pred_region
        %s1046 = smul.u32 8, %s23
        %p1047 = scmp.lt.s32.totalorder %s22, 1
        %s1048 = scalar_select %p1047, %s22, 1
        %p1049 = scmp.lt.s32.totalorder %s1046, 7
        %s1050 = scalar_select %p1049, %s1046, 7
        %s1051 = smul.addr %s1048, 8
        %s1052 = sadd.s32 %s1050, %s1051
        %s1053 = smul.addr %s1052, 4
        %s1054 = scalar_lea.vmem %s3, %s1053
      $region52: #{resnet_base_oc_forward.10} parent=47 // pred_fallthru
        _
    $region48: #{resnet_base_oc_forward.10} parent=5 // pred_fallthru
      _
  $region6: #{resnet_base_oc_forward.10} parent=0 // loop_footer
    %s13 = sadd.s32 1, %s9
  $region7: #{resnet_base_oc_forward.10} parent=0 // loop_footer_branch
    %8 = sbr.rel target = $region3
  $region8: #{resnet_base_oc_forward.10} parent=0 // loop_exit
    _

// kernel: resnet_base_oc_forward.8
$region0: #{resnet_base_oc_forward.8}
  #allocation0 [shape = 'u32[]', space=smem, size = 0x4, offset = 0x4, fixed_abs, tag = 'smem constant byte address 0x4 - core index']
  #allocation1 [shape = 'u32[144,128]{1,0:T(1,128)}', space=vmem, size = 0x12000, scoped, tag = 'internal scratch']
  %s0 = inlined_call_operand.vmem [shape: bf16[2,10,10,128], index: 0, kind: input, shape index: {}]
  %s1 = inlined_call_operand.vmem [shape: bf16[1152,128], index: 1, kind: input, shape index: {}]
  %s2 = inlined_call_operand.vmem [shape: f32[1,128], index: 2, kind: input, shape index: {}]
  %s3 = inlined_call_operand.vmem [shape: bf16[2,8,8,128], index: 3, kind: output, shape index: {}]
  %s4 = sld [smem:[#allocation0]]
  $region45: #{resnet_base_oc_forward.8} parent=0
    _
  %s6 = ssub.s32 1, %s4
  %s7 = scalar_select 0, %s6, %s4
  loop: start=0, step=1, limit=4
  $region2: #{resnet_base_oc_forward.8} parent=0 // loop_pre_header
    _
  $region3: #{resnet_base_oc_forward.8} parent=0 // loop_header
    %s9 = sphi 0, %s13
    %p10 = scmp.ge.s32.totalorder %s9, 4
    %s19 = sphi 0, %s21
    %s22 = sphi 0, %s19
    %s23 = sphi 0, %s22
    %s39 = sphi 0, %s23
    %s43 = sphi 0, %s43
    %s45 = sphi 0, %s43
    %s46 = sphi 0, %s45
    %s60 = sphi 0, %s46
    %s64 = sphi 0, %s64
    %s66 = sphi 0, %s64
    %s67 = sphi 0, %s66
    %s81 = sphi 0, %s67
    %s87 = sphi 0, %s89
    %s90 = sphi 0, %s87
    %s91 = sphi 0, %s90
    %s107 = sphi 0, %s91
  $region4: #{resnet_base_oc_forward.8} parent=0 // loop_header_branch
    %12 = sbr.rel (%p10) target = $region8
  $region5: #{resnet_base_oc_forward.8} parent=0 // loop_body
    %s14 = ssub.s32 %s9, 1
    %s15 = ssub.s32 %s9, 2
    %s16 = sadd.s32 %s9, 1
    %s17 = ssub.s32 %s9, %s16
    %p18 = scmp.eq.s32.totalorder %s17, 0
    %s20 = sadd.s32 %s19, 1
    %s21 = scalar_select %p18, %s19, %s20
    %p24 = pneg %p18
    %p25 = scmp.eq.s32.totalorder %s9, 1
    %p26 = por %p24, %p25
    %p27 = scmp.ne.s32.totalorder %s19, %s22
    %p28 = scmp.eq.s32.totalorder %s9, 0
    %p29 = por %p27, %p28
    %p30 = scmp.ne.s32.totalorder %s19, %s22
    %p31 = scmp.eq.s32.totalorder %s14, 1
    %p32 = por %p30, %p31
    %p33 = scmp.ne.s32.totalorder %s22, %s23
    %p34 = scmp.eq.s32.totalorder %s14, 0
    %p35 = por %p33, %p34
    %p36 = scmp.ne.s32.totalorder %s22, %s23
    %p37 = scmp.eq.s32.totalorder %s15, 1
    %p38 = por %p36, %p37
    %p40 = scmp.ne.s32.totalorder %s23, %s39
    %p41 = scmp.eq.s32.totalorder %s15, 0
    %p42 = por %p40, %p41
    %s44 = sadd.s32 %s43, 1
    %p47 = scmp.eq.s32.totalorder %s9, 1
    %p48 = scmp.ne.s32.totalorder %s43, %s45
    %p49 = scmp.eq.s32.totalorder %s9, 0
    %p50 = por %p48, %p49
    %p51 = scmp.ne.s32.totalorder %s43, %s45
    %p52 = scmp.eq.s32.totalorder %s14, 1
    %p53 = por %p51, %p52
    %p54 = scmp.ne.s32.totalorder %s45, %s46
    %p55 = scmp.eq.s32.totalorder %s14, 0
    %p56 = por %p54, %p55
    %p57 = scmp.ne.s32.totalorder %s45, %s46
    %p58 = scmp.eq.s32.totalorder %s15, 1
    %p59 = por %p57, %p58
    %p61 = scmp.ne.s32.totalorder %s46, %s60
    %p62 = scmp.eq.s32.totalorder %s15, 0
    %p63 = por %p61, %p62
    %s65 = sadd.s32 %s64, 1
    %p68 = scmp.eq.s32.totalorder %s9, 1
    %p69 = scmp.ne.s32.totalorder %s64, %s66
    %p70 = scmp.eq.s32.totalorder %s9, 0
    %p71 = por %p69, %p70
    %p72 = scmp.ne.s32.totalorder %s64, %s66
    %p73 = scmp.eq.s32.totalorder %s14, 1
    %p74 = por %p72, %p73
    %p75 = scmp.ne.s32.totalorder %s66, %s67
    %p76 = scmp.eq.s32.totalorder %s14, 0
    %p77 = por %p75, %p76
    %p78 = scmp.ne.s32.totalorder %s66, %s67
    %p79 = scmp.eq.s32.totalorder %s15, 1
    %p80 = por %p78, %p79
    %p82 = scmp.ne.s32.totalorder %s67, %s81
    %p83 = scmp.eq.s32.totalorder %s15, 0
    %p84 = por %p82, %p83
    %s85 = ssub.s32 %s9, %s16
    %p86 = scmp.eq.s32.totalorder %s85, 0
    %s88 = sadd.s32 %s87, 1
    %s89 = scalar_select %p86, %s87, %s88
    %p92 = pneg %p86
    %p93 = scmp.eq.s32.totalorder %s9, 1
    %p94 = por %p92, %p93
    %p95 = scmp.ne.s32.totalorder %s87, %s90
    %p96 = scmp.eq.s32.totalorder %s9, 0
    %p97 = por %p95, %p96
    %p98 = scmp.ne.s32.totalorder %s87, %s90
    %p99 = scmp.eq.s32.totalorder %s14, 1
    %p100 = por %p98, %p99
    %p101 = scmp.ne.s32.totalorder %s90, %s91
    %p102 = scmp.eq.s32.totalorder %s14, 0
    %p103 = por %p101, %p102
    %p104 = scmp.ne.s32.totalorder %s90, %s91
    %p105 = scmp.eq.s32.totalorder %s15, 1
    %p106 = por %p104, %p105
    %p108 = scmp.ne.s32.totalorder %s91, %s107
    %p109 = scmp.eq.s32.totalorder %s15, 0
    %p110 = por %p108, %p109
    %p111 = scmp.le.s32.totalorder 1, %s9
    %p112 = scmp.lt.s32.totalorder %s9, 3
    %p113 = pnand %p111, %p112
    %p114 = pneg %p113
    // Predicated region
    $region9: #{resnet_base_oc_forward.8} parent=5 // pred_check
      _
    $region10: #{resnet_base_oc_forward.8} parent=5 // pred_check_branch
      %116 = sbr.rel (%p113) target = $region12
    $region11: #{resnet_base_oc_forward.8} parent=5 // pred_region
      %s117 = ssub.s32 %s9, 1
      // Predicated region
      $region13: #{resnet_base_oc_forward.8} parent=11 // pred_check
        %p118 = pneg %p56
      $region14: #{resnet_base_oc_forward.8} parent=11 // pred_check_branch
        %120 = sbr.rel (%p118) target = $region16
      $region15: #{resnet_base_oc_forward.8} parent=11 // pred_region
        _
      $region16: #{resnet_base_oc_forward.8} parent=11 // pred_fallthru
        _
      // Predicated region
      $region17: #{resnet_base_oc_forward.8} parent=11 // pred_check
        %p121 = pneg %p77
      $region18: #{resnet_base_oc_forward.8} parent=11 // pred_check_branch
        %123 = sbr.rel (%p121) target = $region20
      $region19: #{resnet_base_oc_forward.8} parent=11 // pred_region
        _
      $region20: #{resnet_base_oc_forward.8} parent=11 // pred_fallthru
        _
    $region12: #{resnet_base_oc_forward.8} parent=5 // pred_fallthru
      _
    %p124 = scmp.lt.s32.totalorder %s9, 2
    // Predicated region
    $region21: #{resnet_base_oc_forward.8} parent=5 // pred_check
      %p125 = pneg %p124
    $region22: #{resnet_base_oc_forward.8} parent=5 // pred_check_branch
      %127 = sbr.rel (%p125) target = $region24
    $region23: #{resnet_base_oc_forward.8} parent=5 // pred_region
      // Predicated region
      $region25: #{resnet_base_oc_forward.8} parent=23 // pred_check
        %p128 = pneg %p29
      $region26: #{resnet_base_oc_forward.8} parent=23 // pred_check_branch
        %130 = sbr.rel (%p128) target = $region28
      $region27: #{resnet_base_oc_forward.8} parent=23 // pred_region
        %p131 = scmp.lt.s32.totalorder %s9, 1
        %s132 = scalar_select %p131, %s9, 1
        %s133 = smul.addr %s132, 20
        %s134 = smul.addr %s133, 4
        %s135 = scalar_lea.vmem %s0, %s134
      $region28: #{resnet_base_oc_forward.8} parent=23 // pred_fallthru
        _
    $region24: #{resnet_base_oc_forward.8} parent=5 // pred_fallthru
      _
    %p136 = scmp.le.s32.totalorder 1, %s9
    %p137 = scmp.lt.s32.totalorder %s9, 3
    %p138 = pnand %p136, %p137
    %p139 = pneg %p138
    // Predicated region
    $region29: #{resnet_base_oc_forward.8} parent=5 // pred_check
      _
    $region30: #{resnet_base_oc_forward.8} parent=5 // pred_check_branch
      %141 = sbr.rel (%p138) target = $region32
    $region31: #{resnet_base_oc_forward.8} parent=5 // pred_region
      %s142 = ssub.s32 %s9, 1
      %p143 = scmp.lt.s32.totalorder %s14, 1
      %s144 = scalar_select %p143, %s14, 1
      %s145 = smul.addr %s144, 20
      %s146 = smul.addr %s145, 4
      %s147 = scalar_lea.vmem %s0, %s146
      %p148 = pneg %p35
      %p149 = pneg %p32
      %p150 = pneg %p56
      %p151 = pneg %p53
      %p152 = pneg %p77
      %p153 = pneg %p74
      %p154 = pneg %p103
      %p155 = pneg %p100
      %p156 = scmp.lt.s32.totalorder %s14, 1
      %s157 = scalar_select %p156, %s14, 1
      %s158 = smul.addr %s157, 8
      %s159 = smul.addr %s158, 4
      %s160 = scalar_lea.vmem %s3, %s159
      %p161 = scmp.lt.s32.totalorder %s14, 1
      %s162 = scalar_select %p161, %s14, 1
      %s163 = smul.addr %s162, 20
      %s164 = smul.addr %s163, 4
      %s165 = scalar_lea.vmem %s0, %s164
      %p166 = scmp.lt.s32.totalorder %s14, 1
      %s167 = scalar_select %p166, %s14, 1
      %s168 = smul.addr %s167, 8
      %s169 = smul.addr %s168, 4
      %s170 = scalar_lea.vmem %s3, %s169
      %v172 = vld [vmem:[%s165] sm:$0xf]
      %v173 = vld [vmem:[%s165 + $0x4] sm:$0x1]
      %v174 = vld [vmem:[%s165 + $0x8] sm:$0xf]
      %v175 = vld [vmem:[%s165 + $0xc] sm:$0x1]
      %v176 = vld [vmem:[%s165 + $0x10] sm:$0xf]
      %v177 = vld [vmem:[%s165 + $0x14] sm:$0x1]
      %v178 = vld [vmem:[%s165 + $0x18] sm:$0xf]
      %v179 = vld [vmem:[%s165 + $0x1c] sm:$0x1]
      %v180 = vld [vmem:[%s165 + $0x20] sm:$0xf]
      %v181 = vld [vmem:[%s165 + $0x24] sm:$0x1]
      %v182 = vld [vmem:[%s165 + $0x28] sm:$0xf]
      %v183 = vld [vmem:[%s165 + $0x2c] sm:$0x1]
      %v184 = vld [vmem:[%s165 + $0x30] sm:$0xf]
      %v185 = vld [vmem:[%s165 + $0x34] sm:$0x1]
      %v186 = vld [vmem:[%s165 + $0x38] sm:$0xf]
      %v187 = vld [vmem:[%s165 + $0x3c] sm:$0x1]
      %v188 = vld [vmem:[%s165 + $0x40] sm:$0xf]
      %v189 = vld [vmem:[%s165 + $0x44] sm:$0x1]
      %v190 = vld [vmem:[%s165 + $0x48] sm:$0xf]
      %v191 = vld [vmem:[%s165 + $0x4c] sm:$0x1]
      %v208 = vunpack.c.l.b16 %v172
      %v209 = vunpack.c.l.b16 %v173
      %v210 = vunpack.c.l.b16 %v174
      %v211 = vunpack.c.l.b16 %v175
      %v212 = vunpack.c.l.b16 %v176
      %v213 = vunpack.c.l.b16 %v177
      %v214 = vunpack.c.l.b16 %v178
      %v215 = vunpack.c.l.b16 %v179
      %v216 = vunpack.c.l.b16 %v180
      %v217 = vunpack.c.l.b16 %v181
      %v218 = vunpack.c.l.b16 %v182
      %v219 = vunpack.c.l.b16 %v183
      %v220 = vunpack.c.l.b16 %v184
      %v221 = vunpack.c.l.b16 %v185
      %v222 = vunpack.c.l.b16 %v186
      %v223 = vunpack.c.l.b16 %v187
      %v224 = vpack.c.b16 %v209, %v208
      %v225 = vpack.c.b16 %v211, %v210
      %v226 = vpack.c.b16 %v213, %v212
      %v227 = vpack.c.b16 %v215, %v214
      %v228 = vpack.c.b16 %v217, %v216
      %v229 = vpack.c.b16 %v219, %v218
      %v230 = vpack.c.b16 %v221, %v220
      %v231 = vpack.c.b16 %v223, %v222
      %v233 = vshrl.u32 %v224, 16
      %v235 = vshll.u32 %v224, 16
      %v237 = vrot.slane %v235, 1
      %v238 = vor.u32 %v233, %v237
      %v240 = vshrl.u32 %v225, 16
      %v242 = vshll.u32 %v225, 16
      %v244 = vrot.slane %v242, 1
      %v245 = vor.u32 %v240, %v244
      %v247 = vshrl.u32 %v226, 16
      %v249 = vshll.u32 %v226, 16
      %v251 = vrot.slane %v249, 1
      %v252 = vor.u32 %v247, %v251
      %v254 = vshrl.u32 %v227, 16
      %v256 = vshll.u32 %v227, 16
      %v258 = vrot.slane %v256, 1
      %v259 = vor.u32 %v254, %v258
      %v261 = vshrl.u32 %v228, 16
      %v263 = vshll.u32 %v228, 16
      %v265 = vrot.slane %v263, 1
      %v266 = vor.u32 %v261, %v265
      %v268 = vshrl.u32 %v229, 16
      %v270 = vshll.u32 %v229, 16
      %v272 = vrot.slane %v270, 1
      %v273 = vor.u32 %v268, %v272
      %v275 = vshrl.u32 %v230, 16
      %v277 = vshll.u32 %v230, 16
      %v279 = vrot.slane %v277, 1
      %v280 = vor.u32 %v275, %v279
      %v282 = vshrl.u32 %v231, 16
      %v284 = vshll.u32 %v231, 16
      %v286 = vrot.slane %v284, 1
      %v287 = vor.u32 %v282, %v286
      %v288 = vrot.slane %v224, 1
      %v289 = vrot.slane %v225, 1
      %v290 = vrot.slane %v226, 1
      %v291 = vrot.slane %v227, 1
      %v292 = vrot.slane %v228, 1
      %v293 = vrot.slane %v229, 1
      %v294 = vrot.slane %v230, 1
      %v295 = vrot.slane %v231, 1
      %v298 = vunpack.c.l.b16 %v188
      %v299 = vunpack.c.l.b16 %v189
      %v300 = vpack.c.b16 %v299, %v298
      %v302 = vshrl.u32 %v300, 16
      %v304 = vshll.u32 %v300, 16
      %v306 = vrot.slane %v304, 1
      %v307 = vor.u32 %v302, %v306
      %v308 = vrot.slane %v300, 1
      %v311 = vunpack.c.l.b16 %v190
      %v312 = vunpack.c.l.b16 %v191
      %v313 = vpack.c.b16 %v312, %v311
      %v315 = vshrl.u32 %v313, 16
      %v317 = vshll.u32 %v313, 16
      %v319 = vrot.slane %v317, 1
      %v320 = vor.u32 %v315, %v319
      %v321 = vrot.slane %v313, 1
      %v322 = vunpack.c.l.b16 %v238
      %v323 = vunpack.c.l.b16 %v288
      %v324 = vunpack.c.l.b16 %v245
      %v325 = vunpack.c.l.b16 %v289
      %v326 = vunpack.c.l.b16 %v252
      %v327 = vunpack.c.l.b16 %v290
      %v328 = vunpack.c.l.b16 %v259
      %v329 = vunpack.c.l.b16 %v291
      %v330 = vunpack.c.l.b16 %v266
      %v331 = vunpack.c.l.b16 %v292
      %v332 = vunpack.c.l.b16 %v273
      %v333 = vunpack.c.l.b16 %v293
      %v334 = vunpack.c.l.b16 %v280
      %v335 = vunpack.c.l.b16 %v294
      %v336 = vunpack.c.l.b16 %v287
      %v337 = vunpack.c.l.b16 %v295
      %v338 = vunpack.c.l.b16 %v307
      %v339 = vunpack.c.l.b16 %v308
      %v340 = vunpack.c.l.b16 %v320
      %v341 = vunpack.c.l.b16 %v321
      %v342 = vld [vmem:[%s1] sm:$0xf]
      %v343 = vld [vmem:[%s1 + $0x4] sm:$0xf]
      %v344 = vld [vmem:[%s1 + $0x8] sm:$0xf]
      %v345 = vld [vmem:[%s1 + $0xc] sm:$0xf]
      %v346 = vld [vmem:[%s1 + $0x10] sm:$0xf]
      %v347 = vld [vmem:[%s1 + $0x14] sm:$0xf]
      %v348 = vld [vmem:[%s1 + $0x18] sm:$0xf]
      %v349 = vld [vmem:[%s1 + $0x1c] sm:$0xf]
      %v350 = vld [vmem:[%s1 + $0x20] sm:$0xf]
      %v351 = vld [vmem:[%s1 + $0x24] sm:$0xf]
      %v352 = vld [vmem:[%s1 + $0x28] sm:$0xf]
      %v353 = vld [vmem:[%s1 + $0x2c] sm:$0xf]
      %v354 = vld [vmem:[%s1 + $0x30] sm:$0xf]
      %v355 = vld [vmem:[%s1 + $0x34] sm:$0xf]
      %v356 = vld [vmem:[%s1 + $0x38] sm:$0xf]
      %v357 = vld [vmem:[%s1 + $0x3c] sm:$0xf]
      %v358 = vld [vmem:[%s1 + $0x40] sm:$0xf]
      %v359 = vld [vmem:[%s1 + $0x44] sm:$0xf]
      %v360 = vld [vmem:[%s1 + $0x48] sm:$0xf]
      %v361 = vld [vmem:[%s1 + $0x4c] sm:$0xf]
      %v362 = vld [vmem:[%s1 + $0x50] sm:$0xf]
      %v363 = vld [vmem:[%s1 + $0x54] sm:$0xf]
      %v364 = vld [vmem:[%s1 + $0x58] sm:$0xf]
      %v365 = vld [vmem:[%s1 + $0x5c] sm:$0xf]
      %v366 = vld [vmem:[%s1 + $0x60] sm:$0xf]
      %v367 = vld [vmem:[%s1 + $0x64] sm:$0xf]
      %v368 = vld [vmem:[%s1 + $0x68] sm:$0xf]
      %v369 = vld [vmem:[%s1 + $0x6c] sm:$0xf]
      %v370 = vld [vmem:[%s1 + $0x70] sm:$0xf]
      %v371 = vld [vmem:[%s1 + $0x74] sm:$0xf]
      %v372 = vld [vmem:[%s1 + $0x78] sm:$0xf]
      %v373 = vld [vmem:[%s1 + $0x7c] sm:$0xf]
      %v374 = vld [vmem:[%s1 + $0x80] sm:$0xf]
      %v375 = vld [vmem:[%s1 + $0x84] sm:$0xf]
      %v376 = vld [vmem:[%s1 + $0x88] sm:$0xf]
      %v377 = vld [vmem:[%s1 + $0x8c] sm:$0xf]
      %v378 = vld [vmem:[%s1 + $0x90] sm:$0xf]
      %v379 = vld [vmem:[%s1 + $0x94] sm:$0xf]
      %v380 = vld [vmem:[%s1 + $0x98] sm:$0xf]
      %v381 = vld [vmem:[%s1 + $0x9c] sm:$0xf]
      %v382 = vld [vmem:[%s1 + $0xa0] sm:$0xf]
      %v383 = vld [vmem:[%s1 + $0xa4] sm:$0xf]
      %v384 = vld [vmem:[%s1 + $0xa8] sm:$0xf]
      %v385 = vld [vmem:[%s1 + $0xac] sm:$0xf]
      %v386 = vld [vmem:[%s1 + $0xb0] sm:$0xf]
      %v387 = vld [vmem:[%s1 + $0xb4] sm:$0xf]
      %v388 = vld [vmem:[%s1 + $0xb8] sm:$0xf]
      %v389 = vld [vmem:[%s1 + $0xbc] sm:$0xf]
      %v390 = vld [vmem:[%s1 + $0xc0] sm:$0xf]
      %v391 = vld [vmem:[%s1 + $0xc4] sm:$0xf]
      %v392 = vld [vmem:[%s1 + $0xc8] sm:$0xf]
      %v393 = vld [vmem:[%s1 + $0xcc] sm:$0xf]
      %v394 = vld [vmem:[%s1 + $0xd0] sm:$0xf]
      %v395 = vld [vmem:[%s1 + $0xd4] sm:$0xf]
      %v396 = vld [vmem:[%s1 + $0xd8] sm:$0xf]
      %v397 = vld [vmem:[%s1 + $0xdc] sm:$0xf]
      %v398 = vld [vmem:[%s1 + $0xe0] sm:$0xf]
      %v399 = vld [vmem:[%s1 + $0xe4] sm:$0xf]
      %v400 = vld [vmem:[%s1 + $0xe8] sm:$0xf]
      %v401 = vld [vmem:[%s1 + $0xec] sm:$0xf]
      %v402 = vld [vmem:[%s1 + $0xf0] sm:$0xf]
      %v403 = vld [vmem:[%s1 + $0xf4] sm:$0xf]
      %v404 = vld [vmem:[%s1 + $0xf8] sm:$0xf]
      %v405 = vld [vmem:[%s1 + $0xfc] sm:$0xf]
      %v406 = vld [vmem:[%s1 + $0x100] sm:$0xf]
      %v407 = vld [vmem:[%s1 + $0x104] sm:$0xf]
      %v408 = vld [vmem:[%s1 + $0x108] sm:$0xf]
      %v409 = vld [vmem:[%s1 + $0x10c] sm:$0xf]
      %v410 = vld [vmem:[%s1 + $0x110] sm:$0xf]
      %v411 = vld [vmem:[%s1 + $0x114] sm:$0xf]
      %v412 = vld [vmem:[%s1 + $0x118] sm:$0xf]
      %v413 = vld [vmem:[%s1 + $0x11c] sm:$0xf]
      %v414 = vld [vmem:[%s1 + $0x120] sm:$0xf]
      %v415 = vld [vmem:[%s1 + $0x124] sm:$0xf]
      %v416 = vld [vmem:[%s1 + $0x128] sm:$0xf]
      %v417 = vld [vmem:[%s1 + $0x12c] sm:$0xf]
      %v418 = vld [vmem:[%s1 + $0x130] sm:$0xf]
      %v419 = vld [vmem:[%s1 + $0x134] sm:$0xf]
      %v420 = vld [vmem:[%s1 + $0x138] sm:$0xf]
      %v421 = vld [vmem:[%s1 + $0x13c] sm:$0xf]
      %v422 = vld [vmem:[%s1 + $0x140] sm:$0xf]
      %v423 = vld [vmem:[%s1 + $0x144] sm:$0xf]
      %v424 = vld [vmem:[%s1 + $0x148] sm:$0xf]
      %v425 = vld [vmem:[%s1 + $0x14c] sm:$0xf]
      %v426 = vld [vmem:[%s1 + $0x150] sm:$0xf]
      %v427 = vld [vmem:[%s1 + $0x154] sm:$0xf]
      %v428 = vld [vmem:[%s1 + $0x158] sm:$0xf]
      %v429 = vld [vmem:[%s1 + $0x15c] sm:$0xf]
      %v430 = vld [vmem:[%s1 + $0x160] sm:$0xf]
      %v431 = vld [vmem:[%s1 + $0x164] sm:$0xf]
      %v432 = vld [vmem:[%s1 + $0x168] sm:$0xf]
      %v433 = vld [vmem:[%s1 + $0x16c] sm:$0xf]
      %v434 = vld [vmem:[%s1 + $0x170] sm:$0xf]
      %v435 = vld [vmem:[%s1 + $0x174] sm:$0xf]
      %v436 = vld [vmem:[%s1 + $0x178] sm:$0xf]
      %v437 = vld [vmem:[%s1 + $0x17c] sm:$0xf]
      %v438 = vld [vmem:[%s1 + $0x180] sm:$0xf]
      %v439 = vld [vmem:[%s1 + $0x184] sm:$0xf]
      %v440 = vld [vmem:[%s1 + $0x188] sm:$0xf]
      %v441 = vld [vmem:[%s1 + $0x18c] sm:$0xf]
      %v442 = vld [vmem:[%s1 + $0x190] sm:$0xf]
      %v443 = vld [vmem:[%s1 + $0x194] sm:$0xf]
      %v444 = vld [vmem:[%s1 + $0x198] sm:$0xf]
      %v445 = vld [vmem:[%s1 + $0x19c] sm:$0xf]
      %v446 = vld [vmem:[%s1 + $0x1a0] sm:$0xf]
      %v447 = vld [vmem:[%s1 + $0x1a4] sm:$0xf]
      %v448 = vld [vmem:[%s1 + $0x1a8] sm:$0xf]
      %v449 = vld [vmem:[%s1 + $0x1ac] sm:$0xf]
      %v450 = vld [vmem:[%s1 + $0x1b0] sm:$0xf]
      %v451 = vld [vmem:[%s1 + $0x1b4] sm:$0xf]
      %v452 = vld [vmem:[%s1 + $0x1b8] sm:$0xf]
      %v453 = vld [vmem:[%s1 + $0x1bc] sm:$0xf]
      %v454 = vld [vmem:[%s1 + $0x1c0] sm:$0xf]
      %v455 = vld [vmem:[%s1 + $0x1c4] sm:$0xf]
      %v456 = vld [vmem:[%s1 + $0x1c8] sm:$0xf]
      %v457 = vld [vmem:[%s1 + $0x1cc] sm:$0xf]
      %v458 = vld [vmem:[%s1 + $0x1d0] sm:$0xf]
      %v459 = vld [vmem:[%s1 + $0x1d4] sm:$0xf]
      %v460 = vld [vmem:[%s1 + $0x1d8] sm:$0xf]
      %v461 = vld [vmem:[%s1 + $0x1dc] sm:$0xf]
      %v462 = vld [vmem:[%s1 + $0x1e0] sm:$0xf]
      %v463 = vld [vmem:[%s1 + $0x1e4] sm:$0xf]
      %v464 = vld [vmem:[%s1 + $0x1e8] sm:$0xf]
      %v465 = vld [vmem:[%s1 + $0x1ec] sm:$0xf]
      %v466 = vld [vmem:[%s1 + $0x1f0] sm:$0xf]
      %v467 = vld [vmem:[%s1 + $0x1f4] sm:$0xf]
      %v468 = vld [vmem:[%s1 + $0x1f8] sm:$0xf]
      %v469 = vld [vmem:[%s1 + $0x1fc] sm:$0xf]
      %v470 = vld [vmem:[%s1 + $0x200] sm:$0xf]
      %v471 = vld [vmem:[%s1 + $0x204] sm:$0xf]
      %v472 = vld [vmem:[%s1 + $0x208] sm:$0xf]
      %v473 = vld [vmem:[%s1 + $0x20c] sm:$0xf]
      %v474 = vld [vmem:[%s1 + $0x210] sm:$0xf]
      %v475 = vld [vmem:[%s1 + $0x214] sm:$0xf]
      %v476 = vld [vmem:[%s1 + $0x218] sm:$0xf]
      %v477 = vld [vmem:[%s1 + $0x21c] sm:$0xf]
      %v478 = vld [vmem:[%s1 + $0x220] sm:$0xf]
      %v479 = vld [vmem:[%s1 + $0x224] sm:$0xf]
      %v480 = vld [vmem:[%s1 + $0x228] sm:$0xf]
      %v481 = vld [vmem:[%s1 + $0x22c] sm:$0xf]
      %v482 = vld [vmem:[%s1 + $0x230] sm:$0xf]
      %v483 = vld [vmem:[%s1 + $0x234] sm:$0xf]
      %v484 = vld [vmem:[%s1 + $0x238] sm:$0xf]
      %v485 = vld [vmem:[%s1 + $0x23c] sm:$0xf]
      %v486 = vld [vmem:[%s2] sm:$0x1]
      %v488 = vlaneseq
      %v489 = vshrl.u32 %v488, 7
      %v490 = vsub.s32 0, %v489
      %v491 = vrot.slane %v486, %v490
      %v493 = vpack.c.b16 %v210, %v208
      %v494 = vpack.c.b16 %v324, %v322
      %v495 = vpack.c.b16 %v325, %v323
      %v496 = vpack.c.b16 %v212, %v210
      %v497 = vpack.c.b16 %v326, %v324
      %v498 = vpack.c.b16 %v327, %v325
      %v499 = vpack.c.b16 %v214, %v212
      %v500 = vpack.c.b16 %v328, %v326
      %v501 = vpack.c.b16 %v329, %v327
      %v502 = vpack.c.b16 %v216, %v214
      %v503 = vpack.c.b16 %v330, %v328
      %v504 = vpack.c.b16 %v331, %v329
      %v505 = vpack.c.b16 %v218, %v216
      %v506 = vpack.c.b16 %v332, %v330
      %v507 = vpack.c.b16 %v333, %v331
      %v508 = vpack.c.b16 %v220, %v218
      %v509 = vpack.c.b16 %v334, %v332
      %v510 = vpack.c.b16 %v335, %v333
      %v511 = vpack.c.b16 %v222, %v220
      %v512 = vpack.c.b16 %v336, %v334
      %v513 = vpack.c.b16 %v337, %v335
      %v514 = vpack.c.b16 %v298, %v222
      %v515 = vpack.c.b16 %v338, %v336
      %v516 = vpack.c.b16 %v339, %v337
      %v517 = vpack.c.b16 %v311, %v298
      %v518 = vpack.c.b16 %v340, %v338
      %v519 = vpack.c.b16 %v341, %v339
      %v691 = vunpack.c.l.b16 %v342
      %v692 = vunpack.c.l.b16 %v343
      %v693 = vunpack.c.l.b16 %v344
      %v694 = vunpack.c.l.b16 %v345
      %v695 = vunpack.c.l.b16 %v346
      %v696 = vunpack.c.l.b16 %v347
      %v697 = vunpack.c.l.b16 %v348
      %v698 = vunpack.c.l.b16 %v349
      %v699 = vunpack.c.l.b16 %v350
      %v700 = vunpack.c.l.b16 %v351
      %v701 = vunpack.c.l.b16 %v352
      %v702 = vunpack.c.l.b16 %v353
      %v703 = vunpack.c.l.b16 %v354
      %v704 = vunpack.c.l.b16 %v355
      %v705 = vunpack.c.l.b16 %v356
      %v706 = vunpack.c.l.b16 %v357
      %v707 = vunpack.c.l.b16 %v358
      %v708 = vunpack.c.l.b16 %v359
      %v709 = vunpack.c.l.b16 %v360
      %v710 = vunpack.c.l.b16 %v361
      %v711 = vunpack.c.l.b16 %v362
      %v712 = vunpack.c.l.b16 %v363
      %v713 = vunpack.c.l.b16 %v364
      %v714 = vunpack.c.l.b16 %v365
      %v715 = vunpack.c.l.b16 %v366
      %v716 = vunpack.c.l.b16 %v367
      %v717 = vunpack.c.l.b16 %v368
      %v718 = vunpack.c.l.b16 %v369
      %v719 = vunpack.c.l.b16 %v370
      %v720 = vunpack.c.l.b16 %v371
      %v721 = vunpack.c.l.b16 %v372
      %v722 = vunpack.c.l.b16 %v373
      %v723 = vunpack.c.l.b16 %v374
      %v724 = vunpack.c.l.b16 %v375
      %v725 = vunpack.c.l.b16 %v376
      %v726 = vunpack.c.l.b16 %v377
      %v727 = vunpack.c.l.b16 %v378
      %v728 = vunpack.c.l.b16 %v379
      %v729 = vunpack.c.l.b16 %v380
      %v730 = vunpack.c.l.b16 %v381
      %v731 = vunpack.c.l.b16 %v382
      %v732 = vunpack.c.l.b16 %v383
      %v733 = vunpack.c.l.b16 %v384
      %v734 = vunpack.c.l.b16 %v385
      %v735 = vunpack.c.l.b16 %v386
      %v736 = vunpack.c.l.b16 %v387
      %v737 = vunpack.c.l.b16 %v388
      %v738 = vunpack.c.l.b16 %v389
      %v739 = vunpack.c.l.b16 %v390
      %v740 = vunpack.c.l.b16 %v391
      %v741 = vunpack.c.l.b16 %v392
      %v742 = vunpack.c.l.b16 %v393
      %v743 = vunpack.c.l.b16 %v394
      %v744 = vunpack.c.l.b16 %v395
      %v745 = vunpack.c.l.b16 %v396
      %v746 = vunpack.c.l.b16 %v397
      %v747 = vunpack.c.l.b16 %v398
      %v748 = vunpack.c.l.b16 %v399
      %v749 = vunpack.c.l.b16 %v400
      %v750 = vunpack.c.l.b16 %v401
      %v751 = vunpack.c.l.b16 %v402
      %v752 = vunpack.c.l.b16 %v403
      %v753 = vunpack.c.l.b16 %v404
      %v754 = vunpack.c.l.b16 %v405
      %v755 = vunpack.c.l.b16 %v406
      %v756 = vunpack.c.l.b16 %v407
      %v757 = vunpack.c.l.b16 %v408
      %v758 = vunpack.c.l.b16 %v409
      %v759 = vunpack.c.l.b16 %v410
      %v760 = vunpack.c.l.b16 %v411
      %v761 = vunpack.c.l.b16 %v412
      %v762 = vunpack.c.l.b16 %v413
      %v763 = vunpack.c.l.b16 %v414
      %v764 = vunpack.c.l.b16 %v415
      %v765 = vunpack.c.l.b16 %v416
      %v766 = vunpack.c.l.b16 %v417
      %v767 = vunpack.c.l.b16 %v418
      %v768 = vunpack.c.l.b16 %v419
      %v769 = vunpack.c.l.b16 %v420
      %v770 = vunpack.c.l.b16 %v421
      %v771 = vunpack.c.l.b16 %v422
      %v772 = vunpack.c.l.b16 %v423
      %v773 = vunpack.c.l.b16 %v424
      %v774 = vunpack.c.l.b16 %v425
      %v775 = vunpack.c.l.b16 %v426
      %v776 = vunpack.c.l.b16 %v427
      %v777 = vunpack.c.l.b16 %v428
      %v778 = vunpack.c.l.b16 %v429
      %v779 = vunpack.c.l.b16 %v430
      %v780 = vunpack.c.l.b16 %v431
      %v781 = vunpack.c.l.b16 %v432
      %v782 = vunpack.c.l.b16 %v433
      %v783 = vunpack.c.l.b16 %v434
      %v784 = vunpack.c.l.b16 %v435
      %v785 = vunpack.c.l.b16 %v436
      %v786 = vunpack.c.l.b16 %v437
      %v787 = vunpack.c.l.b16 %v438
      %v788 = vunpack.c.l.b16 %v439
      %v789 = vunpack.c.l.b16 %v440
      %v790 = vunpack.c.l.b16 %v441
      %v791 = vunpack.c.l.b16 %v442
      %v792 = vunpack.c.l.b16 %v443
      %v793 = vunpack.c.l.b16 %v444
      %v794 = vunpack.c.l.b16 %v445
      %v795 = vunpack.c.l.b16 %v446
      %v796 = vunpack.c.l.b16 %v447
      %v797 = vunpack.c.l.b16 %v448
      %v798 = vunpack.c.l.b16 %v449
      %v799 = vunpack.c.l.b16 %v450
      %v800 = vunpack.c.l.b16 %v451
      %v801 = vunpack.c.l.b16 %v452
      %v802 = vunpack.c.l.b16 %v453
      %v803 = vunpack.c.l.b16 %v454
      %v804 = vunpack.c.l.b16 %v455
      %v805 = vunpack.c.l.b16 %v456
      %v806 = vunpack.c.l.b16 %v457
      %v807 = vunpack.c.l.b16 %v458
      %v808 = vunpack.c.l.b16 %v459
      %v809 = vunpack.c.l.b16 %v460
      %v810 = vunpack.c.l.b16 %v461
      %v811 = vunpack.c.l.b16 %v462
      %v812 = vunpack.c.l.b16 %v463
      %v813 = vunpack.c.l.b16 %v464
      %v814 = vunpack.c.l.b16 %v465
      %v815 = vunpack.c.l.b16 %v466
      %v816 = vunpack.c.l.b16 %v467
      %v817 = vunpack.c.l.b16 %v468
      %v818 = vunpack.c.l.b16 %v469
      %v819 = vunpack.c.l.b16 %v470
      %v820 = vunpack.c.l.b16 %v471
      %v821 = vunpack.c.l.b16 %v472
      %v822 = vunpack.c.l.b16 %v473
      %v823 = vunpack.c.l.b16 %v474
      %v824 = vunpack.c.l.b16 %v475
      %v825 = vunpack.c.l.b16 %v476
      %v826 = vunpack.c.l.b16 %v477
      %v827 = vunpack.c.l.b16 %v478
      %v828 = vunpack.c.l.b16 %v479
      %v829 = vunpack.c.l.b16 %v480
      %v830 = vunpack.c.l.b16 %v481
      %v831 = vunpack.c.l.b16 %v482
      %v832 = vunpack.c.l.b16 %v483
      %v833 = vunpack.c.l.b16 %v484
      %v834 = vunpack.c.l.b16 %v485
      %v835 = vpack.c.b16 %v692, %v691
      %v836 = vpack.c.b16 %v694, %v693
      %v837 = vpack.c.b16 %v696, %v695
      %v838 = vpack.c.b16 %v698, %v697
      %v839 = vpack.c.b16 %v700, %v699
      %v840 = vpack.c.b16 %v702, %v701
      %v841 = vpack.c.b16 %v704, %v703
      %v842 = vpack.c.b16 %v706, %v705
      %v843 = vpack.c.b16 %v708, %v707
      %v844 = vpack.c.b16 %v710, %v709
      %v845 = vpack.c.b16 %v712, %v711
      %v846 = vpack.c.b16 %v714, %v713
      %v847 = vpack.c.b16 %v716, %v715
      %v848 = vpack.c.b16 %v718, %v717
      %v849 = vpack.c.b16 %v720, %v719
      %v850 = vpack.c.b16 %v722, %v721
      %v851 = vpack.c.b16 %v724, %v723
      %v852 = vpack.c.b16 %v726, %v725
      %v853 = vpack.c.b16 %v728, %v727
      %v854 = vpack.c.b16 %v730, %v729
      %v855 = vpack.c.b16 %v732, %v731
      %v856 = vpack.c.b16 %v734, %v733
      %v857 = vpack.c.b16 %v736, %v735
      %v858 = vpack.c.b16 %v738, %v737
      %v859 = vpack.c.b16 %v740, %v739
      %v860 = vpack.c.b16 %v742, %v741
      %v861 = vpack.c.b16 %v744, %v743
      %v862 = vpack.c.b16 %v746, %v745
      %v863 = vpack.c.b16 %v748, %v747
      %v864 = vpack.c.b16 %v750, %v749
      %v865 = vpack.c.b16 %v752, %v751
      %v866 = vpack.c.b16 %v754, %v753
      %v867 = vpack.c.b16 %v756, %v755
      %v868 = vpack.c.b16 %v758, %v757
      %v869 = vpack.c.b16 %v760, %v759
      %v870 = vpack.c.b16 %v762, %v761
      %v871 = vpack.c.b16 %v764, %v763
      %v872 = vpack.c.b16 %v766, %v765
      %v873 = vpack.c.b16 %v768, %v767
      %v874 = vpack.c.b16 %v770, %v769
      %v875 = vpack.c.b16 %v772, %v771
      %v876 = vpack.c.b16 %v774, %v773
      %v877 = vpack.c.b16 %v776, %v775
      %v878 = vpack.c.b16 %v778, %v777
      %v879 = vpack.c.b16 %v780, %v779
      %v880 = vpack.c.b16 %v782, %v781
      %v881 = vpack.c.b16 %v784, %v783
      %v882 = vpack.c.b16 %v786, %v785
      %v883 = vpack.c.b16 %v788, %v787
      %v884 = vpack.c.b16 %v790, %v789
      %v885 = vpack.c.b16 %v792, %v791
      %v886 = vpack.c.b16 %v794, %v793
      %v887 = vpack.c.b16 %v796, %v795
      %v888 = vpack.c.b16 %v798, %v797
      %v889 = vpack.c.b16 %v800, %v799
      %v890 = vpack.c.b16 %v802, %v801
      %v891 = vpack.c.b16 %v804, %v803
      %v892 = vpack.c.b16 %v806, %v805
      %v893 = vpack.c.b16 %v808, %v807
      %v894 = vpack.c.b16 %v810, %v809
      %v895 = vpack.c.b16 %v812, %v811
      %v896 = vpack.c.b16 %v814, %v813
      %v897 = vpack.c.b16 %v816, %v815
      %v898 = vpack.c.b16 %v818, %v817
      %v899 = vpack.c.b16 %v820, %v819
      %v900 = vpack.c.b16 %v822, %v821
      %v901 = vpack.c.b16 %v824, %v823
      %v902 = vpack.c.b16 %v826, %v825
      %v903 = vpack.c.b16 %v828, %v827
      %v904 = vpack.c.b16 %v830, %v829
      %v905 = vpack.c.b16 %v832, %v831
      %v906 = vpack.c.b16 %v834, %v833
      %979 = vmatprep.subr.bf16.mxu0 0
      %980 = vmatpush1.bf16.msra.mxu0 %v835
      %981 = vmatprep.subr.bf16.mxu0 0
      %982 = vmatpush1.bf16.msra.mxu0 %v836
      %983 = vmatprep.subr.bf16.mxu0 0
      %984 = vmatpush1.bf16.msra.mxu0 %v837
      %985 = vmatprep.subr.bf16.mxu0 0
      %986 = vmatpush1.bf16.msra.mxu0 %v838
      %987 = vmatprep.subr.bf16.mxu0 0
      %988 = vmatpush1.bf16.msra.mxu0 %v839
      %989 = vmatprep.subr.bf16.mxu0 0
      %990 = vmatpush1.bf16.msra.mxu0 %v840
      %991 = vmatprep.subr.bf16.mxu0 0
      %992 = vmatpush1.bf16.msra.mxu0 %v841
      %993 = vmatprep.subr.bf16.mxu0 0
      %994 = vmatpush1.bf16.msra.mxu0 %v842
      %995 = vmatprep.subr.bf16.mxu0 0
      %996 = vmatpush1.bf16.msra.mxu0 %v843
      %997 = vmatprep.subr.bf16.mxu0 0
      %998 = vmatpush1.bf16.msra.mxu0 %v844
      %999 = vmatprep.subr.bf16.mxu0 0
      %1000 = vmatpush1.bf16.msra.mxu0 %v845
      %1001 = vmatprep.subr.bf16.mxu0 0
      %1002 = vmatpush1.bf16.msra.mxu0 %v846
      %1003 = vmatprep.subr.bf16.mxu0 0
      %1004 = vmatpush1.bf16.msra.mxu0 %v847
      %1005 = vmatprep.subr.bf16.mxu0 0
      %1006 = vmatpush1.bf16.msra.mxu0 %v848
      %1007 = vmatprep.subr.bf16.mxu0 0
      %1008 = vmatpush1.bf16.msra.mxu0 %v849
      %1009 = vmatprep.subr.bf16.mxu0 0
      %1010 = vmatpush1.bf16.msra.mxu0 %v850
      %1011 = vmatprep.mubr.bf16.mxu0 %v494
      %1012 = vmatmul.mubr.bf16.gmra.mrb[0].mxu0 %v493
      %v1013 = vpop.f32.mrb[0].mxu0
      %v1014 = vadd.f32 %v491, %v1013
      %v1015 = vpop.f32.mrb[0].mxu0
      %v1016 = vpop.f32.mrb[0].mxu0
      %v1017 = vadd.f32 %v491, %v1016
      %v1018 = vpop.f32.mrb[0].mxu0
      %1019 = vmatprep.mubr.bf16.mxu0 %v500
      %1020 = vmatmul.mubr.bf16.gmra.mrb[0].mxu0 %v499
      %v1021 = vpop.f32.mrb[0].mxu0
      %v1022 = vadd.f32 %v491, %v1021
      %v1023 = vpop.f32.mrb[0].mxu0
      %v1024 = vpop.f32.mrb[0].mxu0
      %v1025 = vadd.f32 %v491, %v1024
      %v1026 = vpop.f32.mrb[0].mxu0
      %1027 = vmatprep.mubr.bf16.mxu0 %v506
      %1028 = vmatmul.mubr.bf16.gmra.mrb[0].mxu0 %v505
      %v1029 = vpop.f32.mrb[0].mxu0
      %v1030 = vadd.f32 %v491, %v1029
      %v1031 = vpop.f32.mrb[0].mxu0
      %v1032 = vpop.f32.mrb[0].mxu0
      %v1033 = vadd.f32 %v491, %v1032
      %v1034 = vpop.f32.mrb[0].mxu0
      %1035 = vmatprep.mubr.bf16.mxu0 %v512
      %1036 = vmatmul.mubr.bf16.gmra.mrb[0].mxu0 %v511
      %v1037 = vpop.f32.mrb[0].mxu0
      %v1038 = vadd.f32 %v491, %v1037
      %v1039 = vpop.f32.mrb[0].mxu0
      %v1040 = vpop.f32.mrb[0].mxu0
      %v1041 = vadd.f32 %v491, %v1040
      %v1042 = vpop.f32.mrb[0].mxu0
      %1043 = vdwg.mxu0
      %1044 = vmatprep.subr.bf16.mxu0 0
      %1045 = vmatpush1.bf16.msra.mxu0 %v851
      %1046 = vmatprep.subr.bf16.mxu0 0
      %1047 = vmatpush1.bf16.msra.mxu0 %v852
      %1048 = vmatprep.subr.bf16.mxu0 0
      %1049 = vmatpush1.bf16.msra.mxu0 %v853
      %1050 = vmatprep.subr.bf16.mxu0 0
      %1051 = vmatpush1.bf16.msra.mxu0 %v854
      %1052 = vmatprep.subr.bf16.mxu0 0
      %1053 = vmatpush1.bf16.msra.mxu0 %v855
      %1054 = vmatprep.subr.bf16.mxu0 0
      %1055 = vmatpush1.bf16.msra.mxu0 %v856
      %1056 = vmatprep.subr.bf16.mxu0 0
      %1057 = vmatpush1.bf16.msra.mxu0 %v857
      %1058 = vmatprep.subr.bf16.mxu0 0
      %1059 = vmatpush1.bf16.msra.mxu0 %v858
      %1060 = vmatprep.subr.bf16.mxu0 0
      %1061 = vmatpush1.bf16.msra.mxu0 %v859
      %1062 = vmatprep.subr.bf16.mxu0 0
      %1063 = vmatpush1.bf16.msra.mxu0 %v860
      %1064 = vmatprep.subr.bf16.mxu0 0
      %1065 = vmatpush1.bf16.msra.mxu0 %v861
      %1066 = vmatprep.subr.bf16.mxu0 0
      %1067 = vmatpush1.bf16.msra.mxu0 %v862
      %1068 = vmatprep.subr.bf16.mxu0 0
      %1069 = vmatpush1.bf16.msra.mxu0 %v863
      %1070 = vmatprep.subr.bf16.mxu0 0
      %1071 = vmatpush1.bf16.msra.mxu0 %v864
      %1072 = vmatprep.subr.bf16.mxu0 0
      %1073 = vmatpush1.bf16.msra.mxu0 %v865
      %1074 = vmatprep.subr.bf16.mxu0 0
      %1075 = vmatpush1.bf16.msra.mxu0 %v866
      %1076 = vmatprep.mubr.bf16.mxu0 %v496
      %1077 = vmatmul.mubr.bf16.gmra.mrb[0].mxu0 %v495
      %v1078 = vpop.f32.mrb[0].mxu0
      %v1079 = vadd.f32 %v1014, %v1078
      %v1080 = vpop.f32.mrb[0].mxu0
      %v1081 = vpop.f32.mrb[0].mxu0
      %v1082 = vadd.f32 %v1017, %v1081
      %v1083 = vpop.f32.mrb[0].mxu0
      %1084 = vmatprep.mubr.bf16.mxu0 %v502
      %1085 = vmatmul.mubr.bf16.gmra.mrb[0].mxu0 %v501
      %v1086 = vpop.f32.mrb[0].mxu0
      %v1087 = vadd.f32 %v1022, %v1086
      %v1088 = vpop.f32.mrb[0].mxu0
      %v1089 = vpop.f32.mrb[0].mxu0
      %v1090 = vadd.f32 %v1025, %v1089
      %v1091 = vpop.f32.mrb[0].mxu0
      %1092 = vmatprep.mubr.bf16.mxu0 %v508
      %1093 = vmatmul.mubr.bf16.gmra.mrb[0].mxu0 %v507
      %v1094 = vpop.f32.mrb[0].mxu0
      %v1095 = vadd.f32 %v1030, %v1094
      %v1096 = vpop.f32.mrb[0].mxu0
      %v1097 = vpop.f32.mrb[0].mxu0
      %v1098 = vadd.f32 %v1033, %v1097
      %v1099 = vpop.f32.mrb[0].mxu0
      %1100 = vmatprep.mubr.bf16.mxu0 %v514
      %1101 = vmatmul.mubr.bf16.gmra.mrb[0].mxu0 %v513
      %v1102 = vpop.f32.mrb[0].mxu0
      %v1103 = vadd.f32 %v1038, %v1102
      %v1104 = vpop.f32.mrb[0].mxu0
      %v1105 = vpop.f32.mrb[0].mxu0
      %v1106 = vadd.f32 %v1041, %v1105
      %v1107 = vpop.f32.mrb[0].mxu0
      %1108 = vdwg.mxu0
      %1109 = vmatprep.subr.bf16.mxu0 0
      %1110 = vmatpush1.bf16.msra.mxu0 %v867
      %1111 = vmatprep.subr.bf16.mxu0 0
      %1112 = vmatpush1.bf16.msra.mxu0 %v868
      %1113 = vmatprep.subr.bf16.mxu0 0
      %1114 = vmatpush1.bf16.msra.mxu0 %v869
      %1115 = vmatprep.subr.bf16.mxu0 0
      %1116 = vmatpush1.bf16.msra.mxu0 %v870
      %1117 = vmatprep.subr.bf16.mxu0 0
      %1118 = vmatpush1.bf16.msra.mxu0 %v871
      %1119 = vmatprep.subr.bf16.mxu0 0
      %1120 = vmatpush1.bf16.msra.mxu0 %v872
      %1121 = vmatprep.subr.bf16.mxu0 0
      %1122 = vmatpush1.bf16.msra.mxu0 %v873
      %1123 = vmatprep.subr.bf16.mxu0 0
      %1124 = vmatpush1.bf16.msra.mxu0 %v874
      %1125 = vmatprep.subr.bf16.mxu0 0
      %1126 = vmatpush1.bf16.msra.mxu0 %v875
      %1127 = vmatprep.subr.bf16.mxu0 0
      %1128 = vmatpush1.bf16.msra.mxu0 %v876
      %1129 = vmatprep.subr.bf16.mxu0 0
      %1130 = vmatpush1.bf16.msra.mxu0 %v877
      %1131 = vmatprep.subr.bf16.mxu0 0
      %1132 = vmatpush1.bf16.msra.mxu0 %v878
      %1133 = vmatprep.subr.bf16.mxu0 0
      %1134 = vmatpush1.bf16.msra.mxu0 %v879
      %1135 = vmatprep.subr.bf16.mxu0 0
      %1136 = vmatpush1.bf16.msra.mxu0 %v880
      %1137 = vmatprep.subr.bf16.mxu0 0
      %1138 = vmatpush1.bf16.msra.mxu0 %v881
      %1139 = vmatprep.subr.bf16.mxu0 0
      %1140 = vmatpush1.bf16.msra.mxu0 %v882
      %1141 = vmatprep.mubr.bf16.mxu0 %v498
      %1142 = vmatmul.mubr.bf16.gmra.mrb[0].mxu0 %v497
      %v1143 = vpop.f32.mrb[0].mxu0
      %v1144 = vadd.f32 %v1079, %v1143
      %v1145 = vpop.f32.mrb[0].mxu0
      %v1146 = vpop.f32.mrb[0].mxu0
      %v1147 = vadd.f32 %v1082, %v1146
      %v1148 = vpop.f32.mrb[0].mxu0
      %1149 = vmatprep.mubr.bf16.mxu0 %v504
      %1150 = vmatmul.mubr.bf16.gmra.mrb[0].mxu0 %v503
      %v1151 = vpop.f32.mrb[0].mxu0
      %v1152 = vadd.f32 %v1087, %v1151
      %v1153 = vpop.f32.mrb[0].mxu0
      %v1154 = vpop.f32.mrb[0].mxu0
      %v1155 = vadd.f32 %v1090, %v1154
      %v1156 = vpop.f32.mrb[0].mxu0
      %1157 = vmatprep.mubr.bf16.mxu0 %v510
      %1158 = vmatmul.mubr.bf16.gmra.mrb[0].mxu0 %v509
      %v1159 = vpop.f32.mrb[0].mxu0
      %v1160 = vadd.f32 %v1095, %v1159
      %v1161 = vpop.f32.mrb[0].mxu0
      %v1162 = vpop.f32.mrb[0].mxu0
      %v1163 = vadd.f32 %v1098, %v1162
      %v1164 = vpop.f32.mrb[0].mxu0
      %1165 = vmatprep.mubr.bf16.mxu0 %v516
      %1166 = vmatmul.mubr.bf16.gmra.mrb[0].mxu0 %v515
      %v1167 = vpop.f32.mrb[0].mxu0
      %v1168 = vadd.f32 %v1103, %v1167
      %v1169 = vpop.f32.mrb[0].mxu0
      %v1170 = vpop.f32.mrb[0].mxu0
      %v1171 = vadd.f32 %v1106, %v1170
      %v1172 = vpop.f32.mrb[0].mxu0
      %1173 = vdwg.mxu0
      %1174 = vmatprep.subr.bf16.mxu0 0
      %1175 = vmatpush1.bf16.msra.mxu0 %v883
      %1176 = vmatprep.subr.bf16.mxu0 0
      %1177 = vmatpush1.bf16.msra.mxu0 %v884
      %1178 = vmatprep.subr.bf16.mxu0 0
      %1179 = vmatpush1.bf16.msra.mxu0 %v885
      %1180 = vmatprep.subr.bf16.mxu0 0
      %1181 = vmatpush1.bf16.msra.mxu0 %v886
      %1182 = vmatprep.subr.bf16.mxu0 0
      %1183 = vmatpush1.bf16.msra.mxu0 %v887
      %1184 = vmatprep.subr.bf16.mxu0 0
      %1185 = vmatpush1.bf16.msra.mxu0 %v888
      %1186 = vmatprep.subr.bf16.mxu0 0
      %1187 = vmatpush1.bf16.msra.mxu0 %v889
      %1188 = vmatprep.subr.bf16.mxu0 0
      %1189 = vmatpush1.bf16.msra.mxu0 %v890
      %1190 = vmatprep.subr.bf16.mxu0 0
      %1191 = vmatpush1.bf16.msra.mxu0 %v891
      %1192 = vmatprep.subr.bf16.mxu0 0
      %1193 = vmatpush1.bf16.msra.mxu0 %v892
      %1194 = vmatprep.subr.bf16.mxu0 0
      %1195 = vmatpush1.bf16.msra.mxu0 %v893
      %1196 = vmatprep.subr.bf16.mxu0 0
      %1197 = vmatpush1.bf16.msra.mxu0 %v894
      %1198 = vmatprep.subr.bf16.mxu0 0
      %1199 = vmatpush1.bf16.msra.mxu0 %v895
      %1200 = vmatprep.subr.bf16.mxu0 0
      %1201 = vmatpush1.bf16.msra.mxu0 %v896
      %1202 = vmatprep.subr.bf16.mxu0 0
      %1203 = vmatpush1.bf16.msra.mxu0 %v897
      %1204 = vmatprep.subr.bf16.mxu0 0
      %1205 = vmatpush1.bf16.msra.mxu0 %v898
      %1206 = vmatprep.mubr.bf16.mxu0 %v500
      %1207 = vmatmul.mubr.bf16.gmra.mrb[0].mxu0 %v499
      %v1208 = vpop.f32.mrb[0].mxu0
      %v1209 = vadd.f32 %v1144, %v1208
      %v1210 = vpop.f32.mrb[0].mxu0
      %v1211 = vpop.f32.mrb[0].mxu0
      %v1212 = vadd.f32 %v1147, %v1211
      %v1213 = vpop.f32.mrb[0].mxu0
      %1214 = vmatprep.mubr.bf16.mxu0 %v506
      %1215 = vmatmul.mubr.bf16.gmra.mrb[0].mxu0 %v505
      %v1216 = vpop.f32.mrb[0].mxu0
      %v1217 = vadd.f32 %v1152, %v1216
      %v1218 = vpop.f32.mrb[0].mxu0
      %v1219 = vpop.f32.mrb[0].mxu0
      %v1220 = vadd.f32 %v1155, %v1219
      %v1221 = vpop.f32.mrb[0].mxu0
      %1222 = vmatprep.mubr.bf16.mxu0 %v512
      %1223 = vmatmul.mubr.bf16.gmra.mrb[0].mxu0 %v511
      %v1224 = vpop.f32.mrb[0].mxu0
      %v1225 = vadd.f32 %v1160, %v1224
      %v1226 = vpop.f32.mrb[0].mxu0
      %v1227 = vpop.f32.mrb[0].mxu0
      %v1228 = vadd.f32 %v1163, %v1227
      %v1229 = vpop.f32.mrb[0].mxu0
      %1230 = vmatprep.mubr.bf16.mxu0 %v518
      %1231 = vmatmul.mubr.bf16.gmra.mrb[0].mxu0 %v517
      %v1232 = vpop.f32.mrb[0].mxu0
      %v1233 = vadd.f32 %v1168, %v1232
      %v1234 = vpop.f32.mrb[0].mxu0
      %v1235 = vpop.f32.mrb[0].mxu0
      %v1236 = vadd.f32 %v1171, %v1235
      %v1237 = vpop.f32.mrb[0].mxu0
      %1238 = vdwg.mxu0
      %1239 = vmatprep.subr.bf16.mxu0 0
      %1240 = vmatpush1.bf16.msra.mxu0 %v899
      %1241 = vmatprep.subr.bf16.mxu0 0
      %1242 = vmatpush1.bf16.msra.mxu0 %v900
      %1243 = vmatprep.subr.bf16.mxu0 0
      %1244 = vmatpush1.bf16.msra.mxu0 %v901
      %1245 = vmatprep.subr.bf16.mxu0 0
      %1246 = vmatpush1.bf16.msra.mxu0 %v902
      %1247 = vmatprep.subr.bf16.mxu0 0
      %1248 = vmatpush1.bf16.msra.mxu0 %v903
      %1249 = vmatprep.subr.bf16.mxu0 0
      %1250 = vmatpush1.bf16.msra.mxu0 %v904
      %1251 = vmatprep.subr.bf16.mxu0 0
      %1252 = vmatpush1.bf16.msra.mxu0 %v905
      %1253 = vmatprep.subr.bf16.mxu0 0
      %1254 = vmatpush1.bf16.msra.mxu0 %v906
      %1255 = vmatprep.subr.bf16.mxu0 0
      %1256 = vmatpush1.bf16.msra.mxu0 0
      %1257 = vmatprep.subr.bf16.mxu0 0
      %1258 = vmatpush1.bf16.msra.mxu0 0
      %1259 = vmatprep.subr.bf16.mxu0 0
      %1260 = vmatpush1.bf16.msra.mxu0 0
      %1261 = vmatprep.subr.bf16.mxu0 0
      %1262 = vmatpush1.bf16.msra.mxu0 0
      %1263 = vmatprep.subr.bf16.mxu0 0
      %1264 = vmatpush1.bf16.msra.mxu0 0
      %1265 = vmatprep.subr.bf16.mxu0 0
      %1266 = vmatpush1.bf16.msra.mxu0 0
      %1267 = vmatprep.subr.bf16.mxu0 0
      %1268 = vmatpush1.bf16.msra.mxu0 0
      %1269 = vmatprep.subr.bf16.mxu0 0
      %1270 = vmatpush1.bf16.msra.mxu0 0
      %1271 = vmatprep.mubr.bf16.mxu0 0
      %1272 = vmatmul.mubr.bf16.gmra.mrb[0].mxu0 %v501
      %v1273 = vpop.f32.mrb[0].mxu0
      %v1274 = vadd.f32 %v1209, %v1273
      %v1275 = vpop.f32.mrb[0].mxu0
      %v1276 = vpop.f32.mrb[0].mxu0
      %v1277 = vadd.f32 %v1212, %v1276
      %v1278 = vpop.f32.mrb[0].mxu0
      %1279 = vmatprep.mubr.bf16.mxu0 0
      %1280 = vmatmul.mubr.bf16.gmra.mrb[0].mxu0 %v507
      %v1281 = vpop.f32.mrb[0].mxu0
      %v1282 = vadd.f32 %v1217, %v1281
      %v1283 = vpop.f32.mrb[0].mxu0
      %v1284 = vpop.f32.mrb[0].mxu0
      %v1285 = vadd.f32 %v1220, %v1284
      %v1286 = vpop.f32.mrb[0].mxu0
      %1287 = vmatprep.mubr.bf16.mxu0 0
      %1288 = vmatmul.mubr.bf16.gmra.mrb[0].mxu0 %v513
      %v1289 = vpop.f32.mrb[0].mxu0
      %v1290 = vadd.f32 %v1225, %v1289
      %v1291 = vpop.f32.mrb[0].mxu0
      %v1292 = vpop.f32.mrb[0].mxu0
      %v1293 = vadd.f32 %v1228, %v1292
      %v1294 = vpop.f32.mrb[0].mxu0
      %1295 = vmatprep.mubr.bf16.mxu0 0
      %1296 = vmatmul.mubr.bf16.gmra.mrb[0].mxu0 %v519
      %v1297 = vpop.f32.mrb[0].mxu0
      %v1298 = vadd.f32 %v1233, %v1297
      %v1299 = vpop.f32.mrb[0].mxu0
      %v1300 = vpop.f32.mrb[0].mxu0
      %v1301 = vadd.f32 %v1236, %v1300
      %v1302 = vpop.f32.mrb[0].mxu0
      %1303 = vdwg.mxu0
      %v1304 = vpack.c.bf16 %v1274, %v1274
      %v1305 = vpack.c.bf16 %v1277, %v1277
      %v1306 = vpack.c.bf16 %v1282, %v1282
      %v1307 = vpack.c.bf16 %v1285, %v1285
      %v1308 = vpack.c.bf16 %v1290, %v1290
      %v1309 = vpack.c.bf16 %v1293, %v1293
      %v1310 = vpack.c.bf16 %v1298, %v1298
      %v1311 = vpack.c.bf16 %v1301, %v1301
      %1312 = vst [vmem:[%s170] sm:$0xf] %v1304
      %1313 = vst [vmem:[%s170 + $0x4] sm:$0xf] %v1305
      %1314 = vst [vmem:[%s170 + $0x8] sm:$0xf] %v1306
      %1315 = vst [vmem:[%s170 + $0xc] sm:$0xf] %v1307
      %1316 = vst [vmem:[%s170 + $0x10] sm:$0xf] %v1308
      %1317 = vst [vmem:[%s170 + $0x14] sm:$0xf] %v1309
      %1318 = vst [vmem:[%s170 + $0x18] sm:$0xf] %v1310
      %1319 = vst [vmem:[%s170 + $0x1c] sm:$0xf] %v1311
      %p1320 = scmp.lt.s32.totalorder %s14, 1
      %s1321 = scalar_select %p1320, %s14, 1
      %s1322 = smul.addr %s1321, 8
      %s1323 = smul.addr %s1322, 4
      %s1324 = scalar_lea.vmem %s3, %s1323
      // Predicated region
      $region33: #{resnet_base_oc_forward.8} parent=31 // pred_check
        %p1325 = pneg %p100
      $region34: #{resnet_base_oc_forward.8} parent=31 // pred_check_branch
        %1327 = sbr.rel (%p1325) target = $region36
      $region35: #{resnet_base_oc_forward.8} parent=31 // pred_region
        _
      $region36: #{resnet_base_oc_forward.8} parent=31 // pred_fallthru
        _
    $region32: #{resnet_base_oc_forward.8} parent=5 // pred_fallthru
      _
    %p1328 = scmp.le.s32.totalorder 2, %s9
    // Predicated region
    $region37: #{resnet_base_oc_forward.8} parent=5 // pred_check
      %p1329 = pneg %p1328
    $region38: #{resnet_base_oc_forward.8} parent=5 // pred_check_branch
      %1331 = sbr.rel (%p1329) target = $region40
    $region39: #{resnet_base_oc_forward.8} parent=5 // pred_region
      %s1332 = ssub.s32 %s9, 2
      // Predicated region
      $region41: #{resnet_base_oc_forward.8} parent=39 // pred_check
        %p1333 = pneg %p106
      $region42: #{resnet_base_oc_forward.8} parent=39 // pred_check_branch
        %1335 = sbr.rel (%p1333) target = $region44
      $region43: #{resnet_base_oc_forward.8} parent=39 // pred_region
        %p1336 = scmp.lt.s32.totalorder %s15, 1
        %s1337 = scalar_select %p1336, %s15, 1
        %s1338 = smul.addr %s1337, 8
        %s1339 = smul.addr %s1338, 4
        %s1340 = scalar_lea.vmem %s3, %s1339
      $region44: #{resnet_base_oc_forward.8} parent=39 // pred_fallthru
        _
    $region40: #{resnet_base_oc_forward.8} parent=5 // pred_fallthru
      _
  $region6: #{resnet_base_oc_forward.8} parent=0 // loop_footer
    %s13 = sadd.s32 1, %s9
  $region7: #{resnet_base_oc_forward.8} parent=0 // loop_footer_branch
    %8 = sbr.rel target = $region3
  $region8: #{resnet_base_oc_forward.8} parent=0 // loop_exit
    _

// kernel: resnet_base_oc_forward.11
$region0: #{resnet_base_oc_forward.11}
  #allocation0 [shape = 'u32[]', space=smem, size = 0x4, offset = 0x4, fixed_abs, tag = 'smem constant byte address 0x4 - core index']
  #allocation1 [shape = 'u32[144,128]{1,0:T(1,128)}', space=vmem, size = 0x12000, scoped, tag = 'internal scratch']
  %s0 = inlined_call_operand.vmem [shape: bf16[128,8], index: 0, kind: input, shape index: {}]
  %s1 = inlined_call_operand.vmem [shape: bf16[8,128], index: 1, kind: input, shape index: {}]
  %s2 = inlined_call_operand.vmem [shape: bf16[128,128], index: 2, kind: input, shape index: {}]
  %s3 = inlined_call_operand.vmem [shape: bf16[128,128], index: 3, kind: input, shape index: {}]
  %s4 = inlined_call_operand.vmem [shape: f32[1,128], index: 4, kind: input, shape index: {}]
  %s5 = inlined_call_operand.vmem [shape: bf16[128,128], index: 5, kind: output, shape index: {}]
  %s6 = sld [smem:[#allocation0]]
  $region30: #{resnet_base_oc_forward.11} parent=0
    _
  %s8 = ssub.s32 1, %s6
  %s9 = scalar_select 0, %s8, %s6
  // Predicated region
  $region2: #{resnet_base_oc_forward.11} parent=0 // pred_check
    _
  $region3: #{resnet_base_oc_forward.11} parent=0 // pred_check_branch
    %11 = sbr.rel (0) target = $region5
  $region4: #{resnet_base_oc_forward.11} parent=0 // pred_region
    _
  $region5: #{resnet_base_oc_forward.11} parent=0 // pred_fallthru
    _
  // Predicated region
  $region6: #{resnet_base_oc_forward.11} parent=0 // pred_check
    _
  $region7: #{resnet_base_oc_forward.11} parent=0 // pred_check_branch
    %13 = sbr.rel (0) target = $region9
  $region8: #{resnet_base_oc_forward.11} parent=0 // pred_region
    _
  $region9: #{resnet_base_oc_forward.11} parent=0 // pred_fallthru
    _
  // Predicated region
  $region10: #{resnet_base_oc_forward.11} parent=0 // pred_check
    _
  $region11: #{resnet_base_oc_forward.11} parent=0 // pred_check_branch
    %15 = sbr.rel (0) target = $region13
  $region12: #{resnet_base_oc_forward.11} parent=0 // pred_region
    _
  $region13: #{resnet_base_oc_forward.11} parent=0 // pred_fallthru
    _
  // Predicated region
  $region14: #{resnet_base_oc_forward.11} parent=0 // pred_check
    _
  $region15: #{resnet_base_oc_forward.11} parent=0 // pred_check_branch
    %17 = sbr.rel (0) target = $region17
  $region16: #{resnet_base_oc_forward.11} parent=0 // pred_region
    _
  $region17: #{resnet_base_oc_forward.11} parent=0 // pred_fallthru
    _
  // Predicated region
  $region18: #{resnet_base_oc_forward.11} parent=0 // pred_check
    _
  $region19: #{resnet_base_oc_forward.11} parent=0 // pred_check_branch
    %19 = sbr.rel (0) target = $region21
  $region20: #{resnet_base_oc_forward.11} parent=0 // pred_region
    _
  $region21: #{resnet_base_oc_forward.11} parent=0 // pred_fallthru
    _
  %v21 = vld [vmem:[%s0] sm:$0xf]
  %v22 = vld [vmem:[%s0 + $0x4] sm:$0xf]
  %v23 = vld [vmem:[%s0 + $0x8] sm:$0xf]
  %v24 = vld [vmem:[%s0 + $0xc] sm:$0xf]
  %v25 = vld [vmem:[%s0 + $0x10] sm:$0xf]
  %v26 = vld [vmem:[%s0 + $0x14] sm:$0xf]
  %v27 = vld [vmem:[%s0 + $0x18] sm:$0xf]
  %v28 = vld [vmem:[%s0 + $0x1c] sm:$0xf]
  %v29 = vld [vmem:[%s0 + $0x20] sm:$0xf]
  %v30 = vld [vmem:[%s0 + $0x24] sm:$0xf]
  %v31 = vld [vmem:[%s0 + $0x28] sm:$0xf]
  %v32 = vld [vmem:[%s0 + $0x2c] sm:$0xf]
  %v33 = vld [vmem:[%s0 + $0x30] sm:$0xf]
  %v34 = vld [vmem:[%s0 + $0x34] sm:$0xf]
  %v35 = vld [vmem:[%s0 + $0x38] sm:$0xf]
  %v36 = vld [vmem:[%s0 + $0x3c] sm:$0xf]
  %v37 = vld [vmem:[%s1] sm:$0xf]
  %v38 = vld [vmem:[%s2] sm:$0xf]
  %v39 = vld [vmem:[%s2 + $0x4] sm:$0xf]
  %v40 = vld [vmem:[%s2 + $0x8] sm:$0xf]
  %v41 = vld [vmem:[%s2 + $0xc] sm:$0xf]
  %v42 = vld [vmem:[%s2 + $0x10] sm:$0xf]
  %v43 = vld [vmem:[%s2 + $0x14] sm:$0xf]
  %v44 = vld [vmem:[%s2 + $0x18] sm:$0xf]
  %v45 = vld [vmem:[%s2 + $0x1c] sm:$0xf]
  %v46 = vld [vmem:[%s2 + $0x20] sm:$0xf]
  %v47 = vld [vmem:[%s2 + $0x24] sm:$0xf]
  %v48 = vld [vmem:[%s2 + $0x28] sm:$0xf]
  %v49 = vld [vmem:[%s2 + $0x2c] sm:$0xf]
  %v50 = vld [vmem:[%s2 + $0x30] sm:$0xf]
  %v51 = vld [vmem:[%s2 + $0x34] sm:$0xf]
  %v52 = vld [vmem:[%s2 + $0x38] sm:$0xf]
  %v53 = vld [vmem:[%s2 + $0x3c] sm:$0xf]
  %v54 = vld [vmem:[%s3] sm:$0xf]
  %v55 = vld [vmem:[%s3 + $0x4] sm:$0xf]
  %v56 = vld [vmem:[%s3 + $0x8] sm:$0xf]
  %v57 = vld [vmem:[%s3 + $0xc] sm:$0xf]
  %v58 = vld [vmem:[%s3 + $0x10] sm:$0xf]
  %v59 = vld [vmem:[%s3 + $0x14] sm:$0xf]
  %v60 = vld [vmem:[%s3 + $0x18] sm:$0xf]
  %v61 = vld [vmem:[%s3 + $0x1c] sm:$0xf]
  %v62 = vld [vmem:[%s3 + $0x20] sm:$0xf]
  %v63 = vld [vmem:[%s3 + $0x24] sm:$0xf]
  %v64 = vld [vmem:[%s3 + $0x28] sm:$0xf]
  %v65 = vld [vmem:[%s3 + $0x2c] sm:$0xf]
  %v66 = vld [vmem:[%s3 + $0x30] sm:$0xf]
  %v67 = vld [vmem:[%s3 + $0x34] sm:$0xf]
  %v68 = vld [vmem:[%s3 + $0x38] sm:$0xf]
  %v69 = vld [vmem:[%s3 + $0x3c] sm:$0xf]
  %v86 = vunpack.c.l.b16 %v38
  %v87 = vunpack.c.l.b16 %v39
  %v88 = vunpack.c.l.b16 %v40
  %v89 = vunpack.c.l.b16 %v41
  %v90 = vunpack.c.l.b16 %v42
  %v91 = vunpack.c.l.b16 %v43
  %v92 = vunpack.c.l.b16 %v44
  %v93 = vunpack.c.l.b16 %v45
  %v94 = vunpack.c.l.b16 %v46
  %v95 = vunpack.c.l.b16 %v47
  %v96 = vunpack.c.l.b16 %v48
  %v97 = vunpack.c.l.b16 %v49
  %v98 = vunpack.c.l.b16 %v50
  %v99 = vunpack.c.l.b16 %v51
  %v100 = vunpack.c.l.b16 %v52
  %v101 = vunpack.c.l.b16 %v53
  %v102 = vpack.c.b16 %v87, %v86
  %v103 = vpack.c.b16 %v89, %v88
  %v104 = vpack.c.b16 %v91, %v90
  %v105 = vpack.c.b16 %v93, %v92
  %v106 = vpack.c.b16 %v95, %v94
  %v107 = vpack.c.b16 %v97, %v96
  %v108 = vpack.c.b16 %v99, %v98
  %v109 = vpack.c.b16 %v101, %v100
  %v134 = vunpack.c.l.b16 %v54
  %v135 = vunpack.c.l.b16 %v55
  %v136 = vunpack.c.l.b16 %v56
  %v137 = vunpack.c.l.b16 %v57
  %v138 = vunpack.c.l.b16 %v58
  %v139 = vunpack.c.l.b16 %v59
  %v140 = vunpack.c.l.b16 %v60
  %v141 = vunpack.c.l.b16 %v61
  %v142 = vunpack.c.l.b16 %v62
  %v143 = vunpack.c.l.b16 %v63
  %v144 = vunpack.c.l.b16 %v64
  %v145 = vunpack.c.l.b16 %v65
  %v146 = vunpack.c.l.b16 %v66
  %v147 = vunpack.c.l.b16 %v67
  %v148 = vunpack.c.l.b16 %v68
  %v149 = vunpack.c.l.b16 %v69
  %v150 = vpack.c.b16 %v135, %v134
  %v151 = vpack.c.b16 %v137, %v136
  %v152 = vpack.c.b16 %v139, %v138
  %v153 = vpack.c.b16 %v141, %v140
  %v154 = vpack.c.b16 %v143, %v142
  %v155 = vpack.c.b16 %v145, %v144
  %v156 = vpack.c.b16 %v147, %v146
  %v157 = vpack.c.b16 %v149, %v148
  %166 = vmatprep.subr.bf16.mxu0 0
  %167 = vmatpush1.bf16.msra.mxu0 %v150
  %168 = vmatprep.subr.bf16.mxu0 0
  %169 = vmatpush1.bf16.msra.mxu0 %v151
  %170 = vmatprep.subr.bf16.mxu0 0
  %171 = vmatpush1.bf16.msra.mxu0 %v152
  %172 = vmatprep.subr.bf16.mxu0 0
  %173 = vmatpush1.bf16.msra.mxu0 %v153
  %174 = vmatprep.subr.bf16.mxu0 0
  %175 = vmatpush1.bf16.msra.mxu0 %v154
  %176 = vmatprep.subr.bf16.mxu0 0
  %177 = vmatpush1.bf16.msra.mxu0 %v155
  %178 = vmatprep.subr.bf16.mxu0 0
  %179 = vmatpush1.bf16.msra.mxu0 %v156
  %180 = vmatprep.subr.bf16.mxu0 0
  %181 = vmatpush1.bf16.msra.mxu0 %v157
  %182 = vmatprep.subr.bf16.mxu0 0
  %183 = vmatpush1.bf16.msra.mxu0 0
  %184 = vmatprep.subr.bf16.mxu0 0
  %185 = vmatpush1.bf16.msra.mxu0 0
  %186 = vmatprep.subr.bf16.mxu0 0
  %187 = vmatpush1.bf16.msra.mxu0 0
  %188 = vmatprep.subr.bf16.mxu0 0
  %189 = vmatpush1.bf16.msra.mxu0 0
  %190 = vmatprep.subr.bf16.mxu0 0
  %191 = vmatpush1.bf16.msra.mxu0 0
  %192 = vmatprep.subr.bf16.mxu0 0
  %193 = vmatpush1.bf16.msra.mxu0 0
  %194 = vmatprep.subr.bf16.mxu0 0
  %195 = vmatpush1.bf16.msra.mxu0 0
  %196 = vmatprep.subr.bf16.mxu0 0
  %197 = vmatpush1.bf16.msra.mxu0 0
  %198 = vmatprep.mubr.bf16.mxu0 0
  %199 = vmatmul.mubr.bf16.gmra.mrb[0].mxu0 %v102
  %v200 = vpop.f32.mrb[0].mxu0
  %v201 = vadd.f32 0.0, %v200
  %v202 = vpop.f32.mrb[0].mxu0
  %v203 = vpop.f32.mrb[0].mxu0
  %v204 = vadd.f32 0.0, %v203
  %v205 = vpop.f32.mrb[0].mxu0
  %206 = vmatprep.mubr.bf16.mxu0 0
  %207 = vmatmul.mubr.bf16.gmra.mrb[0].mxu0 %v103
  %v208 = vpop.f32.mrb[0].mxu0
  %v209 = vadd.f32 0.0, %v208
  %v210 = vpop.f32.mrb[0].mxu0
  %v211 = vpop.f32.mrb[0].mxu0
  %v212 = vadd.f32 0.0, %v211
  %v213 = vpop.f32.mrb[0].mxu0
  %214 = vmatprep.mubr.bf16.mxu0 0
  %215 = vmatmul.mubr.bf16.gmra.mrb[0].mxu0 %v104
  %v216 = vpop.f32.mrb[0].mxu0
  %v217 = vadd.f32 0.0, %v216
  %v218 = vpop.f32.mrb[0].mxu0
  %v219 = vpop.f32.mrb[0].mxu0
  %v220 = vadd.f32 0.0, %v219
  %v221 = vpop.f32.mrb[0].mxu0
  %222 = vmatprep.mubr.bf16.mxu0 0
  %223 = vmatmul.mubr.bf16.gmra.mrb[0].mxu0 %v105
  %v224 = vpop.f32.mrb[0].mxu0
  %v225 = vadd.f32 0.0, %v224
  %v226 = vpop.f32.mrb[0].mxu0
  %v227 = vpop.f32.mrb[0].mxu0
  %v228 = vadd.f32 0.0, %v227
  %v229 = vpop.f32.mrb[0].mxu0
  %230 = vmatprep.mubr.bf16.mxu0 0
  %231 = vmatmul.mubr.bf16.gmra.mrb[0].mxu0 %v106
  %v232 = vpop.f32.mrb[0].mxu0
  %v233 = vadd.f32 0.0, %v232
  %v234 = vpop.f32.mrb[0].mxu0
  %v235 = vpop.f32.mrb[0].mxu0
  %v236 = vadd.f32 0.0, %v235
  %v237 = vpop.f32.mrb[0].mxu0
  %238 = vmatprep.mubr.bf16.mxu0 0
  %239 = vmatmul.mubr.bf16.gmra.mrb[0].mxu0 %v107
  %v240 = vpop.f32.mrb[0].mxu0
  %v241 = vadd.f32 0.0, %v240
  %v242 = vpop.f32.mrb[0].mxu0
  %v243 = vpop.f32.mrb[0].mxu0
  %v244 = vadd.f32 0.0, %v243
  %v245 = vpop.f32.mrb[0].mxu0
  %246 = vmatprep.mubr.bf16.mxu0 0
  %247 = vmatmul.mubr.bf16.gmra.mrb[0].mxu0 %v108
  %v248 = vpop.f32.mrb[0].mxu0
  %v249 = vadd.f32 0.0, %v248
  %v250 = vpop.f32.mrb[0].mxu0
  %v251 = vpop.f32.mrb[0].mxu0
  %v252 = vadd.f32 0.0, %v251
  %v253 = vpop.f32.mrb[0].mxu0
  %254 = vmatprep.mubr.bf16.mxu0 0
  %255 = vmatmul.mubr.bf16.gmra.mrb[0].mxu0 %v109
  %v256 = vpop.f32.mrb[0].mxu0
  %v257 = vadd.f32 0.0, %v256
  %v258 = vpop.f32.mrb[0].mxu0
  %v259 = vpop.f32.mrb[0].mxu0
  %v260 = vadd.f32 0.0, %v259
  %v261 = vpop.f32.mrb[0].mxu0
  %262 = vdwg.mxu0
  %v279 = vunpack.c.l.b16 %v21
  %v280 = vunpack.c.l.b16 %v22
  %v281 = vunpack.c.l.b16 %v23
  %v282 = vunpack.c.l.b16 %v24
  %v283 = vunpack.c.l.b16 %v25
  %v284 = vunpack.c.l.b16 %v26
  %v285 = vunpack.c.l.b16 %v27
  %v286 = vunpack.c.l.b16 %v28
  %v287 = vunpack.c.l.b16 %v29
  %v288 = vunpack.c.l.b16 %v30
  %v289 = vunpack.c.l.b16 %v31
  %v290 = vunpack.c.l.b16 %v32
  %v291 = vunpack.c.l.b16 %v33
  %v292 = vunpack.c.l.b16 %v34
  %v293 = vunpack.c.l.b16 %v35
  %v294 = vunpack.c.l.b16 %v36
  %v295 = vpack.c.b16 %v280, %v279
  %v296 = vpack.c.b16 %v282, %v281
  %v297 = vpack.c.b16 %v284, %v283
  %v298 = vpack.c.b16 %v286, %v285
  %v299 = vpack.c.b16 %v288, %v287
  %v300 = vpack.c.b16 %v290, %v289
  %v301 = vpack.c.b16 %v292, %v291
  %v302 = vpack.c.b16 %v294, %v293
  %vm303 = vcmask 64512
  %v305 = vsel %vm303, %v295, 0
  %v308 = vsel %vm303, %v296, 0
  %v311 = vsel %vm303, %v297, 0
  %v314 = vsel %vm303, %v298, 0
  %v317 = vsel %vm303, %v299, 0
  %v320 = vsel %vm303, %v300, 0
  %v323 = vsel %vm303, %v301, 0
  %v326 = vsel %vm303, %v302, 0
  %vm328 = vcmask 1043456
  %v330 = vsel %vm328, %v37, 0
  %332 = vmatprep.subr.bf16.mxu0 0
  %333 = vmatpush1.bf16.msra.mxu0 %v330
  %334 = vmatprep.subr.bf16.mxu0 0
  %335 = vmatpush1.bf16.msra.mxu0 0
  %336 = vmatprep.subr.bf16.mxu0 0
  %337 = vmatpush1.bf16.msra.mxu0 0
  %338 = vmatprep.subr.bf16.mxu0 0
  %339 = vmatpush1.bf16.msra.mxu0 0
  %340 = vmatprep.subr.bf16.mxu0 0
  %341 = vmatpush1.bf16.msra.mxu0 0
  %342 = vmatprep.subr.bf16.mxu0 0
  %343 = vmatpush1.bf16.msra.mxu0 0
  %344 = vmatprep.subr.bf16.mxu0 0
  %345 = vmatpush1.bf16.msra.mxu0 0
  %346 = vmatprep.subr.bf16.mxu0 0
  %347 = vmatpush1.bf16.msra.mxu0 0
  %348 = vmatprep.subr.bf16.mxu0 0
  %349 = vmatpush1.bf16.msra.mxu0 0
  %350 = vmatprep.subr.bf16.mxu0 0
  %351 = vmatpush1.bf16.msra.mxu0 0
  %352 = vmatprep.subr.bf16.mxu0 0
  %353 = vmatpush1.bf16.msra.mxu0 0
  %354 = vmatprep.subr.bf16.mxu0 0
  %355 = vmatpush1.bf16.msra.mxu0 0
  %356 = vmatprep.subr.bf16.mxu0 0
  %357 = vmatpush1.bf16.msra.mxu0 0
  %358 = vmatprep.subr.bf16.mxu0 0
  %359 = vmatpush1.bf16.msra.mxu0 0
  %360 = vmatprep.subr.bf16.mxu0 0
  %361 = vmatpush1.bf16.msra.mxu0 0
  %362 = vmatprep.subr.bf16.mxu0 0
  %363 = vmatpush1.bf16.msra.mxu0 0
  %364 = vmatprep.mubr.bf16.mxu0 0
  %365 = vmatmul.mubr.bf16.gmra.mrb[0].mxu0 %v305
  %v366 = vpop.f32.mrb[0].mxu0
  %v367 = vadd.f32 %v201, %v366
  %v368 = vpop.f32.mrb[0].mxu0
  %v369 = vpop.f32.mrb[0].mxu0
  %v370 = vadd.f32 %v204, %v369
  %v371 = vpop.f32.mrb[0].mxu0
  %372 = vmatprep.mubr.bf16.mxu0 0
  %373 = vmatmul.mubr.bf16.gmra.mrb[0].mxu0 %v308
  %v374 = vpop.f32.mrb[0].mxu0
  %v375 = vadd.f32 %v209, %v374
  %v376 = vpop.f32.mrb[0].mxu0
  %v377 = vpop.f32.mrb[0].mxu0
  %v378 = vadd.f32 %v212, %v377
  %v379 = vpop.f32.mrb[0].mxu0
  %380 = vmatprep.mubr.bf16.mxu0 0
  %381 = vmatmul.mubr.bf16.gmra.mrb[0].mxu0 %v311
  %v382 = vpop.f32.mrb[0].mxu0
  %v383 = vadd.f32 %v217, %v382
  %v384 = vpop.f32.mrb[0].mxu0
  %v385 = vpop.f32.mrb[0].mxu0
  %v386 = vadd.f32 %v220, %v385
  %v387 = vpop.f32.mrb[0].mxu0
  %388 = vmatprep.mubr.bf16.mxu0 0
  %389 = vmatmul.mubr.bf16.gmra.mrb[0].mxu0 %v314
  %v390 = vpop.f32.mrb[0].mxu0
  %v391 = vadd.f32 %v225, %v390
  %v392 = vpop.f32.mrb[0].mxu0
  %v393 = vpop.f32.mrb[0].mxu0
  %v394 = vadd.f32 %v228, %v393
  %v395 = vpop.f32.mrb[0].mxu0
  %396 = vmatprep.mubr.bf16.mxu0 0
  %397 = vmatmul.mubr.bf16.gmra.mrb[0].mxu0 %v317
  %v398 = vpop.f32.mrb[0].mxu0
  %v399 = vadd.f32 %v233, %v398
  %v400 = vpop.f32.mrb[0].mxu0
  %v401 = vpop.f32.mrb[0].mxu0
  %v402 = vadd.f32 %v236, %v401
  %v403 = vpop.f32.mrb[0].mxu0
  %404 = vmatprep.mubr.bf16.mxu0 0
  %405 = vmatmul.mubr.bf16.gmra.mrb[0].mxu0 %v320
  %v406 = vpop.f32.mrb[0].mxu0
  %v407 = vadd.f32 %v241, %v406
  %v408 = vpop.f32.mrb[0].mxu0
  %v409 = vpop.f32.mrb[0].mxu0
  %v410 = vadd.f32 %v244, %v409
  %v411 = vpop.f32.mrb[0].mxu0
  %412 = vmatprep.mubr.bf16.mxu0 0
  %413 = vmatmul.mubr.bf16.gmra.mrb[0].mxu0 %v323
  %v414 = vpop.f32.mrb[0].mxu0
  %v415 = vadd.f32 %v249, %v414
  %v416 = vpop.f32.mrb[0].mxu0
  %v417 = vpop.f32.mrb[0].mxu0
  %v418 = vadd.f32 %v252, %v417
  %v419 = vpop.f32.mrb[0].mxu0
  %420 = vmatprep.mubr.bf16.mxu0 0
  %421 = vmatmul.mubr.bf16.gmra.mrb[0].mxu0 %v326
  %v422 = vpop.f32.mrb[0].mxu0
  %v423 = vadd.f32 %v257, %v422
  %v424 = vpop.f32.mrb[0].mxu0
  %v425 = vpop.f32.mrb[0].mxu0
  %v426 = vadd.f32 %v260, %v425
  %v427 = vpop.f32.mrb[0].mxu0
  %428 = vdwg.mxu0
  %v429 = vld [vmem:[%s4] sm:$0x1]
  %v431 = vlaneseq
  %v432 = vshrl.u32 %v431, 7
  %v433 = vsub.s32 0, %v432
  %v434 = vrot.slane %v429, %v433
  %v436 = vadd.f32 %v367, %v434
  %v437 = vadd.f32 %v370, %v434
  %v438 = vadd.f32 %v375, %v434
  %v439 = vadd.f32 %v378, %v434
  %v440 = vadd.f32 %v383, %v434
  %v441 = vadd.f32 %v386, %v434
  %v442 = vadd.f32 %v391, %v434
  %v443 = vadd.f32 %v394, %v434
  %v444 = vadd.f32 %v399, %v434
  %v445 = vadd.f32 %v402, %v434
  %v446 = vadd.f32 %v407, %v434
  %v447 = vadd.f32 %v410, %v434
  %v448 = vadd.f32 %v415, %v434
  %v449 = vadd.f32 %v418, %v434
  %v450 = vadd.f32 %v423, %v434
  %v451 = vadd.f32 %v426, %v434
  %v452 = vmax.f32 %v436, 0.0
  %v453 = vmax.f32 %v437, 0.0
  %v454 = vmax.f32 %v438, 0.0
  %v455 = vmax.f32 %v439, 0.0
  %v456 = vmax.f32 %v440, 0.0
  %v457 = vmax.f32 %v441, 0.0
  %v458 = vmax.f32 %v442, 0.0
  %v459 = vmax.f32 %v443, 0.0
  %v460 = vmax.f32 %v444, 0.0
  %v461 = vmax.f32 %v445, 0.0
  %v462 = vmax.f32 %v446, 0.0
  %v463 = vmax.f32 %v447, 0.0
  %v464 = vmax.f32 %v448, 0.0
  %v465 = vmax.f32 %v449, 0.0
  %v466 = vmax.f32 %v450, 0.0
  %v467 = vmax.f32 %v451, 0.0
  %v468 = vpack.c.bf16 %v453, %v452
  %v469 = vpack.c.bf16 %v455, %v454
  %v470 = vpack.c.bf16 %v457, %v456
  %v471 = vpack.c.bf16 %v459, %v458
  %v472 = vpack.c.bf16 %v461, %v460
  %v473 = vpack.c.bf16 %v463, %v462
  %v474 = vpack.c.bf16 %v465, %v464
  %v475 = vpack.c.bf16 %v467, %v466
  %v484 = vunpack.c.l.b16 %v468
  %v485 = vunpack.c.h.b16 %v468
  %v486 = vunpack.c.l.b16 %v469
  %v487 = vunpack.c.h.b16 %v469
  %v488 = vunpack.c.l.b16 %v470
  %v489 = vunpack.c.h.b16 %v470
  %v490 = vunpack.c.l.b16 %v471
  %v491 = vunpack.c.h.b16 %v471
  %v492 = vunpack.c.l.b16 %v472
  %v493 = vunpack.c.h.b16 %v472
  %v494 = vunpack.c.l.b16 %v473
  %v495 = vunpack.c.h.b16 %v473
  %v496 = vunpack.c.l.b16 %v474
  %v497 = vunpack.c.h.b16 %v474
  %v498 = vunpack.c.l.b16 %v475
  %v499 = vunpack.c.h.b16 %v475
  %v500 = vpack.c.b16 %v484, %v484
  %v501 = vpack.c.b16 %v485, %v485
  %v502 = vpack.c.b16 %v486, %v486
  %v503 = vpack.c.b16 %v487, %v487
  %v504 = vpack.c.b16 %v488, %v488
  %v505 = vpack.c.b16 %v489, %v489
  %v506 = vpack.c.b16 %v490, %v490
  %v507 = vpack.c.b16 %v491, %v491
  %v508 = vpack.c.b16 %v492, %v492
  %v509 = vpack.c.b16 %v493, %v493
  %v510 = vpack.c.b16 %v494, %v494
  %v511 = vpack.c.b16 %v495, %v495
  %v512 = vpack.c.b16 %v496, %v496
  %v513 = vpack.c.b16 %v497, %v497
  %v514 = vpack.c.b16 %v498, %v498
  %v515 = vpack.c.b16 %v499, %v499
  %532 = vst [vmem:[%s5] sm:$0xf] %v500
  %533 = vst [vmem:[%s5 + $0x4] sm:$0xf] %v501
  %534 = vst [vmem:[%s5 + $0x8] sm:$0xf] %v502
  %535 = vst [vmem:[%s5 + $0xc] sm:$0xf] %v503
  %536 = vst [vmem:[%s5 + $0x10] sm:$0xf] %v504
  %537 = vst [vmem:[%s5 + $0x14] sm:$0xf] %v505
  %538 = vst [vmem:[%s5 + $0x18] sm:$0xf] %v506
  %539 = vst [vmem:[%s5 + $0x1c] sm:$0xf] %v507
  %540 = vst [vmem:[%s5 + $0x20] sm:$0xf] %v508
  %541 = vst [vmem:[%s5 + $0x24] sm:$0xf] %v509
  %542 = vst [vmem:[%s5 + $0x28] sm:$0xf] %v510
  %543 = vst [vmem:[%s5 + $0x2c] sm:$0xf] %v511
  %544 = vst [vmem:[%s5 + $0x30] sm:$0xf] %v512
  %545 = vst [vmem:[%s5 + $0x34] sm:$0xf] %v513
  %546 = vst [vmem:[%s5 + $0x38] sm:$0xf] %v514
  %547 = vst [vmem:[%s5 + $0x3c] sm:$0xf] %v515
  // Predicated region
  $region22: #{resnet_base_oc_forward.11} parent=0 // pred_check
    _
  $region23: #{resnet_base_oc_forward.11} parent=0 // pred_check_branch
    %549 = sbr.rel (0) target = $region25
  $region24: #{resnet_base_oc_forward.11} parent=0 // pred_region
    _
  $region25: #{resnet_base_oc_forward.11} parent=0 // pred_fallthru
    _
  // Predicated region
  $region26: #{resnet_base_oc_forward.11} parent=0 // pred_check
    _
  $region27: #{resnet_base_oc_forward.11} parent=0 // pred_check_branch
    %551 = sbr.rel (0) target = $region29
  $region28: #{resnet_base_oc_forward.11} parent=0 // pred_region
    _
  $region29: #{resnet_base_oc_forward.11} parent=0 // pred_fallthru
    _

// kernel: resnet_base_oc_forward.12
$region0: #{resnet_base_oc_forward.12}
  #allocation0 [shape = 'u32[]', space=smem, size = 0x4, offset = 0x4, fixed_abs, tag = 'smem constant byte address 0x4 - core index']
  #allocation1 [shape = 'u32[144,128]{1,0:T(1,128)}', space=vmem, size = 0x12000, scoped, tag = 'internal scratch']
  #allocation2 [shape = 'f32[128,128]{1,0:T(8,128)}', space=vmem, size = 0x10000, scoped, tag = 'scratch operand']
  %s0 = inlined_call_operand.vmem [shape: bf16[128,128], index: 0, kind: input, shape index: {}]
  %s1 = inlined_call_operand.vmem [shape: bf16[128,128], index: 1, kind: input, shape index: {}]
  %s2 = inlined_call_operand.vmem [shape: f32[1,128], index: 2, kind: input, shape index: {}]
  %s3 = inlined_call_operand.vmem [shape: f32[128,128], index: 3, kind: output, shape index: {}]
  %s4 = sld [smem:[#allocation0]]
  $region30: #{resnet_base_oc_forward.12} parent=0
    _
  %s6 = ssub.s32 1, %s4
  %s7 = scalar_select 0, %s6, %s4
  // Predicated region
  $region2: #{resnet_base_oc_forward.12} parent=0 // pred_check
    _
  $region3: #{resnet_base_oc_forward.12} parent=0 // pred_check_branch
    %9 = sbr.rel (0) target = $region5
  $region4: #{resnet_base_oc_forward.12} parent=0 // pred_region
    _
  $region5: #{resnet_base_oc_forward.12} parent=0 // pred_fallthru
    _
  // Predicated region
  $region6: #{resnet_base_oc_forward.12} parent=0 // pred_check
    _
  $region7: #{resnet_base_oc_forward.12} parent=0 // pred_check_branch
    %11 = sbr.rel (0) target = $region9
  $region8: #{resnet_base_oc_forward.12} parent=0 // pred_region
    _
  $region9: #{resnet_base_oc_forward.12} parent=0 // pred_fallthru
    _
  // Predicated region
  $region10: #{resnet_base_oc_forward.12} parent=0 // pred_check
    _
  $region11: #{resnet_base_oc_forward.12} parent=0 // pred_check_branch
    %13 = sbr.rel (0) target = $region13
  $region12: #{resnet_base_oc_forward.12} parent=0 // pred_region
    _
  $region13: #{resnet_base_oc_forward.12} parent=0 // pred_fallthru
    _
  %p15 = scmp.eq.s32.totalorder 0, 0
  // Predicated region
  $region14: #{resnet_base_oc_forward.12} parent=0 // pred_check
    %p16 = pneg %p15
  $region15: #{resnet_base_oc_forward.12} parent=0 // pred_check_branch
    %18 = sbr.rel (%p16) target = $region17
  $region16: #{resnet_base_oc_forward.12} parent=0 // pred_region
    %19 = vst [vmem:[#allocation2] sm:$0xff] 0.0
    %20 = vst [vmem:[#allocation2 + $0x8] sm:$0xff] 0.0
    %21 = vst [vmem:[#allocation2 + $0x10] sm:$0xff] 0.0
    %22 = vst [vmem:[#allocation2 + $0x18] sm:$0xff] 0.0
    %23 = vst [vmem:[#allocation2 + $0x20] sm:$0xff] 0.0
    %24 = vst [vmem:[#allocation2 + $0x28] sm:$0xff] 0.0
    %25 = vst [vmem:[#allocation2 + $0x30] sm:$0xff] 0.0
    %26 = vst [vmem:[#allocation2 + $0x38] sm:$0xff] 0.0
    %27 = vst [vmem:[#allocation2 + $0x40] sm:$0xff] 0.0
    %28 = vst [vmem:[#allocation2 + $0x48] sm:$0xff] 0.0
    %29 = vst [vmem:[#allocation2 + $0x50] sm:$0xff] 0.0
    %30 = vst [vmem:[#allocation2 + $0x58] sm:$0xff] 0.0
    %31 = vst [vmem:[#allocation2 + $0x60] sm:$0xff] 0.0
    %32 = vst [vmem:[#allocation2 + $0x68] sm:$0xff] 0.0
    %33 = vst [vmem:[#allocation2 + $0x70] sm:$0xff] 0.0
    %34 = vst [vmem:[#allocation2 + $0x78] sm:$0xff] 0.0
  $region17: #{resnet_base_oc_forward.12} parent=0 // pred_fallthru
    _
  %v35 = vld [vmem:[#allocation2] sm:$0xff]
  %v36 = vld [vmem:[#allocation2 + $0x8] sm:$0xff]
  %v37 = vld [vmem:[#allocation2 + $0x10] sm:$0xff]
  %v38 = vld [vmem:[#allocation2 + $0x18] sm:$0xff]
  %v39 = vld [vmem:[#allocation2 + $0x20] sm:$0xff]
  %v40 = vld [vmem:[#allocation2 + $0x28] sm:$0xff]
  %v41 = vld [vmem:[#allocation2 + $0x30] sm:$0xff]
  %v42 = vld [vmem:[#allocation2 + $0x38] sm:$0xff]
  %v43 = vld [vmem:[#allocation2 + $0x40] sm:$0xff]
  %v44 = vld [vmem:[#allocation2 + $0x48] sm:$0xff]
  %v45 = vld [vmem:[#allocation2 + $0x50] sm:$0xff]
  %v46 = vld [vmem:[#allocation2 + $0x58] sm:$0xff]
  %v47 = vld [vmem:[#allocation2 + $0x60] sm:$0xff]
  %v48 = vld [vmem:[#allocation2 + $0x68] sm:$0xff]
  %v49 = vld [vmem:[#allocation2 + $0x70] sm:$0xff]
  %v50 = vld [vmem:[#allocation2 + $0x78] sm:$0xff]
  %v51 = vld [vmem:[%s0] sm:$0xf]
  %v52 = vld [vmem:[%s0 + $0x4] sm:$0xf]
  %v53 = vld [vmem:[%s0 + $0x8] sm:$0xf]
  %v54 = vld [vmem:[%s0 + $0xc] sm:$0xf]
  %v55 = vld [vmem:[%s0 + $0x10] sm:$0xf]
  %v56 = vld [vmem:[%s0 + $0x14] sm:$0xf]
  %v57 = vld [vmem:[%s0 + $0x18] sm:$0xf]
  %v58 = vld [vmem:[%s0 + $0x1c] sm:$0xf]
  %v59 = vld [vmem:[%s0 + $0x20] sm:$0xf]
  %v60 = vld [vmem:[%s0 + $0x24] sm:$0xf]
  %v61 = vld [vmem:[%s0 + $0x28] sm:$0xf]
  %v62 = vld [vmem:[%s0 + $0x2c] sm:$0xf]
  %v63 = vld [vmem:[%s0 + $0x30] sm:$0xf]
  %v64 = vld [vmem:[%s0 + $0x34] sm:$0xf]
  %v65 = vld [vmem:[%s0 + $0x38] sm:$0xf]
  %v66 = vld [vmem:[%s0 + $0x3c] sm:$0xf]
  %v67 = vld [vmem:[%s1] sm:$0xf]
  %v68 = vld [vmem:[%s1 + $0x4] sm:$0xf]
  %v69 = vld [vmem:[%s1 + $0x8] sm:$0xf]
  %v70 = vld [vmem:[%s1 + $0xc] sm:$0xf]
  %v71 = vld [vmem:[%s1 + $0x10] sm:$0xf]
  %v72 = vld [vmem:[%s1 + $0x14] sm:$0xf]
  %v73 = vld [vmem:[%s1 + $0x18] sm:$0xf]
  %v74 = vld [vmem:[%s1 + $0x1c] sm:$0xf]
  %v75 = vld [vmem:[%s1 + $0x20] sm:$0xf]
  %v76 = vld [vmem:[%s1 + $0x24] sm:$0xf]
  %v77 = vld [vmem:[%s1 + $0x28] sm:$0xf]
  %v78 = vld [vmem:[%s1 + $0x2c] sm:$0xf]
  %v79 = vld [vmem:[%s1 + $0x30] sm:$0xf]
  %v80 = vld [vmem:[%s1 + $0x34] sm:$0xf]
  %v81 = vld [vmem:[%s1 + $0x38] sm:$0xf]
  %v82 = vld [vmem:[%s1 + $0x3c] sm:$0xf]
  %v99 = vunpack.c.l.b16 %v51
  %v100 = vunpack.c.l.b16 %v52
  %v101 = vunpack.c.l.b16 %v53
  %v102 = vunpack.c.l.b16 %v54
  %v103 = vunpack.c.l.b16 %v55
  %v104 = vunpack.c.l.b16 %v56
  %v105 = vunpack.c.l.b16 %v57
  %v106 = vunpack.c.l.b16 %v58
  %v107 = vunpack.c.l.b16 %v59
  %v108 = vunpack.c.l.b16 %v60
  %v109 = vunpack.c.l.b16 %v61
  %v110 = vunpack.c.l.b16 %v62
  %v111 = vunpack.c.l.b16 %v63
  %v112 = vunpack.c.l.b16 %v64
  %v113 = vunpack.c.l.b16 %v65
  %v114 = vunpack.c.l.b16 %v66
  %v115 = vpack.c.b16 %v100, %v99
  %v116 = vpack.c.b16 %v102, %v101
  %v117 = vpack.c.b16 %v104, %v103
  %v118 = vpack.c.b16 %v106, %v105
  %v119 = vpack.c.b16 %v108, %v107
  %v120 = vpack.c.b16 %v110, %v109
  %v121 = vpack.c.b16 %v112, %v111
  %v122 = vpack.c.b16 %v114, %v113
  %v147 = vunpack.c.l.b16 %v67
  %v148 = vunpack.c.l.b16 %v68
  %v149 = vunpack.c.l.b16 %v69
  %v150 = vunpack.c.l.b16 %v70
  %v151 = vunpack.c.l.b16 %v71
  %v152 = vunpack.c.l.b16 %v72
  %v153 = vunpack.c.l.b16 %v73
  %v154 = vunpack.c.l.b16 %v74
  %v155 = vunpack.c.l.b16 %v75
  %v156 = vunpack.c.l.b16 %v76
  %v157 = vunpack.c.l.b16 %v77
  %v158 = vunpack.c.l.b16 %v78
  %v159 = vunpack.c.l.b16 %v79
  %v160 = vunpack.c.l.b16 %v80
  %v161 = vunpack.c.l.b16 %v81
  %v162 = vunpack.c.l.b16 %v82
  %v163 = vpack.c.b16 %v148, %v147
  %v164 = vpack.c.b16 %v150, %v149
  %v165 = vpack.c.b16 %v152, %v151
  %v166 = vpack.c.b16 %v154, %v153
  %v167 = vpack.c.b16 %v156, %v155
  %v168 = vpack.c.b16 %v158, %v157
  %v169 = vpack.c.b16 %v160, %v159
  %v170 = vpack.c.b16 %v162, %v161
  %179 = vmatprep.subr.bf16.mxu0 0
  %180 = vmatpush1.bf16.msra.mxu0 %v163
  %181 = vmatprep.subr.bf16.mxu0 0
  %182 = vmatpush1.bf16.msra.mxu0 %v164
  %183 = vmatprep.subr.bf16.mxu0 0
  %184 = vmatpush1.bf16.msra.mxu0 %v165
  %185 = vmatprep.subr.bf16.mxu0 0
  %186 = vmatpush1.bf16.msra.mxu0 %v166
  %187 = vmatprep.subr.bf16.mxu0 0
  %188 = vmatpush1.bf16.msra.mxu0 %v167
  %189 = vmatprep.subr.bf16.mxu0 0
  %190 = vmatpush1.bf16.msra.mxu0 %v168
  %191 = vmatprep.subr.bf16.mxu0 0
  %192 = vmatpush1.bf16.msra.mxu0 %v169
  %193 = vmatprep.subr.bf16.mxu0 0
  %194 = vmatpush1.bf16.msra.mxu0 %v170
  %195 = vmatprep.subr.bf16.mxu0 0
  %196 = vmatpush1.bf16.msra.mxu0 0
  %197 = vmatprep.subr.bf16.mxu0 0
  %198 = vmatpush1.bf16.msra.mxu0 0
  %199 = vmatprep.subr.bf16.mxu0 0
  %200 = vmatpush1.bf16.msra.mxu0 0
  %201 = vmatprep.subr.bf16.mxu0 0
  %202 = vmatpush1.bf16.msra.mxu0 0
  %203 = vmatprep.subr.bf16.mxu0 0
  %204 = vmatpush1.bf16.msra.mxu0 0
  %205 = vmatprep.subr.bf16.mxu0 0
  %206 = vmatpush1.bf16.msra.mxu0 0
  %207 = vmatprep.subr.bf16.mxu0 0
  %208 = vmatpush1.bf16.msra.mxu0 0
  %209 = vmatprep.subr.bf16.mxu0 0
  %210 = vmatpush1.bf16.msra.mxu0 0
  %211 = vmatprep.mubr.bf16.mxu0 0
  %212 = vmatmul.mubr.bf16.gmra.mrb[0].mxu0 %v115
  %v213 = vpop.f32.mrb[0].mxu0
  %v214 = vadd.f32 0.0, %v213
  %v215 = vpop.f32.mrb[0].mxu0
  %v216 = vpop.f32.mrb[0].mxu0
  %v217 = vadd.f32 0.0, %v216
  %v218 = vpop.f32.mrb[0].mxu0
  %219 = vmatprep.mubr.bf16.mxu0 0
  %220 = vmatmul.mubr.bf16.gmra.mrb[0].mxu0 %v116
  %v221 = vpop.f32.mrb[0].mxu0
  %v222 = vadd.f32 0.0, %v221
  %v223 = vpop.f32.mrb[0].mxu0
  %v224 = vpop.f32.mrb[0].mxu0
  %v225 = vadd.f32 0.0, %v224
  %v226 = vpop.f32.mrb[0].mxu0
  %227 = vmatprep.mubr.bf16.mxu0 0
  %228 = vmatmul.mubr.bf16.gmra.mrb[0].mxu0 %v117
  %v229 = vpop.f32.mrb[0].mxu0
  %v230 = vadd.f32 0.0, %v229
  %v231 = vpop.f32.mrb[0].mxu0
  %v232 = vpop.f32.mrb[0].mxu0
  %v233 = vadd.f32 0.0, %v232
  %v234 = vpop.f32.mrb[0].mxu0
  %235 = vmatprep.mubr.bf16.mxu0 0
  %236 = vmatmul.mubr.bf16.gmra.mrb[0].mxu0 %v118
  %v237 = vpop.f32.mrb[0].mxu0
  %v238 = vadd.f32 0.0, %v237
  %v239 = vpop.f32.mrb[0].mxu0
  %v240 = vpop.f32.mrb[0].mxu0
  %v241 = vadd.f32 0.0, %v240
  %v242 = vpop.f32.mrb[0].mxu0
  %243 = vmatprep.mubr.bf16.mxu0 0
  %244 = vmatmul.mubr.bf16.gmra.mrb[0].mxu0 %v119
  %v245 = vpop.f32.mrb[0].mxu0
  %v246 = vadd.f32 0.0, %v245
  %v247 = vpop.f32.mrb[0].mxu0
  %v248 = vpop.f32.mrb[0].mxu0
  %v249 = vadd.f32 0.0, %v248
  %v250 = vpop.f32.mrb[0].mxu0
  %251 = vmatprep.mubr.bf16.mxu0 0
  %252 = vmatmul.mubr.bf16.gmra.mrb[0].mxu0 %v120
  %v253 = vpop.f32.mrb[0].mxu0
  %v254 = vadd.f32 0.0, %v253
  %v255 = vpop.f32.mrb[0].mxu0
  %v256 = vpop.f32.mrb[0].mxu0
  %v257 = vadd.f32 0.0, %v256
  %v258 = vpop.f32.mrb[0].mxu0
  %259 = vmatprep.mubr.bf16.mxu0 0
  %260 = vmatmul.mubr.bf16.gmra.mrb[0].mxu0 %v121
  %v261 = vpop.f32.mrb[0].mxu0
  %v262 = vadd.f32 0.0, %v261
  %v263 = vpop.f32.mrb[0].mxu0
  %v264 = vpop.f32.mrb[0].mxu0
  %v265 = vadd.f32 0.0, %v264
  %v266 = vpop.f32.mrb[0].mxu0
  %267 = vmatprep.mubr.bf16.mxu0 0
  %268 = vmatmul.mubr.bf16.gmra.mrb[0].mxu0 %v122
  %v269 = vpop.f32.mrb[0].mxu0
  %v270 = vadd.f32 0.0, %v269
  %v271 = vpop.f32.mrb[0].mxu0
  %v272 = vpop.f32.mrb[0].mxu0
  %v273 = vadd.f32 0.0, %v272
  %v274 = vpop.f32.mrb[0].mxu0
  %275 = vdwg.mxu0
  %v276 = vadd.f32 %v35, %v214
  %v277 = vadd.f32 %v36, %v217
  %v278 = vadd.f32 %v37, %v222
  %v279 = vadd.f32 %v38, %v225
  %v280 = vadd.f32 %v39, %v230
  %v281 = vadd.f32 %v40, %v233
  %v282 = vadd.f32 %v41, %v238
  %v283 = vadd.f32 %v42, %v241
  %v284 = vadd.f32 %v43, %v246
  %v285 = vadd.f32 %v44, %v249
  %v286 = vadd.f32 %v45, %v254
  %v287 = vadd.f32 %v46, %v257
  %v288 = vadd.f32 %v47, %v262
  %v289 = vadd.f32 %v48, %v265
  %v290 = vadd.f32 %v49, %v270
  %v291 = vadd.f32 %v50, %v273
  %292 = vst [vmem:[#allocation2] sm:$0xff] %v276
  %293 = vst [vmem:[#allocation2 + $0x8] sm:$0xff] %v277
  %294 = vst [vmem:[#allocation2 + $0x10] sm:$0xff] %v278
  %295 = vst [vmem:[#allocation2 + $0x18] sm:$0xff] %v279
  %296 = vst [vmem:[#allocation2 + $0x20] sm:$0xff] %v280
  %297 = vst [vmem:[#allocation2 + $0x28] sm:$0xff] %v281
  %298 = vst [vmem:[#allocation2 + $0x30] sm:$0xff] %v282
  %299 = vst [vmem:[#allocation2 + $0x38] sm:$0xff] %v283
  %300 = vst [vmem:[#allocation2 + $0x40] sm:$0xff] %v284
  %301 = vst [vmem:[#allocation2 + $0x48] sm:$0xff] %v285
  %302 = vst [vmem:[#allocation2 + $0x50] sm:$0xff] %v286
  %303 = vst [vmem:[#allocation2 + $0x58] sm:$0xff] %v287
  %304 = vst [vmem:[#allocation2 + $0x60] sm:$0xff] %v288
  %305 = vst [vmem:[#allocation2 + $0x68] sm:$0xff] %v289
  %306 = vst [vmem:[#allocation2 + $0x70] sm:$0xff] %v290
  %307 = vst [vmem:[#allocation2 + $0x78] sm:$0xff] %v291
  // Predicated region
  $region18: #{resnet_base_oc_forward.12} parent=0 // pred_check
    %p308 = pneg %p15
  $region19: #{resnet_base_oc_forward.12} parent=0 // pred_check_branch
    %310 = sbr.rel (%p308) target = $region21
  $region20: #{resnet_base_oc_forward.12} parent=0 // pred_region
    %v311 = vld [vmem:[#allocation2] sm:$0xff]
    %v312 = vld [vmem:[#allocation2 + $0x8] sm:$0xff]
    %v313 = vld [vmem:[#allocation2 + $0x10] sm:$0xff]
    %v314 = vld [vmem:[#allocation2 + $0x18] sm:$0xff]
    %v315 = vld [vmem:[#allocation2 + $0x20] sm:$0xff]
    %v316 = vld [vmem:[#allocation2 + $0x28] sm:$0xff]
    %v317 = vld [vmem:[#allocation2 + $0x30] sm:$0xff]
    %v318 = vld [vmem:[#allocation2 + $0x38] sm:$0xff]
    %v319 = vld [vmem:[#allocation2 + $0x40] sm:$0xff]
    %v320 = vld [vmem:[#allocation2 + $0x48] sm:$0xff]
    %v321 = vld [vmem:[#allocation2 + $0x50] sm:$0xff]
    %v322 = vld [vmem:[#allocation2 + $0x58] sm:$0xff]
    %v323 = vld [vmem:[#allocation2 + $0x60] sm:$0xff]
    %v324 = vld [vmem:[#allocation2 + $0x68] sm:$0xff]
    %v325 = vld [vmem:[#allocation2 + $0x70] sm:$0xff]
    %v326 = vld [vmem:[#allocation2 + $0x78] sm:$0xff]
    %v327 = vld [vmem:[%s2] sm:$0x1]
    %v329 = vlaneseq
    %v330 = vshrl.u32 %v329, 7
    %v331 = vsub.s32 0, %v330
    %v332 = vrot.slane %v327, %v331
    %v334 = vadd.f32 %v311, %v332
    %v335 = vadd.f32 %v312, %v332
    %v336 = vadd.f32 %v313, %v332
    %v337 = vadd.f32 %v314, %v332
    %v338 = vadd.f32 %v315, %v332
    %v339 = vadd.f32 %v316, %v332
    %v340 = vadd.f32 %v317, %v332
    %v341 = vadd.f32 %v318, %v332
    %v342 = vadd.f32 %v319, %v332
    %v343 = vadd.f32 %v320, %v332
    %v344 = vadd.f32 %v321, %v332
    %v345 = vadd.f32 %v322, %v332
    %v346 = vadd.f32 %v323, %v332
    %v347 = vadd.f32 %v324, %v332
    %v348 = vadd.f32 %v325, %v332
    %v349 = vadd.f32 %v326, %v332
    %350 = vst [vmem:[%s3] sm:$0xff] %v334
    %351 = vst [vmem:[%s3 + $0x8] sm:$0xff] %v335
    %352 = vst [vmem:[%s3 + $0x10] sm:$0xff] %v336
    %353 = vst [vmem:[%s3 + $0x18] sm:$0xff] %v337
    %354 = vst [vmem:[%s3 + $0x20] sm:$0xff] %v338
    %355 = vst [vmem:[%s3 + $0x28] sm:$0xff] %v339
    %356 = vst [vmem:[%s3 + $0x30] sm:$0xff] %v340
    %357 = vst [vmem:[%s3 + $0x38] sm:$0xff] %v341
    %358 = vst [vmem:[%s3 + $0x40] sm:$0xff] %v342
    %359 = vst [vmem:[%s3 + $0x48] sm:$0xff] %v343
    %360 = vst [vmem:[%s3 + $0x50] sm:$0xff] %v344
    %361 = vst [vmem:[%s3 + $0x58] sm:$0xff] %v345
    %362 = vst [vmem:[%s3 + $0x60] sm:$0xff] %v346
    %363 = vst [vmem:[%s3 + $0x68] sm:$0xff] %v347
    %364 = vst [vmem:[%s3 + $0x70] sm:$0xff] %v348
    %365 = vst [vmem:[%s3 + $0x78] sm:$0xff] %v349
  $region21: #{resnet_base_oc_forward.12} parent=0 // pred_fallthru
    _
  // Predicated region
  $region22: #{resnet_base_oc_forward.12} parent=0 // pred_check
    _
  $region23: #{resnet_base_oc_forward.12} parent=0 // pred_check_branch
    %367 = sbr.rel (0) target = $region25
  $region24: #{resnet_base_oc_forward.12} parent=0 // pred_region
    _
  $region25: #{resnet_base_oc_forward.12} parent=0 // pred_fallthru
    _
  // Predicated region
  $region26: #{resnet_base_oc_forward.12} parent=0 // pred_check
    _
  $region27: #{resnet_base_oc_forward.12} parent=0 // pred_check_branch
    %369 = sbr.rel (0) target = $region29
  $region28: #{resnet_base_oc_forward.12} parent=0 // pred_region
    _
  $region29: #{resnet_base_oc_forward.12} parent=0 // pred_fallthru
    _

// kernel: resnet_base_oc_forward.13
$region0: #{resnet_base_oc_forward.13}
  #allocation0 [shape = 'u32[]', space=smem, size = 0x4, offset = 0x4, fixed_abs, tag = 'smem constant byte address 0x4 - core index']
  #allocation1 [shape = 'u32[144,128]{1,0:T(1,128)}', space=vmem, size = 0x12000, scoped, tag = 'internal scratch']
  %s0 = inlined_call_operand.vmem [shape: f32[16,8], index: 0, kind: input, shape index: {}]
  %s1 = inlined_call_operand.vmem [shape: f32[8,16], index: 1, kind: input, shape index: {}]
  %s2 = inlined_call_operand.vmem [shape: f32[10,8,8], index: 2, kind: input, shape index: {}]
  %s3 = inlined_call_operand.hbm [shape: f32[10,16,16], index: 3, kind: output, shape index: {}]
  %s4 = sld [smem:[#allocation0]]
  $region45: #{resnet_base_oc_forward.13} parent=0
    _
  %s6 = ssub.s32 1, %s4
  %s7 = scalar_select 0, %s6, %s4
  $region1: #{resnet_base_oc_forward.13} parent=0
    #allocation2 [shape = 'u8[16384]{0}', space=vmem, size = 0x4000, scoped, tag = 'output window, operand 0']
    #allocation3 [shape = 's32[2]{0}', space=sflag, size = 0x8, scoped, tag = 'scoped memory for resnet_base_oc_forward.13']
    %8 = vsyncpa [#allocation3], 0
    %s9 = scalar_lea.sflag [#allocation3], 1
    %10 = vsyncpa %s9, 0
    loop: start=0, step=1, limit=12
    $region2: #{resnet_base_oc_forward.13} parent=1 // loop_pre_header
      _
    $region3: #{resnet_base_oc_forward.13} parent=1 // loop_header
      %s12 = sphi 0, %s16
      %p13 = scmp.ge.s32.totalorder %s12, 12
      %s20 = sphi 0, %s20
      %s22 = sphi 0, %s20
      %s23 = sphi 0, %s22
      %s37 = sphi 0, %s23
      %s41 = sphi 0, %s41
      %s43 = sphi 0, %s41
      %s44 = sphi 0, %s43
      %s58 = sphi 0, %s44
      %s64 = sphi 0, %s66
      %s67 = sphi 0, %s64
      %s68 = sphi 0, %s67
      %s84 = sphi 0, %s68
      %s90 = sphi 0, %s92
      %s93 = sphi 0, %s90
      %s94 = sphi 0, %s93
      %s110 = sphi 0, %s94
    $region4: #{resnet_base_oc_forward.13} parent=1 // loop_header_branch
      %15 = sbr.rel (%p13) target = $region8
    $region5: #{resnet_base_oc_forward.13} parent=1 // loop_body
      %s17 = ssub.s32 %s12, 1
      %s18 = ssub.s32 %s12, 2
      %s19 = sadd.s32 %s12, 1
      %s21 = sadd.s32 %s20, 1
      %p24 = scmp.eq.s32.totalorder %s12, 9
      %p25 = scmp.ne.s32.totalorder %s20, %s22
      %p26 = scmp.eq.s32.totalorder %s12, 0
      %p27 = por %p25, %p26
      %p28 = scmp.ne.s32.totalorder %s20, %s22
      %p29 = scmp.eq.s32.totalorder %s17, 9
      %p30 = por %p28, %p29
      %p31 = scmp.ne.s32.totalorder %s22, %s23
      %p32 = scmp.eq.s32.totalorder %s17, 0
      %p33 = por %p31, %p32
      %p34 = scmp.ne.s32.totalorder %s22, %s23
      %p35 = scmp.eq.s32.totalorder %s18, 9
      %p36 = por %p34, %p35
      %p38 = scmp.ne.s32.totalorder %s23, %s37
      %p39 = scmp.eq.s32.totalorder %s18, 0
      %p40 = por %p38, %p39
      %s42 = sadd.s32 %s41, 1
      %p45 = scmp.eq.s32.totalorder %s12, 9
      %p46 = scmp.ne.s32.totalorder %s41, %s43
      %p47 = scmp.eq.s32.totalorder %s12, 0
      %p48 = por %p46, %p47
      %p49 = scmp.ne.s32.totalorder %s41, %s43
      %p50 = scmp.eq.s32.totalorder %s17, 9
      %p51 = por %p49, %p50
      %p52 = scmp.ne.s32.totalorder %s43, %s44
      %p53 = scmp.eq.s32.totalorder %s17, 0
      %p54 = por %p52, %p53
      %p55 = scmp.ne.s32.totalorder %s43, %s44
      %p56 = scmp.eq.s32.totalorder %s18, 9
      %p57 = por %p55, %p56
      %p59 = scmp.ne.s32.totalorder %s44, %s58
      %p60 = scmp.eq.s32.totalorder %s18, 0
      %p61 = por %p59, %p60
      %s62 = ssub.s32 %s12, %s19
      %p63 = scmp.eq.s32.totalorder %s62, 0
      %s65 = sadd.s32 %s64, 1
      %s66 = scalar_select %p63, %s64, %s65
      %p69 = pneg %p63
      %p70 = scmp.eq.s32.totalorder %s12, 9
      %p71 = por %p69, %p70
      %p72 = scmp.ne.s32.totalorder %s64, %s67
      %p73 = scmp.eq.s32.totalorder %s12, 0
      %p74 = por %p72, %p73
      %p75 = scmp.ne.s32.totalorder %s64, %s67
      %p76 = scmp.eq.s32.totalorder %s17, 9
      %p77 = por %p75, %p76
      %p78 = scmp.ne.s32.totalorder %s67, %s68
      %p79 = scmp.eq.s32.totalorder %s17, 0
      %p80 = por %p78, %p79
      %p81 = scmp.ne.s32.totalorder %s67, %s68
      %p82 = scmp.eq.s32.totalorder %s18, 9
      %p83 = por %p81, %p82
      %p85 = scmp.ne.s32.totalorder %s68, %s84
      %p86 = scmp.eq.s32.totalorder %s18, 0
      %p87 = por %p85, %p86
      %s88 = ssub.s32 %s12, %s19
      %p89 = scmp.eq.s32.totalorder %s88, 0
      %s91 = sadd.s32 %s90, 1
      %s92 = scalar_select %p89, %s90, %s91
      %p95 = pneg %p89
      %p96 = scmp.eq.s32.totalorder %s12, 9
      %p97 = por %p95, %p96
      %p98 = scmp.ne.s32.totalorder %s90, %s93
      %p99 = scmp.eq.s32.totalorder %s12, 0
      %p100 = por %p98, %p99
      %p101 = scmp.ne.s32.totalorder %s90, %s93
      %p102 = scmp.eq.s32.totalorder %s17, 9
      %p103 = por %p101, %p102
      %p104 = scmp.ne.s32.totalorder %s93, %s94
      %p105 = scmp.eq.s32.totalorder %s17, 0
      %p106 = por %p104, %p105
      %p107 = scmp.ne.s32.totalorder %s93, %s94
      %p108 = scmp.eq.s32.totalorder %s18, 9
      %p109 = por %p107, %p108
      %p111 = scmp.ne.s32.totalorder %s94, %s110
      %p112 = scmp.eq.s32.totalorder %s18, 0
      %p113 = por %p111, %p112
      %p114 = scmp.le.s32.totalorder 1, %s12
      %p115 = scmp.lt.s32.totalorder %s12, 11
      %p116 = pnand %p114, %p115
      %p117 = pneg %p116
      // Predicated region
      $region9: #{resnet_base_oc_forward.13} parent=5 // pred_check
        _
      $region10: #{resnet_base_oc_forward.13} parent=5 // pred_check_branch
        %119 = sbr.rel (%p116) target = $region12
      $region11: #{resnet_base_oc_forward.13} parent=5 // pred_region
        %s120 = ssub.s32 %s12, 1
        // Predicated region
        $region13: #{resnet_base_oc_forward.13} parent=11 // pred_check
          %p121 = pneg %p33
        $region14: #{resnet_base_oc_forward.13} parent=11 // pred_check_branch
          %123 = sbr.rel (%p121) target = $region16
        $region15: #{resnet_base_oc_forward.13} parent=11 // pred_region
          _
        $region16: #{resnet_base_oc_forward.13} parent=11 // pred_fallthru
          _
        // Predicated region
        $region17: #{resnet_base_oc_forward.13} parent=11 // pred_check
          %p124 = pneg %p54
        $region18: #{resnet_base_oc_forward.13} parent=11 // pred_check_branch
          %126 = sbr.rel (%p124) target = $region20
        $region19: #{resnet_base_oc_forward.13} parent=11 // pred_region
          _
        $region20: #{resnet_base_oc_forward.13} parent=11 // pred_fallthru
          _
      $region12: #{resnet_base_oc_forward.13} parent=5 // pred_fallthru
        _
      %p127 = scmp.lt.s32.totalorder %s12, 10
      // Predicated region
      $region21: #{resnet_base_oc_forward.13} parent=5 // pred_check
        %p128 = pneg %p127
      $region22: #{resnet_base_oc_forward.13} parent=5 // pred_check_branch
        %130 = sbr.rel (%p128) target = $region24
      $region23: #{resnet_base_oc_forward.13} parent=5 // pred_region
        // Predicated region
        $region25: #{resnet_base_oc_forward.13} parent=23 // pred_check
          %p131 = pneg %p74
        $region26: #{resnet_base_oc_forward.13} parent=23 // pred_check_branch
          %133 = sbr.rel (%p131) target = $region28
        $region27: #{resnet_base_oc_forward.13} parent=23 // pred_region
          %p134 = scmp.lt.s32.totalorder %s12, 9
          %s135 = scalar_select %p134, %s12, 9
          %s136 = smul.addr %s135, 8
          %s137 = scalar_lea.vmem %s2, %s136
        $region28: #{resnet_base_oc_forward.13} parent=23 // pred_fallthru
          _
      $region24: #{resnet_base_oc_forward.13} parent=5 // pred_fallthru
        _
      %p138 = scmp.le.s32.totalorder 1, %s12
      %p139 = scmp.lt.s32.totalorder %s12, 11
      %p140 = pnand %p138, %p139
      %p141 = pneg %p140
      // Predicated region
      $region29: #{resnet_base_oc_forward.13} parent=5 // pred_check
        _
      $region30: #{resnet_base_oc_forward.13} parent=5 // pred_check_branch
        %143 = sbr.rel (%p140) target = $region32
      $region31: #{resnet_base_oc_forward.13} parent=5 // pred_region
        %s144 = ssub.s32 %s12, 1
        %p145 = pneg %p33
        %p146 = pneg %p30
        %p147 = pneg %p54
        %p148 = pneg %p51
        %p149 = scmp.lt.s32.totalorder %s17, 9
        %s150 = scalar_select %p149, %s17, 9
        %s151 = smul.addr %s150, 8
        %s152 = scalar_lea.vmem %s2, %s151
        %p153 = pneg %p80
        %p154 = pneg %p77
        %p155 = pneg %p106
        %p156 = pneg %p103
        %s157 = sand.u32 %s93, 1
        %s158 = scalar_lea.sflag [#allocation3], %s157
        %s159 = sand.u32 %s93, 1
        %s160 = smul.addr %s159, 16
        %s161 = scalar_lea.vmem [#allocation2], %s160
        %p162 = scmp.lt.s32.totalorder %s17, 9
        %s163 = scalar_select %p162, %s17, 9
        %s164 = smul.addr %s163, 8
        %s165 = scalar_lea.vmem %s2, %s164
        %v166 = vld [vmem:[%s0] sm:$0xff]
        %v167 = vld [vmem:[%s0 + $0x8] sm:$0xff]
        %v168 = vld [vmem:[%s165] sm:$0xff]
        %vm169 = vcmask 64512
        %v171 = vsel %vm169, %v166, 0
        %v174 = vsel %vm169, %v167, 0
        %176 = vmatprep.subr.mxu0 0.0
        %177 = vmatpush1.msra.mxu0 %v168
        %178 = vmatprep.subr.mxu0 0.0
        %179 = vmatpush1.msra.mxu0 0.0
        %180 = vmatprep.subr.mxu0 0.0
        %181 = vmatpush1.msra.mxu0 0.0
        %182 = vmatprep.subr.mxu0 0.0
        %183 = vmatpush1.msra.mxu0 0.0
        %184 = vmatprep.subr.mxu0 0.0
        %185 = vmatpush1.msra.mxu0 0.0
        %186 = vmatprep.subr.mxu0 0.0
        %187 = vmatpush1.msra.mxu0 0.0
        %188 = vmatprep.subr.mxu0 0.0
        %189 = vmatpush1.msra.mxu0 0.0
        %190 = vmatprep.subr.mxu0 0.0
        %191 = vmatpush1.msra.mxu0 0.0
        %192 = vmatprep.subr.mxu0 0.0
        %193 = vmatpush1.msra.mxu0 0.0
        %194 = vmatprep.subr.mxu0 0.0
        %195 = vmatpush1.msra.mxu0 0.0
        %196 = vmatprep.subr.mxu0 0.0
        %197 = vmatpush1.msra.mxu0 0.0
        %198 = vmatprep.subr.mxu0 0.0
        %199 = vmatpush1.msra.mxu0 0.0
        %200 = vmatprep.subr.mxu0 0.0
        %201 = vmatpush1.msra.mxu0 0.0
        %202 = vmatprep.subr.mxu0 0.0
        %203 = vmatpush1.msra.mxu0 0.0
        %204 = vmatprep.subr.mxu0 0.0
        %205 = vmatpush1.msra.mxu0 0.0
        %206 = vmatprep.subr.mxu0 0.0
        %207 = vmatpush1.msra.mxu0 0.0
        %208 = vmatprep.subr.mxu0 0.0
        %209 = vmatpush1.msra.mxu0 0.0
        %210 = vmatprep.subr.mxu0 0.0
        %211 = vmatpush1.msra.mxu0 0.0
        %212 = vmatprep.subr.mxu0 0.0
        %213 = vmatpush1.msra.mxu0 0.0
        %214 = vmatprep.subr.mxu0 0.0
        %215 = vmatpush1.msra.mxu0 0.0
        %216 = vmatprep.subr.mxu0 0.0
        %217 = vmatpush1.msra.mxu0 0.0
        %218 = vmatprep.subr.mxu0 0.0
        %219 = vmatpush1.msra.mxu0 0.0
        %220 = vmatprep.subr.mxu0 0.0
        %221 = vmatpush1.msra.mxu0 0.0
        %222 = vmatprep.subr.mxu0 0.0
        %223 = vmatpush1.msra.mxu0 0.0
        %224 = vmatprep.subr.mxu0 0.0
        %225 = vmatpush1.msra.mxu0 0.0
        %226 = vmatprep.subr.mxu0 0.0
        %227 = vmatpush1.msra.mxu0 0.0
        %228 = vmatprep.subr.mxu0 0.0
        %229 = vmatpush1.msra.mxu0 0.0
        %230 = vmatprep.subr.mxu0 0.0
        %231 = vmatpush1.msra.mxu0 0.0
        %232 = vmatprep.subr.mxu0 0.0
        %233 = vmatpush1.msra.mxu0 0.0
        %234 = vmatprep.subr.mxu0 0.0
        %235 = vmatpush1.msra.mxu0 0.0
        %236 = vmatprep.subr.mxu0 0.0
        %237 = vmatpush1.msra.mxu0 0.0
        %238 = vmatprep.subr.mxu0 0.0
        %239 = vmatpush1.msra.mxu0 0.0
        %240 = vmatprep.mubr.f32.mxu0 0.0
        %241 = vmatmul.mubr.f32.gmra.mrb[0].mxu0 %v171
        %v242 = vpop.f32.mrb[0].mxu0
        %v243 = vadd.f32 0.0, %v242
        %v244 = vpop.f32.mrb[0].mxu0
        %245 = vmatprep.mubr.f32.mxu0 0.0
        %246 = vmatmul.mubr.f32.gmra.mrb[0].mxu0 %v174
        %v247 = vpop.f32.mrb[0].mxu0
        %v248 = vadd.f32 0.0, %v247
        %v249 = vpop.f32.mrb[0].mxu0
        %250 = vdwg.mxu0
        %v251 = vld [vmem:[%s1] sm:$0xff]
        %v253 = vsel %vm169, %v243, 0
        %v256 = vsel %vm169, %v248, 0
        %258 = vmatprep.subr.mxu0 0.0
        %259 = vmatpush1.msra.mxu0 %v251
        %260 = vmatprep.subr.mxu0 0.0
        %261 = vmatpush1.msra.mxu0 0.0
        %262 = vmatprep.subr.mxu0 0.0
        %263 = vmatpush1.msra.mxu0 0.0
        %264 = vmatprep.subr.mxu0 0.0
        %265 = vmatpush1.msra.mxu0 0.0
        %266 = vmatprep.subr.mxu0 0.0
        %267 = vmatpush1.msra.mxu0 0.0
        %268 = vmatprep.subr.mxu0 0.0
        %269 = vmatpush1.msra.mxu0 0.0
        %270 = vmatprep.subr.mxu0 0.0
        %271 = vmatpush1.msra.mxu0 0.0
        %272 = vmatprep.subr.mxu0 0.0
        %273 = vmatpush1.msra.mxu0 0.0
        %274 = vmatprep.subr.mxu0 0.0
        %275 = vmatpush1.msra.mxu0 0.0
        %276 = vmatprep.subr.mxu0 0.0
        %277 = vmatpush1.msra.mxu0 0.0
        %278 = vmatprep.subr.mxu0 0.0
        %279 = vmatpush1.msra.mxu0 0.0
        %280 = vmatprep.subr.mxu0 0.0
        %281 = vmatpush1.msra.mxu0 0.0
        %282 = vmatprep.subr.mxu0 0.0
        %283 = vmatpush1.msra.mxu0 0.0
        %284 = vmatprep.subr.mxu0 0.0
        %285 = vmatpush1.msra.mxu0 0.0
        %286 = vmatprep.subr.mxu0 0.0
        %287 = vmatpush1.msra.mxu0 0.0
        %288 = vmatprep.subr.mxu0 0.0
        %289 = vmatpush1.msra.mxu0 0.0
        %290 = vmatprep.subr.mxu0 0.0
        %291 = vmatpush1.msra.mxu0 0.0
        %292 = vmatprep.subr.mxu0 0.0
        %293 = vmatpush1.msra.mxu0 0.0
        %294 = vmatprep.subr.mxu0 0.0
        %295 = vmatpush1.msra.mxu0 0.0
        %296 = vmatprep.subr.mxu0 0.0
        %297 = vmatpush1.msra.mxu0 0.0
        %298 = vmatprep.subr.mxu0 0.0
        %299 = vmatpush1.msra.mxu0 0.0
        %300 = vmatprep.subr.mxu0 0.0
        %301 = vmatpush1.msra.mxu0 0.0
        %302 = vmatprep.subr.mxu0 0.0
        %303 = vmatpush1.msra.mxu0 0.0
        %304 = vmatprep.subr.mxu0 0.0
        %305 = vmatpush1.msra.mxu0 0.0
        %306 = vmatprep.subr.mxu0 0.0
        %307 = vmatpush1.msra.mxu0 0.0
        %308 = vmatprep.subr.mxu0 0.0
        %309 = vmatpush1.msra.mxu0 0.0
        %310 = vmatprep.subr.mxu0 0.0
        %311 = vmatpush1.msra.mxu0 0.0
        %312 = vmatprep.subr.mxu0 0.0
        %313 = vmatpush1.msra.mxu0 0.0
        %314 = vmatprep.subr.mxu0 0.0
        %315 = vmatpush1.msra.mxu0 0.0
        %316 = vmatprep.subr.mxu0 0.0
        %317 = vmatpush1.msra.mxu0 0.0
        %318 = vmatprep.subr.mxu0 0.0
        %319 = vmatpush1.msra.mxu0 0.0
        %320 = vmatprep.subr.mxu0 0.0
        %321 = vmatpush1.msra.mxu0 0.0
        %322 = vmatprep.mubr.f32.mxu0 0.0
        %323 = vmatmul.mubr.f32.gmra.mrb[0].mxu0 %v253
        %v324 = vpop.f32.mrb[0].mxu0
        %v325 = vadd.f32 0.0, %v324
        %v326 = vpop.f32.mrb[0].mxu0
        %327 = vmatprep.mubr.f32.mxu0 0.0
        %328 = vmatmul.mubr.f32.gmra.mrb[0].mxu0 %v256
        %v329 = vpop.f32.mrb[0].mxu0
        %v330 = vadd.f32 0.0, %v329
        %v331 = vpop.f32.mrb[0].mxu0
        %332 = vdwg.mxu0
        %vm333 = vcmask 130048
        %334 = vst.msk [vmem:[%s161] sm:$0xff] %vm333, %v325
        %335 = vst.msk [vmem:[%s161 + $0x8] sm:$0xff] %vm333, %v330
        %s336 = sand.u32 %s93, 1
        %s337 = scalar_lea.sflag [#allocation3], %s336
        %s338 = sand.u32 %s93, 1
        %s339 = smul.addr %s338, 16
        %s340 = scalar_lea.vmem [#allocation2], %s339
        // Predicated region
        $region33: #{resnet_base_oc_forward.13} parent=31 // pred_check
          %p341 = pneg %p103
        $region34: #{resnet_base_oc_forward.13} parent=31 // pred_check_branch
          %343 = sbr.rel (%p341) target = $region36
        $region35: #{resnet_base_oc_forward.13} parent=31 // pred_region
          %s345 = ssub.s32 256, 256
          %346 = vsyncadd %s337, %s345
          %s347 = smul.addr %s17, 2
          %s348 = smul.addr %s347, 128
          %s349 = scalar_lea.hbm %s3, %s348
          %s350 = sshll.u32 %s340, 4
          %s351 = int_to_ptr.vmem [resolvable:$true] %s350
          %356 = dma.vmem_to_hbm [thread:$0]  %s351, 256, %s349, %s337, 128, 128, 8
        $region36: #{resnet_base_oc_forward.13} parent=31 // pred_fallthru
          _
      $region32: #{resnet_base_oc_forward.13} parent=5 // pred_fallthru
        _
      %p357 = scmp.le.s32.totalorder 2, %s12
      // Predicated region
      $region37: #{resnet_base_oc_forward.13} parent=5 // pred_check
        %p358 = pneg %p357
      $region38: #{resnet_base_oc_forward.13} parent=5 // pred_check_branch
        %360 = sbr.rel (%p358) target = $region40
      $region39: #{resnet_base_oc_forward.13} parent=5 // pred_region
        %s361 = ssub.s32 %s12, 2
        // Predicated region
        $region41: #{resnet_base_oc_forward.13} parent=39 // pred_check
          %p362 = pneg %p109
        $region42: #{resnet_base_oc_forward.13} parent=39 // pred_check_branch
          %364 = sbr.rel (%p362) target = $region44
        $region43: #{resnet_base_oc_forward.13} parent=39 // pred_region
          %s365 = sand.u32 %s94, 1
          %s366 = scalar_lea.sflag [#allocation3], %s365
          %s367 = sand.u32 %s94, 1
          %s368 = smul.addr %s367, 16
          %s369 = scalar_lea.vmem [#allocation2], %s368
          %370 = dma.done %s366, 256
        $region44: #{resnet_base_oc_forward.13} parent=39 // pred_fallthru
          _
      $region40: #{resnet_base_oc_forward.13} parent=5 // pred_fallthru
        _
    $region6: #{resnet_base_oc_forward.13} parent=1 // loop_footer
      %s16 = sadd.s32 1, %s12
    $region7: #{resnet_base_oc_forward.13} parent=1 // loop_footer_branch
      %11 = sbr.rel target = $region3
    $region8: #{resnet_base_oc_forward.13} parent=1 // loop_exit
      _
    %371 = vsyncpa [#allocation3], 1
    %s372 = scalar_lea.sflag [#allocation3], 1
    %373 = vsyncpa %s372, 1

</llo_original>
